<compile_context>
chip_gen: v5e
topology: v5e:2x2
jax: 0.10.0
libtpu: 0.0.40
codegen_flags: <defaults>
</compile_context>

<pallas_src>
import jax
import jax.numpy as jnp
from jax.experimental import pallas as pl
from jax.experimental.pallas import tpu as pltpu

N_ROWS = 96          # 2 * view_size
VIEW = 48            # hard-coded in the module
F_IN = 4096
F_OUT = 128


def feature_kernel(s_ref, x_ref, w_ref, b_ref, o_ref):
    # x_ref: (2, 48, 4096) bf16, w_ref: (4096, 128) bf16, b_ref: (1, 128) f32,
    # s_ref: (1, 1) f32 in SMEM, o_ref: (2, 128) f32. Single invocation, no grid.

    # EltMax over the 48 views of each half; sublane reduction, no concatenate /
    # cross-sublane interleave needed.
    m = jnp.max(x_ref[...], axis=1)                                   # (2, 4096) bf16

    # bf16 x bf16 MXU matmul with f32 accumulation.
    acc = jnp.dot(m, w_ref[...], preferred_element_type=jnp.float32)  # (2, 128) f32

    # Scalar scale from SMEM applied once in the tiny epilogue, then bias.
    o_ref[...] = (acc * s_ref[0, 0] + b_ref[...]).astype(o_ref.dtype)


def feature_layer(x, w_t, b, scale):
    """x: (96, 4096) bf16; w_t: (4096, 128) bf16; b: (1, 128) f32; scale: (1, 1) f32."""
    # Free metadata reshape: (96, 4096) -> (2, 48, 4096); 48 % 8 == 0 keeps sublane tiling.
    x3 = x.reshape(2, VIEW, F_IN)
    y = pl.pallas_call(
        feature_kernel,
        out_shape=jax.ShapeDtypeStruct((2, F_OUT), jnp.float32),
        in_specs=[
            pl.BlockSpec(memory_space=pltpu.MemorySpace.SMEM),   # scale (scalar)
            pl.BlockSpec(memory_space=pltpu.MemorySpace.VMEM),   # x  (2, 48, 4096) bf16
            pl.BlockSpec(memory_space=pltpu.MemorySpace.VMEM),   # W^T (4096, 128) bf16
            pl.BlockSpec(memory_space=pltpu.MemorySpace.VMEM),   # bias (1, 128) f32
        ],
        out_specs=pl.BlockSpec(memory_space=pltpu.MemorySpace.VMEM),
    )(scale, x3, w_t, b)
    # SplitLayer(1) + torch.squeeze
    return y[0], y[1]


def feature_layer_ref(x, w_t, b, scale):
    # Pure-JAX reference on the same (bf16-rounded) inputs, computed in f32.
    xf = x.astype(jnp.float32)
    wf = w_t.astype(jnp.float32)
    pos = jnp.max(xf[:VIEW], axis=0, keepdims=True)
    neg = jnp.max(xf[VIEW:], axis=0, keepdims=True)
    m = jnp.concatenate([pos, neg], axis=0)
    y = jnp.dot(m, wf, precision=jax.lax.Precision.HIGHEST) * scale[0, 0] + b
    return y[0], y[1]


if __name__ == "__main__":
    key = jax.random.PRNGKey(0)
    kx, kw = jax.random.split(key)

    # Deterministic synthetic parameters (shapes fixed by the module's __init__):
    #   nn.Linear(4096, 128): weight (128, 4096), bias (128,) init'd to 0.
    #   ScaleLayer: scale = 0.01.
    # Activations/weights emitted in bf16 by the "upstream producer" (review item:
    # halves streamed bytes; max is order-preserving, matmul keeps f32 accumulation).
    x = jax.random.normal(kx, (N_ROWS, F_IN), dtype=jnp.float32).astype(jnp.bfloat16)
    w = (jax.random.normal(kw, (F_OUT, F_IN), dtype=jnp.float32) * 0.01).astype(jnp.bfloat16)
    w_t = jnp.transpose(w)                          # (4096, 128) bf16, one-time param prep
    b = jnp.zeros((1, F_OUT), dtype=jnp.float32)    # constant_(bias, 0)
    scale = jnp.full((1, 1), 0.01, dtype=jnp.float32)

    pos_out, neg_out = feature_layer(x, w_t, b, scale)
    jax.block_until_ready((pos_out, neg_out))

    pos_ref, neg_ref = feature_layer_ref(x, w_t, b, scale)
    assert pos_out.shape == (F_OUT,) and neg_out.shape == (F_OUT,)
    assert jnp.allclose(pos_out, pos_ref, atol=1e-3, rtol=1e-3)
    assert jnp.allclose(neg_out, neg_ref, atol=1e-3, rtol=1e-3)

    print("KERNEL_OK")
</pallas_src>

<mosaic_0001>
module attributes {stable_mosaic.version = 11 : i64} {
  func.func @feature_kernel(%arg0: memref<1x1xf32, #tpu.memory_space<smem>>, %arg1: memref<2x48x4096xbf16, #tpu.memory_space<vmem>>, %arg2: memref<4096x128xbf16, #tpu.memory_space<vmem>>, %arg3: memref<1x128xf32, #tpu.memory_space<vmem>>, %arg4: memref<2x128xf32, #tpu.memory_space<vmem>>) attributes {dimension_semantics = [], scalar_prefetch = 0 : i64, scratch_operands = 0 : i64, tpu.core_type = #tpu.core_type<tc>} {
    %c0 = arith.constant 0 : index
    %c0_0 = arith.constant 0 : index
    %c0_1 = arith.constant 0 : index
    %0 = vector.load %arg1[%c0, %c0_0, %c0_1] : memref<2x48x4096xbf16, #tpu.memory_space<vmem>>, vector<2x48x4096xbf16>
    %cst = arith.constant dense<0xFF80> : vector<2x4096xbf16>
    %1 = vector.multi_reduction <maximumf>, %0, %cst [1] : vector<2x48x4096xbf16> to vector<2x4096xbf16>
    %c0_2 = arith.constant 0 : index
    %c0_3 = arith.constant 0 : index
    %2 = vector.load %arg2[%c0_2, %c0_3] : memref<4096x128xbf16, #tpu.memory_space<vmem>>, vector<4096x128xbf16>
    %cst_4 = arith.constant dense<0.000000e+00> : vector<2x128xf32>
    %3 = tpu.matmul %1, %2, %cst_4 {dimension_numbers = #tpu.dot_dimension_numbers<[1], [0], [0], [1], [0, 0, 1, 1], [], []>} : vector<2x4096xbf16>, vector<4096x128xbf16>, vector<2x128xf32> -> vector<2x128xf32>
    %c0_5 = arith.constant 0 : index
    %c0_6 = arith.constant 0 : index
    %4 = memref.load %arg0[%c0_5, %c0_6] : memref<1x1xf32, #tpu.memory_space<smem>>
    %5 = vector.broadcast %4 : f32 to vector<2x128xf32>
    %6 = arith.mulf %3, %5 : vector<2x128xf32>
    %c0_7 = arith.constant 0 : index
    %c0_8 = arith.constant 0 : index
    %7 = vector.load %arg3[%c0_7, %c0_8] : memref<1x128xf32, #tpu.memory_space<vmem>>, vector<1x128xf32>
    %8 = vector.broadcast %7 : vector<1x128xf32> to vector<2x128xf32>
    %9 = arith.addf %6, %8 : vector<2x128xf32>
    %c0_9 = arith.constant 0 : index
    %c0_10 = arith.constant 0 : index
    %10 = vector.load %arg4[%c0_9, %c0_10] : memref<2x128xf32, #tpu.memory_space<vmem>>, vector<2x128xf32>
    tpu.vector_store %arg4[%c0_9, %c0_10], %9 {strides = array<i32>} : memref<2x128xf32, #tpu.memory_space<vmem>>, vector<2x128xf32>,
    return
  }
}

</mosaic_0001>

<llo_original>
// kernel: tpu_custom_call.1
$region0: #{tpu_custom_call.1}
  #allocation0 [shape = 'u32[]', space=smem, size = 0x4, offset = 0x4, fixed_abs, tag = 'smem constant byte address 0x4 - core index']
  #allocation1 [shape = 'u32[72,128]{1,0:T(1,128)}', space=vmem, size = 0x9000, scoped, tag = 'internal scratch']
  #allocation2 [shape = 'f32[1,1]{1,0:T(1,128)S(6)}', space=smem, size = 0x200, scoped, tag = 'scoped memory for tpu_custom_call.1']
  %s0 = inlined_call_operand.<no memory space> [shape: f32[1,1], index: 0, kind: input, shape index: {}]
  %s1 = inlined_call_operand.hbm [shape: bf16[2,48,4096], index: 1, kind: input, shape index: {}]
  %s2 = inlined_call_operand.hbm [shape: bf16[4096,128], index: 2, kind: input, shape index: {}]
  %s3 = inlined_call_operand.vmem [shape: f32[1,128], index: 3, kind: input, shape index: {}]
  %s4 = inlined_call_operand.hbm [shape: f32[2,128], index: 4, kind: output, shape index: {}]
  %s5 = sld [smem:[#allocation0]]
  $region34: #{tpu_custom_call.1} parent=0
    _
  %s7 = ssub.s32 1, %s5
  %s8 = scalar_select 0, %s7, %s5
  %9 = sst [smem:[#allocation2]] %s0
  $region1: #{tpu_custom_call.1} parent=0
    #allocation3 [shape = 'u8[786432]{0}', space=vmem, size = 0xc0000, scoped, tag = 'input window, operand 1, single buffered']
    #allocation4 [shape = 's32[1]{0}', space=sflag, size = 0x4, scoped, tag = 'scoped memory for tpu_custom_call.1']
    #allocation5 [shape = 's32[1]{0}', space=sflag, size = 0x4, scoped, tag = 'scoped memory for tpu_custom_call.1']
    #allocation6 [shape = 'u8[1048576]{0}', space=vmem, size = 0x100000, scoped, tag = 'input window, operand 2, single buffered']
    #allocation7 [shape = 's32[1]{0}', space=sflag, size = 0x4, scoped, tag = 'scoped memory for tpu_custom_call.1']
    #allocation8 [shape = 'u8[1024]{0}', space=vmem, size = 0x400, scoped, tag = 'output window, operand 0, single buffered']
    %10 = vsyncpa [#allocation4], 0
    %11 = vsyncpa [#allocation7], 0
    %12 = vsyncpa [#allocation5], 0
    // Predicated region
    $region2: #{tpu_custom_call.1} parent=1 // pred_check
      _
    $region3: #{tpu_custom_call.1} parent=1 // pred_check_branch
      %14 = sbr.rel (0) target = $region5
    $region4: #{tpu_custom_call.1} parent=1 // pred_region
      _
    $region5: #{tpu_custom_call.1} parent=1 // pred_fallthru
      _
    // Predicated region
    $region6: #{tpu_custom_call.1} parent=1 // pred_check
      _
    $region7: #{tpu_custom_call.1} parent=1 // pred_check_branch
      %16 = sbr.rel (0) target = $region9
    $region8: #{tpu_custom_call.1} parent=1 // pred_region
      %18 = vsyncadd [#allocation4], 0
      %s19 = sshll.u32 %s1, 4
      %s20 = int_to_ptr.hbm [resolvable:$true] %s19
      %s21 = sshll.u32 [#allocation3], 4
      %s22 = int_to_ptr.vmem [resolvable:$true] %s21
      %27 = dma.hbm_to_vmem [thread:$0]  %s20, 24576, %s22, [#allocation4], 2048, 2048, 128
    $region9: #{tpu_custom_call.1} parent=1 // pred_fallthru
      _
    // Predicated region
    $region10: #{tpu_custom_call.1} parent=1 // pred_check
      _
    $region11: #{tpu_custom_call.1} parent=1 // pred_check_branch
      %29 = sbr.rel (0) target = $region13
    $region12: #{tpu_custom_call.1} parent=1 // pred_region
      %31 = vsyncadd [#allocation7], 0
      %s32 = sshll.u32 %s2, 4
      %s33 = int_to_ptr.hbm [resolvable:$true] %s32
      %s34 = sshll.u32 [#allocation6], 4
      %s35 = int_to_ptr.vmem [resolvable:$true] %s34
      %40 = dma.hbm_to_vmem [thread:$0]  %s33, 32768, %s35, [#allocation7], 64, 64, 4
    $region13: #{tpu_custom_call.1} parent=1 // pred_fallthru
      _
    // Predicated region
    $region14: #{tpu_custom_call.1} parent=1 // pred_check
      _
    $region15: #{tpu_custom_call.1} parent=1 // pred_check_branch
      %42 = sbr.rel (0) target = $region17
    $region16: #{tpu_custom_call.1} parent=1 // pred_region
      _
    $region17: #{tpu_custom_call.1} parent=1 // pred_fallthru
      _
    // Predicated region
    $region18: #{tpu_custom_call.1} parent=1 // pred_check
      _
    $region19: #{tpu_custom_call.1} parent=1 // pred_check_branch
      %44 = sbr.rel (0) target = $region21
    $region20: #{tpu_custom_call.1} parent=1 // pred_region
      %46 = dma.done [#allocation4], 24576
    $region21: #{tpu_custom_call.1} parent=1 // pred_fallthru
      _
    // Predicated region
    $region22: #{tpu_custom_call.1} parent=1 // pred_check
      _
    $region23: #{tpu_custom_call.1} parent=1 // pred_check_branch
      %48 = sbr.rel (0) target = $region25
    $region24: #{tpu_custom_call.1} parent=1 // pred_region
      %50 = dma.done [#allocation7], 32768
    $region25: #{tpu_custom_call.1} parent=1 // pred_fallthru
      _
    %v51 = vld [vmem:[#allocation3] sm:$0xff]
    %v52 = vld [vmem:[#allocation3 + $0x8] sm:$0xff]
    %v53 = vld [vmem:[#allocation3 + $0x10] sm:$0xff]
    %v54 = vld [vmem:[#allocation3 + $0x18] sm:$0xff]
    %v55 = vld [vmem:[#allocation3 + $0x20] sm:$0xff]
    %v56 = vld [vmem:[#allocation3 + $0x28] sm:$0xff]
    %v57 = vld [vmem:[#allocation3 + $0x30] sm:$0xff]
    %v58 = vld [vmem:[#allocation3 + $0x38] sm:$0xff]
    %v59 = vld [vmem:[#allocation3 + $0x40] sm:$0xff]
    %v60 = vld [vmem:[#allocation3 + $0x48] sm:$0xff]
    %v61 = vld [vmem:[#allocation3 + $0x50] sm:$0xff]
    %v62 = vld [vmem:[#allocation3 + $0x58] sm:$0xff]
    %v63 = vld [vmem:[#allocation3 + $0x60] sm:$0xff]
    %v64 = vld [vmem:[#allocation3 + $0x68] sm:$0xff]
    %v65 = vld [vmem:[#allocation3 + $0x70] sm:$0xff]
    %v66 = vld [vmem:[#allocation3 + $0x78] sm:$0xff]
    %v67 = vld [vmem:[#allocation3 + $0x80] sm:$0xff]
    %v68 = vld [vmem:[#allocation3 + $0x88] sm:$0xff]
    %v69 = vld [vmem:[#allocation3 + $0x90] sm:$0xff]
    %v70 = vld [vmem:[#allocation3 + $0x98] sm:$0xff]
    %v71 = vld [vmem:[#allocation3 + $0xa0] sm:$0xff]
    %v72 = vld [vmem:[#allocation3 + $0xa8] sm:$0xff]
    %v73 = vld [vmem:[#allocation3 + $0xb0] sm:$0xff]
    %v74 = vld [vmem:[#allocation3 + $0xb8] sm:$0xff]
    %v75 = vld [vmem:[#allocation3 + $0xc0] sm:$0xff]
    %v76 = vld [vmem:[#allocation3 + $0xc8] sm:$0xff]
    %v77 = vld [vmem:[#allocation3 + $0xd0] sm:$0xff]
    %v78 = vld [vmem:[#allocation3 + $0xd8] sm:$0xff]
    %v79 = vld [vmem:[#allocation3 + $0xe0] sm:$0xff]
    %v80 = vld [vmem:[#allocation3 + $0xe8] sm:$0xff]
    %v81 = vld [vmem:[#allocation3 + $0xf0] sm:$0xff]
    %v82 = vld [vmem:[#allocation3 + $0xf8] sm:$0xff]
    %v83 = vld [vmem:[#allocation3 + $0x100] sm:$0xff]
    %v84 = vld [vmem:[#allocation3 + $0x108] sm:$0xff]
    %v85 = vld [vmem:[#allocation3 + $0x110] sm:$0xff]
    %v86 = vld [vmem:[#allocation3 + $0x118] sm:$0xff]
    %v87 = vld [vmem:[#allocation3 + $0x120] sm:$0xff]
    %v88 = vld [vmem:[#allocation3 + $0x128] sm:$0xff]
    %v89 = vld [vmem:[#allocation3 + $0x130] sm:$0xff]
    %v90 = vld [vmem:[#allocation3 + $0x138] sm:$0xff]
    %v91 = vld [vmem:[#allocation3 + $0x140] sm:$0xff]
    %v92 = vld [vmem:[#allocation3 + $0x148] sm:$0xff]
    %v93 = vld [vmem:[#allocation3 + $0x150] sm:$0xff]
    %v94 = vld [vmem:[#allocation3 + $0x158] sm:$0xff]
    %v95 = vld [vmem:[#allocation3 + $0x160] sm:$0xff]
    %v96 = vld [vmem:[#allocation3 + $0x168] sm:$0xff]
    %v97 = vld [vmem:[#allocation3 + $0x170] sm:$0xff]
    %v98 = vld [vmem:[#allocation3 + $0x178] sm:$0xff]
    %v99 = vld [vmem:[#allocation3 + $0x180] sm:$0xff]
    %v100 = vld [vmem:[#allocation3 + $0x188] sm:$0xff]
    %v101 = vld [vmem:[#allocation3 + $0x190] sm:$0xff]
    %v102 = vld [vmem:[#allocation3 + $0x198] sm:$0xff]
    %v103 = vld [vmem:[#allocation3 + $0x1a0] sm:$0xff]
    %v104 = vld [vmem:[#allocation3 + $0x1a8] sm:$0xff]
    %v105 = vld [vmem:[#allocation3 + $0x1b0] sm:$0xff]
    %v106 = vld [vmem:[#allocation3 + $0x1b8] sm:$0xff]
    %v107 = vld [vmem:[#allocation3 + $0x1c0] sm:$0xff]
    %v108 = vld [vmem:[#allocation3 + $0x1c8] sm:$0xff]
    %v109 = vld [vmem:[#allocation3 + $0x1d0] sm:$0xff]
    %v110 = vld [vmem:[#allocation3 + $0x1d8] sm:$0xff]
    %v111 = vld [vmem:[#allocation3 + $0x1e0] sm:$0xff]
    %v112 = vld [vmem:[#allocation3 + $0x1e8] sm:$0xff]
    %v113 = vld [vmem:[#allocation3 + $0x1f0] sm:$0xff]
    %v114 = vld [vmem:[#allocation3 + $0x1f8] sm:$0xff]
    %v115 = vld [vmem:[#allocation3 + $0x200] sm:$0xff]
    %v116 = vld [vmem:[#allocation3 + $0x208] sm:$0xff]
    %v117 = vld [vmem:[#allocation3 + $0x210] sm:$0xff]
    %v118 = vld [vmem:[#allocation3 + $0x218] sm:$0xff]
    %v119 = vld [vmem:[#allocation3 + $0x220] sm:$0xff]
    %v120 = vld [vmem:[#allocation3 + $0x228] sm:$0xff]
    %v121 = vld [vmem:[#allocation3 + $0x230] sm:$0xff]
    %v122 = vld [vmem:[#allocation3 + $0x238] sm:$0xff]
    %v123 = vld [vmem:[#allocation3 + $0x240] sm:$0xff]
    %v124 = vld [vmem:[#allocation3 + $0x248] sm:$0xff]
    %v125 = vld [vmem:[#allocation3 + $0x250] sm:$0xff]
    %v126 = vld [vmem:[#allocation3 + $0x258] sm:$0xff]
    %v127 = vld [vmem:[#allocation3 + $0x260] sm:$0xff]
    %v128 = vld [vmem:[#allocation3 + $0x268] sm:$0xff]
    %v129 = vld [vmem:[#allocation3 + $0x270] sm:$0xff]
    %v130 = vld [vmem:[#allocation3 + $0x278] sm:$0xff]
    %v131 = vld [vmem:[#allocation3 + $0x280] sm:$0xff]
    %v132 = vld [vmem:[#allocation3 + $0x288] sm:$0xff]
    %v133 = vld [vmem:[#allocation3 + $0x290] sm:$0xff]
    %v134 = vld [vmem:[#allocation3 + $0x298] sm:$0xff]
    %v135 = vld [vmem:[#allocation3 + $0x2a0] sm:$0xff]
    %v136 = vld [vmem:[#allocation3 + $0x2a8] sm:$0xff]
    %v137 = vld [vmem:[#allocation3 + $0x2b0] sm:$0xff]
    %v138 = vld [vmem:[#allocation3 + $0x2b8] sm:$0xff]
    %v139 = vld [vmem:[#allocation3 + $0x2c0] sm:$0xff]
    %v140 = vld [vmem:[#allocation3 + $0x2c8] sm:$0xff]
    %v141 = vld [vmem:[#allocation3 + $0x2d0] sm:$0xff]
    %v142 = vld [vmem:[#allocation3 + $0x2d8] sm:$0xff]
    %v143 = vld [vmem:[#allocation3 + $0x2e0] sm:$0xff]
    %v144 = vld [vmem:[#allocation3 + $0x2e8] sm:$0xff]
    %v145 = vld [vmem:[#allocation3 + $0x2f0] sm:$0xff]
    %v146 = vld [vmem:[#allocation3 + $0x2f8] sm:$0xff]
    %v147 = vld [vmem:[#allocation3 + $0x300] sm:$0xff]
    %v148 = vld [vmem:[#allocation3 + $0x308] sm:$0xff]
    %v149 = vld [vmem:[#allocation3 + $0x310] sm:$0xff]
    %v150 = vld [vmem:[#allocation3 + $0x318] sm:$0xff]
    %v151 = vld [vmem:[#allocation3 + $0x320] sm:$0xff]
    %v152 = vld [vmem:[#allocation3 + $0x328] sm:$0xff]
    %v153 = vld [vmem:[#allocation3 + $0x330] sm:$0xff]
    %v154 = vld [vmem:[#allocation3 + $0x338] sm:$0xff]
    %v155 = vld [vmem:[#allocation3 + $0x340] sm:$0xff]
    %v156 = vld [vmem:[#allocation3 + $0x348] sm:$0xff]
    %v157 = vld [vmem:[#allocation3 + $0x350] sm:$0xff]
    %v158 = vld [vmem:[#allocation3 + $0x358] sm:$0xff]
    %v159 = vld [vmem:[#allocation3 + $0x360] sm:$0xff]
    %v160 = vld [vmem:[#allocation3 + $0x368] sm:$0xff]
    %v161 = vld [vmem:[#allocation3 + $0x370] sm:$0xff]
    %v162 = vld [vmem:[#allocation3 + $0x378] sm:$0xff]
    %v163 = vld [vmem:[#allocation3 + $0x380] sm:$0xff]
    %v164 = vld [vmem:[#allocation3 + $0x388] sm:$0xff]
    %v165 = vld [vmem:[#allocation3 + $0x390] sm:$0xff]
    %v166 = vld [vmem:[#allocation3 + $0x398] sm:$0xff]
    %v167 = vld [vmem:[#allocation3 + $0x3a0] sm:$0xff]
    %v168 = vld [vmem:[#allocation3 + $0x3a8] sm:$0xff]
    %v169 = vld [vmem:[#allocation3 + $0x3b0] sm:$0xff]
    %v170 = vld [vmem:[#allocation3 + $0x3b8] sm:$0xff]
    %v171 = vld [vmem:[#allocation3 + $0x3c0] sm:$0xff]
    %v172 = vld [vmem:[#allocation3 + $0x3c8] sm:$0xff]
    %v173 = vld [vmem:[#allocation3 + $0x3d0] sm:$0xff]
    %v174 = vld [vmem:[#allocation3 + $0x3d8] sm:$0xff]
    %v175 = vld [vmem:[#allocation3 + $0x3e0] sm:$0xff]
    %v176 = vld [vmem:[#allocation3 + $0x3e8] sm:$0xff]
    %v177 = vld [vmem:[#allocation3 + $0x3f0] sm:$0xff]
    %v178 = vld [vmem:[#allocation3 + $0x3f8] sm:$0xff]
    %v179 = vld [vmem:[#allocation3 + $0x400] sm:$0xff]
    %v180 = vld [vmem:[#allocation3 + $0x408] sm:$0xff]
    %v181 = vld [vmem:[#allocation3 + $0x410] sm:$0xff]
    %v182 = vld [vmem:[#allocation3 + $0x418] sm:$0xff]
    %v183 = vld [vmem:[#allocation3 + $0x420] sm:$0xff]
    %v184 = vld [vmem:[#allocation3 + $0x428] sm:$0xff]
    %v185 = vld [vmem:[#allocation3 + $0x430] sm:$0xff]
    %v186 = vld [vmem:[#allocation3 + $0x438] sm:$0xff]
    %v187 = vld [vmem:[#allocation3 + $0x440] sm:$0xff]
    %v188 = vld [vmem:[#allocation3 + $0x448] sm:$0xff]
    %v189 = vld [vmem:[#allocation3 + $0x450] sm:$0xff]
    %v190 = vld [vmem:[#allocation3 + $0x458] sm:$0xff]
    %v191 = vld [vmem:[#allocation3 + $0x460] sm:$0xff]
    %v192 = vld [vmem:[#allocation3 + $0x468] sm:$0xff]
    %v193 = vld [vmem:[#allocation3 + $0x470] sm:$0xff]
    %v194 = vld [vmem:[#allocation3 + $0x478] sm:$0xff]
    %v195 = vld [vmem:[#allocation3 + $0x480] sm:$0xff]
    %v196 = vld [vmem:[#allocation3 + $0x488] sm:$0xff]
    %v197 = vld [vmem:[#allocation3 + $0x490] sm:$0xff]
    %v198 = vld [vmem:[#allocation3 + $0x498] sm:$0xff]
    %v199 = vld [vmem:[#allocation3 + $0x4a0] sm:$0xff]
    %v200 = vld [vmem:[#allocation3 + $0x4a8] sm:$0xff]
    %v201 = vld [vmem:[#allocation3 + $0x4b0] sm:$0xff]
    %v202 = vld [vmem:[#allocation3 + $0x4b8] sm:$0xff]
    %v203 = vld [vmem:[#allocation3 + $0x4c0] sm:$0xff]
    %v204 = vld [vmem:[#allocation3 + $0x4c8] sm:$0xff]
    %v205 = vld [vmem:[#allocation3 + $0x4d0] sm:$0xff]
    %v206 = vld [vmem:[#allocation3 + $0x4d8] sm:$0xff]
    %v207 = vld [vmem:[#allocation3 + $0x4e0] sm:$0xff]
    %v208 = vld [vmem:[#allocation3 + $0x4e8] sm:$0xff]
    %v209 = vld [vmem:[#allocation3 + $0x4f0] sm:$0xff]
    %v210 = vld [vmem:[#allocation3 + $0x4f8] sm:$0xff]
    %v211 = vld [vmem:[#allocation3 + $0x500] sm:$0xff]
    %v212 = vld [vmem:[#allocation3 + $0x508] sm:$0xff]
    %v213 = vld [vmem:[#allocation3 + $0x510] sm:$0xff]
    %v214 = vld [vmem:[#allocation3 + $0x518] sm:$0xff]
    %v215 = vld [vmem:[#allocation3 + $0x520] sm:$0xff]
    %v216 = vld [vmem:[#allocation3 + $0x528] sm:$0xff]
    %v217 = vld [vmem:[#allocation3 + $0x530] sm:$0xff]
    %v218 = vld [vmem:[#allocation3 + $0x538] sm:$0xff]
    %v219 = vld [vmem:[#allocation3 + $0x540] sm:$0xff]
    %v220 = vld [vmem:[#allocation3 + $0x548] sm:$0xff]
    %v221 = vld [vmem:[#allocation3 + $0x550] sm:$0xff]
    %v222 = vld [vmem:[#allocation3 + $0x558] sm:$0xff]
    %v223 = vld [vmem:[#allocation3 + $0x560] sm:$0xff]
    %v224 = vld [vmem:[#allocation3 + $0x568] sm:$0xff]
    %v225 = vld [vmem:[#allocation3 + $0x570] sm:$0xff]
    %v226 = vld [vmem:[#allocation3 + $0x578] sm:$0xff]
    %v227 = vld [vmem:[#allocation3 + $0x580] sm:$0xff]
    %v228 = vld [vmem:[#allocation3 + $0x588] sm:$0xff]
    %v229 = vld [vmem:[#allocation3 + $0x590] sm:$0xff]
    %v230 = vld [vmem:[#allocation3 + $0x598] sm:$0xff]
    %v231 = vld [vmem:[#allocation3 + $0x5a0] sm:$0xff]
    %v232 = vld [vmem:[#allocation3 + $0x5a8] sm:$0xff]
    %v233 = vld [vmem:[#allocation3 + $0x5b0] sm:$0xff]
    %v234 = vld [vmem:[#allocation3 + $0x5b8] sm:$0xff]
    %v235 = vld [vmem:[#allocation3 + $0x5c0] sm:$0xff]
    %v236 = vld [vmem:[#allocation3 + $0x5c8] sm:$0xff]
    %v237 = vld [vmem:[#allocation3 + $0x5d0] sm:$0xff]
    %v238 = vld [vmem:[#allocation3 + $0x5d8] sm:$0xff]
    %v239 = vld [vmem:[#allocation3 + $0x5e0] sm:$0xff]
    %v240 = vld [vmem:[#allocation3 + $0x5e8] sm:$0xff]
    %v241 = vld [vmem:[#allocation3 + $0x5f0] sm:$0xff]
    %v242 = vld [vmem:[#allocation3 + $0x5f8] sm:$0xff]
    %v243 = vunpack.c.l.bf16 %v51
    %v244 = vunpack.c.h.bf16 %v51
    %v245 = vunpack.c.l.bf16 %v52
    %v246 = vunpack.c.h.bf16 %v52
    %v247 = vunpack.c.l.bf16 %v53
    %v248 = vunpack.c.h.bf16 %v53
    %v249 = vunpack.c.l.bf16 %v54
    %v250 = vunpack.c.h.bf16 %v54
    %v251 = vunpack.c.l.bf16 %v55
    %v252 = vunpack.c.h.bf16 %v55
    %v253 = vunpack.c.l.bf16 %v56
    %v254 = vunpack.c.h.bf16 %v56
    %v255 = vunpack.c.l.bf16 %v57
    %v256 = vunpack.c.h.bf16 %v57
    %v257 = vunpack.c.l.bf16 %v58
    %v258 = vunpack.c.h.bf16 %v58
    %v259 = vunpack.c.l.bf16 %v59
    %v260 = vunpack.c.h.bf16 %v59
    %v261 = vunpack.c.l.bf16 %v60
    %v262 = vunpack.c.h.bf16 %v60
    %v263 = vunpack.c.l.bf16 %v61
    %v264 = vunpack.c.h.bf16 %v61
    %v265 = vunpack.c.l.bf16 %v62
    %v266 = vunpack.c.h.bf16 %v62
    %v267 = vunpack.c.l.bf16 %v63
    %v268 = vunpack.c.h.bf16 %v63
    %v269 = vunpack.c.l.bf16 %v64
    %v270 = vunpack.c.h.bf16 %v64
    %v271 = vunpack.c.l.bf16 %v65
    %v272 = vunpack.c.h.bf16 %v65
    %v273 = vunpack.c.l.bf16 %v66
    %v274 = vunpack.c.h.bf16 %v66
    %v275 = vunpack.c.l.bf16 %v67
    %v276 = vunpack.c.h.bf16 %v67
    %v277 = vunpack.c.l.bf16 %v68
    %v278 = vunpack.c.h.bf16 %v68
    %v279 = vunpack.c.l.bf16 %v69
    %v280 = vunpack.c.h.bf16 %v69
    %v281 = vunpack.c.l.bf16 %v70
    %v282 = vunpack.c.h.bf16 %v70
    %v283 = vunpack.c.l.bf16 %v71
    %v284 = vunpack.c.h.bf16 %v71
    %v285 = vunpack.c.l.bf16 %v72
    %v286 = vunpack.c.h.bf16 %v72
    %v287 = vunpack.c.l.bf16 %v73
    %v288 = vunpack.c.h.bf16 %v73
    %v289 = vunpack.c.l.bf16 %v74
    %v290 = vunpack.c.h.bf16 %v74
    %v291 = vunpack.c.l.bf16 %v75
    %v292 = vunpack.c.h.bf16 %v75
    %v293 = vunpack.c.l.bf16 %v76
    %v294 = vunpack.c.h.bf16 %v76
    %v295 = vunpack.c.l.bf16 %v77
    %v296 = vunpack.c.h.bf16 %v77
    %v297 = vunpack.c.l.bf16 %v78
    %v298 = vunpack.c.h.bf16 %v78
    %v299 = vunpack.c.l.bf16 %v79
    %v300 = vunpack.c.h.bf16 %v79
    %v301 = vunpack.c.l.bf16 %v80
    %v302 = vunpack.c.h.bf16 %v80
    %v303 = vunpack.c.l.bf16 %v81
    %v304 = vunpack.c.h.bf16 %v81
    %v305 = vunpack.c.l.bf16 %v82
    %v306 = vunpack.c.h.bf16 %v82
    %v307 = vunpack.c.l.bf16 %v83
    %v308 = vunpack.c.h.bf16 %v83
    %v309 = vunpack.c.l.bf16 %v84
    %v310 = vunpack.c.h.bf16 %v84
    %v311 = vunpack.c.l.bf16 %v85
    %v312 = vunpack.c.h.bf16 %v85
    %v313 = vunpack.c.l.bf16 %v86
    %v314 = vunpack.c.h.bf16 %v86
    %v315 = vunpack.c.l.bf16 %v87
    %v316 = vunpack.c.h.bf16 %v87
    %v317 = vunpack.c.l.bf16 %v88
    %v318 = vunpack.c.h.bf16 %v88
    %v319 = vunpack.c.l.bf16 %v89
    %v320 = vunpack.c.h.bf16 %v89
    %v321 = vunpack.c.l.bf16 %v90
    %v322 = vunpack.c.h.bf16 %v90
    %v323 = vunpack.c.l.bf16 %v91
    %v324 = vunpack.c.h.bf16 %v91
    %v325 = vunpack.c.l.bf16 %v92
    %v326 = vunpack.c.h.bf16 %v92
    %v327 = vunpack.c.l.bf16 %v93
    %v328 = vunpack.c.h.bf16 %v93
    %v329 = vunpack.c.l.bf16 %v94
    %v330 = vunpack.c.h.bf16 %v94
    %v331 = vunpack.c.l.bf16 %v95
    %v332 = vunpack.c.h.bf16 %v95
    %v333 = vunpack.c.l.bf16 %v96
    %v334 = vunpack.c.h.bf16 %v96
    %v335 = vunpack.c.l.bf16 %v97
    %v336 = vunpack.c.h.bf16 %v97
    %v337 = vunpack.c.l.bf16 %v98
    %v338 = vunpack.c.h.bf16 %v98
    %v339 = vunpack.c.l.bf16 %v99
    %v340 = vunpack.c.h.bf16 %v99
    %v341 = vunpack.c.l.bf16 %v100
    %v342 = vunpack.c.h.bf16 %v100
    %v343 = vunpack.c.l.bf16 %v101
    %v344 = vunpack.c.h.bf16 %v101
    %v345 = vunpack.c.l.bf16 %v102
    %v346 = vunpack.c.h.bf16 %v102
    %v347 = vunpack.c.l.bf16 %v103
    %v348 = vunpack.c.h.bf16 %v103
    %v349 = vunpack.c.l.bf16 %v104
    %v350 = vunpack.c.h.bf16 %v104
    %v351 = vunpack.c.l.bf16 %v105
    %v352 = vunpack.c.h.bf16 %v105
    %v353 = vunpack.c.l.bf16 %v106
    %v354 = vunpack.c.h.bf16 %v106
    %v355 = vunpack.c.l.bf16 %v107
    %v356 = vunpack.c.h.bf16 %v107
    %v357 = vunpack.c.l.bf16 %v108
    %v358 = vunpack.c.h.bf16 %v108
    %v359 = vunpack.c.l.bf16 %v109
    %v360 = vunpack.c.h.bf16 %v109
    %v361 = vunpack.c.l.bf16 %v110
    %v362 = vunpack.c.h.bf16 %v110
    %v363 = vunpack.c.l.bf16 %v111
    %v364 = vunpack.c.h.bf16 %v111
    %v365 = vunpack.c.l.bf16 %v112
    %v366 = vunpack.c.h.bf16 %v112
    %v367 = vunpack.c.l.bf16 %v113
    %v368 = vunpack.c.h.bf16 %v113
    %v369 = vunpack.c.l.bf16 %v114
    %v370 = vunpack.c.h.bf16 %v114
    %v371 = vunpack.c.l.bf16 %v115
    %v372 = vunpack.c.h.bf16 %v115
    %v373 = vunpack.c.l.bf16 %v116
    %v374 = vunpack.c.h.bf16 %v116
    %v375 = vunpack.c.l.bf16 %v117
    %v376 = vunpack.c.h.bf16 %v117
    %v377 = vunpack.c.l.bf16 %v118
    %v378 = vunpack.c.h.bf16 %v118
    %v379 = vunpack.c.l.bf16 %v119
    %v380 = vunpack.c.h.bf16 %v119
    %v381 = vunpack.c.l.bf16 %v120
    %v382 = vunpack.c.h.bf16 %v120
    %v383 = vunpack.c.l.bf16 %v121
    %v384 = vunpack.c.h.bf16 %v121
    %v385 = vunpack.c.l.bf16 %v122
    %v386 = vunpack.c.h.bf16 %v122
    %v387 = vunpack.c.l.bf16 %v123
    %v388 = vunpack.c.h.bf16 %v123
    %v389 = vunpack.c.l.bf16 %v124
    %v390 = vunpack.c.h.bf16 %v124
    %v391 = vunpack.c.l.bf16 %v125
    %v392 = vunpack.c.h.bf16 %v125
    %v393 = vunpack.c.l.bf16 %v126
    %v394 = vunpack.c.h.bf16 %v126
    %v395 = vunpack.c.l.bf16 %v127
    %v396 = vunpack.c.h.bf16 %v127
    %v397 = vunpack.c.l.bf16 %v128
    %v398 = vunpack.c.h.bf16 %v128
    %v399 = vunpack.c.l.bf16 %v129
    %v400 = vunpack.c.h.bf16 %v129
    %v401 = vunpack.c.l.bf16 %v130
    %v402 = vunpack.c.h.bf16 %v130
    %v403 = vunpack.c.l.bf16 %v131
    %v404 = vunpack.c.h.bf16 %v131
    %v405 = vunpack.c.l.bf16 %v132
    %v406 = vunpack.c.h.bf16 %v132
    %v407 = vunpack.c.l.bf16 %v133
    %v408 = vunpack.c.h.bf16 %v133
    %v409 = vunpack.c.l.bf16 %v134
    %v410 = vunpack.c.h.bf16 %v134
    %v411 = vunpack.c.l.bf16 %v135
    %v412 = vunpack.c.h.bf16 %v135
    %v413 = vunpack.c.l.bf16 %v136
    %v414 = vunpack.c.h.bf16 %v136
    %v415 = vunpack.c.l.bf16 %v137
    %v416 = vunpack.c.h.bf16 %v137
    %v417 = vunpack.c.l.bf16 %v138
    %v418 = vunpack.c.h.bf16 %v138
    %v419 = vunpack.c.l.bf16 %v139
    %v420 = vunpack.c.h.bf16 %v139
    %v421 = vunpack.c.l.bf16 %v140
    %v422 = vunpack.c.h.bf16 %v140
    %v423 = vunpack.c.l.bf16 %v141
    %v424 = vunpack.c.h.bf16 %v141
    %v425 = vunpack.c.l.bf16 %v142
    %v426 = vunpack.c.h.bf16 %v142
    %v427 = vunpack.c.l.bf16 %v143
    %v428 = vunpack.c.h.bf16 %v143
    %v429 = vunpack.c.l.bf16 %v144
    %v430 = vunpack.c.h.bf16 %v144
    %v431 = vunpack.c.l.bf16 %v145
    %v432 = vunpack.c.h.bf16 %v145
    %v433 = vunpack.c.l.bf16 %v146
    %v434 = vunpack.c.h.bf16 %v146
    %v435 = vunpack.c.l.bf16 %v147
    %v436 = vunpack.c.h.bf16 %v147
    %v437 = vunpack.c.l.bf16 %v148
    %v438 = vunpack.c.h.bf16 %v148
    %v439 = vunpack.c.l.bf16 %v149
    %v440 = vunpack.c.h.bf16 %v149
    %v441 = vunpack.c.l.bf16 %v150
    %v442 = vunpack.c.h.bf16 %v150
    %v443 = vunpack.c.l.bf16 %v151
    %v444 = vunpack.c.h.bf16 %v151
    %v445 = vunpack.c.l.bf16 %v152
    %v446 = vunpack.c.h.bf16 %v152
    %v447 = vunpack.c.l.bf16 %v153
    %v448 = vunpack.c.h.bf16 %v153
    %v449 = vunpack.c.l.bf16 %v154
    %v450 = vunpack.c.h.bf16 %v154
    %v451 = vunpack.c.l.bf16 %v155
    %v452 = vunpack.c.h.bf16 %v155
    %v453 = vunpack.c.l.bf16 %v156
    %v454 = vunpack.c.h.bf16 %v156
    %v455 = vunpack.c.l.bf16 %v157
    %v456 = vunpack.c.h.bf16 %v157
    %v457 = vunpack.c.l.bf16 %v158
    %v458 = vunpack.c.h.bf16 %v158
    %v459 = vunpack.c.l.bf16 %v159
    %v460 = vunpack.c.h.bf16 %v159
    %v461 = vunpack.c.l.bf16 %v160
    %v462 = vunpack.c.h.bf16 %v160
    %v463 = vunpack.c.l.bf16 %v161
    %v464 = vunpack.c.h.bf16 %v161
    %v465 = vunpack.c.l.bf16 %v162
    %v466 = vunpack.c.h.bf16 %v162
    %v467 = vunpack.c.l.bf16 %v163
    %v468 = vunpack.c.h.bf16 %v163
    %v469 = vunpack.c.l.bf16 %v164
    %v470 = vunpack.c.h.bf16 %v164
    %v471 = vunpack.c.l.bf16 %v165
    %v472 = vunpack.c.h.bf16 %v165
    %v473 = vunpack.c.l.bf16 %v166
    %v474 = vunpack.c.h.bf16 %v166
    %v475 = vunpack.c.l.bf16 %v167
    %v476 = vunpack.c.h.bf16 %v167
    %v477 = vunpack.c.l.bf16 %v168
    %v478 = vunpack.c.h.bf16 %v168
    %v479 = vunpack.c.l.bf16 %v169
    %v480 = vunpack.c.h.bf16 %v169
    %v481 = vunpack.c.l.bf16 %v170
    %v482 = vunpack.c.h.bf16 %v170
    %v483 = vunpack.c.l.bf16 %v171
    %v484 = vunpack.c.h.bf16 %v171
    %v485 = vunpack.c.l.bf16 %v172
    %v486 = vunpack.c.h.bf16 %v172
    %v487 = vunpack.c.l.bf16 %v173
    %v488 = vunpack.c.h.bf16 %v173
    %v489 = vunpack.c.l.bf16 %v174
    %v490 = vunpack.c.h.bf16 %v174
    %v491 = vunpack.c.l.bf16 %v175
    %v492 = vunpack.c.h.bf16 %v175
    %v493 = vunpack.c.l.bf16 %v176
    %v494 = vunpack.c.h.bf16 %v176
    %v495 = vunpack.c.l.bf16 %v177
    %v496 = vunpack.c.h.bf16 %v177
    %v497 = vunpack.c.l.bf16 %v178
    %v498 = vunpack.c.h.bf16 %v178
    %v499 = vunpack.c.l.bf16 %v179
    %v500 = vunpack.c.h.bf16 %v179
    %v501 = vunpack.c.l.bf16 %v180
    %v502 = vunpack.c.h.bf16 %v180
    %v503 = vunpack.c.l.bf16 %v181
    %v504 = vunpack.c.h.bf16 %v181
    %v505 = vunpack.c.l.bf16 %v182
    %v506 = vunpack.c.h.bf16 %v182
    %v507 = vunpack.c.l.bf16 %v183
    %v508 = vunpack.c.h.bf16 %v183
    %v509 = vunpack.c.l.bf16 %v184
    %v510 = vunpack.c.h.bf16 %v184
    %v511 = vunpack.c.l.bf16 %v185
    %v512 = vunpack.c.h.bf16 %v185
    %v513 = vunpack.c.l.bf16 %v186
    %v514 = vunpack.c.h.bf16 %v186
    %v515 = vunpack.c.l.bf16 %v187
    %v516 = vunpack.c.h.bf16 %v187
    %v517 = vunpack.c.l.bf16 %v188
    %v518 = vunpack.c.h.bf16 %v188
    %v519 = vunpack.c.l.bf16 %v189
    %v520 = vunpack.c.h.bf16 %v189
    %v521 = vunpack.c.l.bf16 %v190
    %v522 = vunpack.c.h.bf16 %v190
    %v523 = vunpack.c.l.bf16 %v191
    %v524 = vunpack.c.h.bf16 %v191
    %v525 = vunpack.c.l.bf16 %v192
    %v526 = vunpack.c.h.bf16 %v192
    %v527 = vunpack.c.l.bf16 %v193
    %v528 = vunpack.c.h.bf16 %v193
    %v529 = vunpack.c.l.bf16 %v194
    %v530 = vunpack.c.h.bf16 %v194
    %v531 = vunpack.c.l.bf16 %v195
    %v532 = vunpack.c.h.bf16 %v195
    %v533 = vunpack.c.l.bf16 %v196
    %v534 = vunpack.c.h.bf16 %v196
    %v535 = vunpack.c.l.bf16 %v197
    %v536 = vunpack.c.h.bf16 %v197
    %v537 = vunpack.c.l.bf16 %v198
    %v538 = vunpack.c.h.bf16 %v198
    %v539 = vunpack.c.l.bf16 %v199
    %v540 = vunpack.c.h.bf16 %v199
    %v541 = vunpack.c.l.bf16 %v200
    %v542 = vunpack.c.h.bf16 %v200
    %v543 = vunpack.c.l.bf16 %v201
    %v544 = vunpack.c.h.bf16 %v201
    %v545 = vunpack.c.l.bf16 %v202
    %v546 = vunpack.c.h.bf16 %v202
    %v547 = vunpack.c.l.bf16 %v203
    %v548 = vunpack.c.h.bf16 %v203
    %v549 = vunpack.c.l.bf16 %v204
    %v550 = vunpack.c.h.bf16 %v204
    %v551 = vunpack.c.l.bf16 %v205
    %v552 = vunpack.c.h.bf16 %v205
    %v553 = vunpack.c.l.bf16 %v206
    %v554 = vunpack.c.h.bf16 %v206
    %v555 = vunpack.c.l.bf16 %v207
    %v556 = vunpack.c.h.bf16 %v207
    %v557 = vunpack.c.l.bf16 %v208
    %v558 = vunpack.c.h.bf16 %v208
    %v559 = vunpack.c.l.bf16 %v209
    %v560 = vunpack.c.h.bf16 %v209
    %v561 = vunpack.c.l.bf16 %v210
    %v562 = vunpack.c.h.bf16 %v210
    %v563 = vunpack.c.l.bf16 %v211
    %v564 = vunpack.c.h.bf16 %v211
    %v565 = vunpack.c.l.bf16 %v212
    %v566 = vunpack.c.h.bf16 %v212
    %v567 = vunpack.c.l.bf16 %v213
    %v568 = vunpack.c.h.bf16 %v213
    %v569 = vunpack.c.l.bf16 %v214
    %v570 = vunpack.c.h.bf16 %v214
    %v571 = vunpack.c.l.bf16 %v215
    %v572 = vunpack.c.h.bf16 %v215
    %v573 = vunpack.c.l.bf16 %v216
    %v574 = vunpack.c.h.bf16 %v216
    %v575 = vunpack.c.l.bf16 %v217
    %v576 = vunpack.c.h.bf16 %v217
    %v577 = vunpack.c.l.bf16 %v218
    %v578 = vunpack.c.h.bf16 %v218
    %v579 = vunpack.c.l.bf16 %v219
    %v580 = vunpack.c.h.bf16 %v219
    %v581 = vunpack.c.l.bf16 %v220
    %v582 = vunpack.c.h.bf16 %v220
    %v583 = vunpack.c.l.bf16 %v221
    %v584 = vunpack.c.h.bf16 %v221
    %v585 = vunpack.c.l.bf16 %v222
    %v586 = vunpack.c.h.bf16 %v222
    %v587 = vunpack.c.l.bf16 %v223
    %v588 = vunpack.c.h.bf16 %v223
    %v589 = vunpack.c.l.bf16 %v224
    %v590 = vunpack.c.h.bf16 %v224
    %v591 = vunpack.c.l.bf16 %v225
    %v592 = vunpack.c.h.bf16 %v225
    %v593 = vunpack.c.l.bf16 %v226
    %v594 = vunpack.c.h.bf16 %v226
    %v595 = vunpack.c.l.bf16 %v227
    %v596 = vunpack.c.h.bf16 %v227
    %v597 = vunpack.c.l.bf16 %v228
    %v598 = vunpack.c.h.bf16 %v228
    %v599 = vunpack.c.l.bf16 %v229
    %v600 = vunpack.c.h.bf16 %v229
    %v601 = vunpack.c.l.bf16 %v230
    %v602 = vunpack.c.h.bf16 %v230
    %v603 = vunpack.c.l.bf16 %v231
    %v604 = vunpack.c.h.bf16 %v231
    %v605 = vunpack.c.l.bf16 %v232
    %v606 = vunpack.c.h.bf16 %v232
    %v607 = vunpack.c.l.bf16 %v233
    %v608 = vunpack.c.h.bf16 %v233
    %v609 = vunpack.c.l.bf16 %v234
    %v610 = vunpack.c.h.bf16 %v234
    %v611 = vunpack.c.l.bf16 %v235
    %v612 = vunpack.c.h.bf16 %v235
    %v613 = vunpack.c.l.bf16 %v236
    %v614 = vunpack.c.h.bf16 %v236
    %v615 = vunpack.c.l.bf16 %v237
    %v616 = vunpack.c.h.bf16 %v237
    %v617 = vunpack.c.l.bf16 %v238
    %v618 = vunpack.c.h.bf16 %v238
    %v619 = vunpack.c.l.bf16 %v239
    %v620 = vunpack.c.h.bf16 %v239
    %v621 = vunpack.c.l.bf16 %v240
    %v622 = vunpack.c.h.bf16 %v240
    %v623 = vunpack.c.l.bf16 %v241
    %v624 = vunpack.c.h.bf16 %v241
    %v625 = vunpack.c.l.bf16 %v242
    %v626 = vunpack.c.h.bf16 %v242
    %v627 = vmax.f32 %v243, %v275
    %v628 = vmax.f32 %v627, %v307
    %v629 = vmax.f32 %v628, %v339
    %v630 = vmax.f32 %v629, %v371
    %v631 = vmax.f32 %v630, %v403
    %v632 = vrot.slane %v631, 4
    %v633 = vmax.f32 %v631, %v632
    %v634 = vrot.slane %v633, 2
    %v635 = vmax.f32 %v633, %v634
    %v636 = vrot.slane %v635, 1
    %v637 = vmax.f32 %v635, %v636
    %v638 = vmax.f32 %v244, %v276
    %v639 = vmax.f32 %v638, %v308
    %v640 = vmax.f32 %v639, %v340
    %v641 = vmax.f32 %v640, %v372
    %v642 = vmax.f32 %v641, %v404
    %v643 = vrot.slane %v642, 4
    %v644 = vmax.f32 %v642, %v643
    %v645 = vrot.slane %v644, 2
    %v646 = vmax.f32 %v644, %v645
    %v647 = vrot.slane %v646, 1
    %v648 = vmax.f32 %v646, %v647
    %v649 = vmax.f32 %v245, %v277
    %v650 = vmax.f32 %v649, %v309
    %v651 = vmax.f32 %v650, %v341
    %v652 = vmax.f32 %v651, %v373
    %v653 = vmax.f32 %v652, %v405
    %v654 = vrot.slane %v653, 4
    %v655 = vmax.f32 %v653, %v654
    %v656 = vrot.slane %v655, 2
    %v657 = vmax.f32 %v655, %v656
    %v658 = vrot.slane %v657, 1
    %v659 = vmax.f32 %v657, %v658
    %v660 = vmax.f32 %v246, %v278
    %v661 = vmax.f32 %v660, %v310
    %v662 = vmax.f32 %v661, %v342
    %v663 = vmax.f32 %v662, %v374
    %v664 = vmax.f32 %v663, %v406
    %v665 = vrot.slane %v664, 4
    %v666 = vmax.f32 %v664, %v665
    %v667 = vrot.slane %v666, 2
    %v668 = vmax.f32 %v666, %v667
    %v669 = vrot.slane %v668, 1
    %v670 = vmax.f32 %v668, %v669
    %v671 = vmax.f32 %v247, %v279
    %v672 = vmax.f32 %v671, %v311
    %v673 = vmax.f32 %v672, %v343
    %v674 = vmax.f32 %v673, %v375
    %v675 = vmax.f32 %v674, %v407
    %v676 = vrot.slane %v675, 4
    %v677 = vmax.f32 %v675, %v676
    %v678 = vrot.slane %v677, 2
    %v679 = vmax.f32 %v677, %v678
    %v680 = vrot.slane %v679, 1
    %v681 = vmax.f32 %v679, %v680
    %v682 = vmax.f32 %v248, %v280
    %v683 = vmax.f32 %v682, %v312
    %v684 = vmax.f32 %v683, %v344
    %v685 = vmax.f32 %v684, %v376
    %v686 = vmax.f32 %v685, %v408
    %v687 = vrot.slane %v686, 4
    %v688 = vmax.f32 %v686, %v687
    %v689 = vrot.slane %v688, 2
    %v690 = vmax.f32 %v688, %v689
    %v691 = vrot.slane %v690, 1
    %v692 = vmax.f32 %v690, %v691
    %v693 = vmax.f32 %v249, %v281
    %v694 = vmax.f32 %v693, %v313
    %v695 = vmax.f32 %v694, %v345
    %v696 = vmax.f32 %v695, %v377
    %v697 = vmax.f32 %v696, %v409
    %v698 = vrot.slane %v697, 4
    %v699 = vmax.f32 %v697, %v698
    %v700 = vrot.slane %v699, 2
    %v701 = vmax.f32 %v699, %v700
    %v702 = vrot.slane %v701, 1
    %v703 = vmax.f32 %v701, %v702
    %v704 = vmax.f32 %v250, %v282
    %v705 = vmax.f32 %v704, %v314
    %v706 = vmax.f32 %v705, %v346
    %v707 = vmax.f32 %v706, %v378
    %v708 = vmax.f32 %v707, %v410
    %v709 = vrot.slane %v708, 4
    %v710 = vmax.f32 %v708, %v709
    %v711 = vrot.slane %v710, 2
    %v712 = vmax.f32 %v710, %v711
    %v713 = vrot.slane %v712, 1
    %v714 = vmax.f32 %v712, %v713
    %v715 = vmax.f32 %v251, %v283
    %v716 = vmax.f32 %v715, %v315
    %v717 = vmax.f32 %v716, %v347
    %v718 = vmax.f32 %v717, %v379
    %v719 = vmax.f32 %v718, %v411
    %v720 = vrot.slane %v719, 4
    %v721 = vmax.f32 %v719, %v720
    %v722 = vrot.slane %v721, 2
    %v723 = vmax.f32 %v721, %v722
    %v724 = vrot.slane %v723, 1
    %v725 = vmax.f32 %v723, %v724
    %v726 = vmax.f32 %v252, %v284
    %v727 = vmax.f32 %v726, %v316
    %v728 = vmax.f32 %v727, %v348
    %v729 = vmax.f32 %v728, %v380
    %v730 = vmax.f32 %v729, %v412
    %v731 = vrot.slane %v730, 4
    %v732 = vmax.f32 %v730, %v731
    %v733 = vrot.slane %v732, 2
    %v734 = vmax.f32 %v732, %v733
    %v735 = vrot.slane %v734, 1
    %v736 = vmax.f32 %v734, %v735
    %v737 = vmax.f32 %v253, %v285
    %v738 = vmax.f32 %v737, %v317
    %v739 = vmax.f32 %v738, %v349
    %v740 = vmax.f32 %v739, %v381
    %v741 = vmax.f32 %v740, %v413
    %v742 = vrot.slane %v741, 4
    %v743 = vmax.f32 %v741, %v742
    %v744 = vrot.slane %v743, 2
    %v745 = vmax.f32 %v743, %v744
    %v746 = vrot.slane %v745, 1
    %v747 = vmax.f32 %v745, %v746
    %v748 = vmax.f32 %v254, %v286
    %v749 = vmax.f32 %v748, %v318
    %v750 = vmax.f32 %v749, %v350
    %v751 = vmax.f32 %v750, %v382
    %v752 = vmax.f32 %v751, %v414
    %v753 = vrot.slane %v752, 4
    %v754 = vmax.f32 %v752, %v753
    %v755 = vrot.slane %v754, 2
    %v756 = vmax.f32 %v754, %v755
    %v757 = vrot.slane %v756, 1
    %v758 = vmax.f32 %v756, %v757
    %v759 = vmax.f32 %v255, %v287
    %v760 = vmax.f32 %v759, %v319
    %v761 = vmax.f32 %v760, %v351
    %v762 = vmax.f32 %v761, %v383
    %v763 = vmax.f32 %v762, %v415
    %v764 = vrot.slane %v763, 4
    %v765 = vmax.f32 %v763, %v764
    %v766 = vrot.slane %v765, 2
    %v767 = vmax.f32 %v765, %v766
    %v768 = vrot.slane %v767, 1
    %v769 = vmax.f32 %v767, %v768
    %v770 = vmax.f32 %v256, %v288
    %v771 = vmax.f32 %v770, %v320
    %v772 = vmax.f32 %v771, %v352
    %v773 = vmax.f32 %v772, %v384
    %v774 = vmax.f32 %v773, %v416
    %v775 = vrot.slane %v774, 4
    %v776 = vmax.f32 %v774, %v775
    %v777 = vrot.slane %v776, 2
    %v778 = vmax.f32 %v776, %v777
    %v779 = vrot.slane %v778, 1
    %v780 = vmax.f32 %v778, %v779
    %v781 = vmax.f32 %v257, %v289
    %v782 = vmax.f32 %v781, %v321
    %v783 = vmax.f32 %v782, %v353
    %v784 = vmax.f32 %v783, %v385
    %v785 = vmax.f32 %v784, %v417
    %v786 = vrot.slane %v785, 4
    %v787 = vmax.f32 %v785, %v786
    %v788 = vrot.slane %v787, 2
    %v789 = vmax.f32 %v787, %v788
    %v790 = vrot.slane %v789, 1
    %v791 = vmax.f32 %v789, %v790
    %v792 = vmax.f32 %v258, %v290
    %v793 = vmax.f32 %v792, %v322
    %v794 = vmax.f32 %v793, %v354
    %v795 = vmax.f32 %v794, %v386
    %v796 = vmax.f32 %v795, %v418
    %v797 = vrot.slane %v796, 4
    %v798 = vmax.f32 %v796, %v797
    %v799 = vrot.slane %v798, 2
    %v800 = vmax.f32 %v798, %v799
    %v801 = vrot.slane %v800, 1
    %v802 = vmax.f32 %v800, %v801
    %v803 = vmax.f32 %v259, %v291
    %v804 = vmax.f32 %v803, %v323
    %v805 = vmax.f32 %v804, %v355
    %v806 = vmax.f32 %v805, %v387
    %v807 = vmax.f32 %v806, %v419
    %v808 = vrot.slane %v807, 4
    %v809 = vmax.f32 %v807, %v808
    %v810 = vrot.slane %v809, 2
    %v811 = vmax.f32 %v809, %v810
    %v812 = vrot.slane %v811, 1
    %v813 = vmax.f32 %v811, %v812
    %v814 = vmax.f32 %v260, %v292
    %v815 = vmax.f32 %v814, %v324
    %v816 = vmax.f32 %v815, %v356
    %v817 = vmax.f32 %v816, %v388
    %v818 = vmax.f32 %v817, %v420
    %v819 = vrot.slane %v818, 4
    %v820 = vmax.f32 %v818, %v819
    %v821 = vrot.slane %v820, 2
    %v822 = vmax.f32 %v820, %v821
    %v823 = vrot.slane %v822, 1
    %v824 = vmax.f32 %v822, %v823
    %v825 = vmax.f32 %v261, %v293
    %v826 = vmax.f32 %v825, %v325
    %v827 = vmax.f32 %v826, %v357
    %v828 = vmax.f32 %v827, %v389
    %v829 = vmax.f32 %v828, %v421
    %v830 = vrot.slane %v829, 4
    %v831 = vmax.f32 %v829, %v830
    %v832 = vrot.slane %v831, 2
    %v833 = vmax.f32 %v831, %v832
    %v834 = vrot.slane %v833, 1
    %v835 = vmax.f32 %v833, %v834
    %v836 = vmax.f32 %v262, %v294
    %v837 = vmax.f32 %v836, %v326
    %v838 = vmax.f32 %v837, %v358
    %v839 = vmax.f32 %v838, %v390
    %v840 = vmax.f32 %v839, %v422
    %v841 = vrot.slane %v840, 4
    %v842 = vmax.f32 %v840, %v841
    %v843 = vrot.slane %v842, 2
    %v844 = vmax.f32 %v842, %v843
    %v845 = vrot.slane %v844, 1
    %v846 = vmax.f32 %v844, %v845
    %v847 = vmax.f32 %v263, %v295
    %v848 = vmax.f32 %v847, %v327
    %v849 = vmax.f32 %v848, %v359
    %v850 = vmax.f32 %v849, %v391
    %v851 = vmax.f32 %v850, %v423
    %v852 = vrot.slane %v851, 4
    %v853 = vmax.f32 %v851, %v852
    %v854 = vrot.slane %v853, 2
    %v855 = vmax.f32 %v853, %v854
    %v856 = vrot.slane %v855, 1
    %v857 = vmax.f32 %v855, %v856
    %v858 = vmax.f32 %v264, %v296
    %v859 = vmax.f32 %v858, %v328
    %v860 = vmax.f32 %v859, %v360
    %v861 = vmax.f32 %v860, %v392
    %v862 = vmax.f32 %v861, %v424
    %v863 = vrot.slane %v862, 4
    %v864 = vmax.f32 %v862, %v863
    %v865 = vrot.slane %v864, 2
    %v866 = vmax.f32 %v864, %v865
    %v867 = vrot.slane %v866, 1
    %v868 = vmax.f32 %v866, %v867
    %v869 = vmax.f32 %v265, %v297
    %v870 = vmax.f32 %v869, %v329
    %v871 = vmax.f32 %v870, %v361
    %v872 = vmax.f32 %v871, %v393
    %v873 = vmax.f32 %v872, %v425
    %v874 = vrot.slane %v873, 4
    %v875 = vmax.f32 %v873, %v874
    %v876 = vrot.slane %v875, 2
    %v877 = vmax.f32 %v875, %v876
    %v878 = vrot.slane %v877, 1
    %v879 = vmax.f32 %v877, %v878
    %v880 = vmax.f32 %v266, %v298
    %v881 = vmax.f32 %v880, %v330
    %v882 = vmax.f32 %v881, %v362
    %v883 = vmax.f32 %v882, %v394
    %v884 = vmax.f32 %v883, %v426
    %v885 = vrot.slane %v884, 4
    %v886 = vmax.f32 %v884, %v885
    %v887 = vrot.slane %v886, 2
    %v888 = vmax.f32 %v886, %v887
    %v889 = vrot.slane %v888, 1
    %v890 = vmax.f32 %v888, %v889
    %v891 = vmax.f32 %v267, %v299
    %v892 = vmax.f32 %v891, %v331
    %v893 = vmax.f32 %v892, %v363
    %v894 = vmax.f32 %v893, %v395
    %v895 = vmax.f32 %v894, %v427
    %v896 = vrot.slane %v895, 4
    %v897 = vmax.f32 %v895, %v896
    %v898 = vrot.slane %v897, 2
    %v899 = vmax.f32 %v897, %v898
    %v900 = vrot.slane %v899, 1
    %v901 = vmax.f32 %v899, %v900
    %v902 = vmax.f32 %v268, %v300
    %v903 = vmax.f32 %v902, %v332
    %v904 = vmax.f32 %v903, %v364
    %v905 = vmax.f32 %v904, %v396
    %v906 = vmax.f32 %v905, %v428
    %v907 = vrot.slane %v906, 4
    %v908 = vmax.f32 %v906, %v907
    %v909 = vrot.slane %v908, 2
    %v910 = vmax.f32 %v908, %v909
    %v911 = vrot.slane %v910, 1
    %v912 = vmax.f32 %v910, %v911
    %v913 = vmax.f32 %v269, %v301
    %v914 = vmax.f32 %v913, %v333
    %v915 = vmax.f32 %v914, %v365
    %v916 = vmax.f32 %v915, %v397
    %v917 = vmax.f32 %v916, %v429
    %v918 = vrot.slane %v917, 4
    %v919 = vmax.f32 %v917, %v918
    %v920 = vrot.slane %v919, 2
    %v921 = vmax.f32 %v919, %v920
    %v922 = vrot.slane %v921, 1
    %v923 = vmax.f32 %v921, %v922
    %v924 = vmax.f32 %v270, %v302
    %v925 = vmax.f32 %v924, %v334
    %v926 = vmax.f32 %v925, %v366
    %v927 = vmax.f32 %v926, %v398
    %v928 = vmax.f32 %v927, %v430
    %v929 = vrot.slane %v928, 4
    %v930 = vmax.f32 %v928, %v929
    %v931 = vrot.slane %v930, 2
    %v932 = vmax.f32 %v930, %v931
    %v933 = vrot.slane %v932, 1
    %v934 = vmax.f32 %v932, %v933
    %v935 = vmax.f32 %v271, %v303
    %v936 = vmax.f32 %v935, %v335
    %v937 = vmax.f32 %v936, %v367
    %v938 = vmax.f32 %v937, %v399
    %v939 = vmax.f32 %v938, %v431
    %v940 = vrot.slane %v939, 4
    %v941 = vmax.f32 %v939, %v940
    %v942 = vrot.slane %v941, 2
    %v943 = vmax.f32 %v941, %v942
    %v944 = vrot.slane %v943, 1
    %v945 = vmax.f32 %v943, %v944
    %v946 = vmax.f32 %v272, %v304
    %v947 = vmax.f32 %v946, %v336
    %v948 = vmax.f32 %v947, %v368
    %v949 = vmax.f32 %v948, %v400
    %v950 = vmax.f32 %v949, %v432
    %v951 = vrot.slane %v950, 4
    %v952 = vmax.f32 %v950, %v951
    %v953 = vrot.slane %v952, 2
    %v954 = vmax.f32 %v952, %v953
    %v955 = vrot.slane %v954, 1
    %v956 = vmax.f32 %v954, %v955
    %v957 = vmax.f32 %v273, %v305
    %v958 = vmax.f32 %v957, %v337
    %v959 = vmax.f32 %v958, %v369
    %v960 = vmax.f32 %v959, %v401
    %v961 = vmax.f32 %v960, %v433
    %v962 = vrot.slane %v961, 4
    %v963 = vmax.f32 %v961, %v962
    %v964 = vrot.slane %v963, 2
    %v965 = vmax.f32 %v963, %v964
    %v966 = vrot.slane %v965, 1
    %v967 = vmax.f32 %v965, %v966
    %v968 = vmax.f32 %v274, %v306
    %v969 = vmax.f32 %v968, %v338
    %v970 = vmax.f32 %v969, %v370
    %v971 = vmax.f32 %v970, %v402
    %v972 = vmax.f32 %v971, %v434
    %v973 = vrot.slane %v972, 4
    %v974 = vmax.f32 %v972, %v973
    %v975 = vrot.slane %v974, 2
    %v976 = vmax.f32 %v974, %v975
    %v977 = vrot.slane %v976, 1
    %v978 = vmax.f32 %v976, %v977
    %v979 = vmax.f32 %v435, %v467
    %v980 = vmax.f32 %v979, %v499
    %v981 = vmax.f32 %v980, %v531
    %v982 = vmax.f32 %v981, %v563
    %v983 = vmax.f32 %v982, %v595
    %v984 = vrot.slane %v983, 4
    %v985 = vmax.f32 %v983, %v984
    %v986 = vrot.slane %v985, 2
    %v987 = vmax.f32 %v985, %v986
    %v988 = vrot.slane %v987, 1
    %v989 = vmax.f32 %v987, %v988
    %v990 = vmax.f32 %v436, %v468
    %v991 = vmax.f32 %v990, %v500
    %v992 = vmax.f32 %v991, %v532
    %v993 = vmax.f32 %v992, %v564
    %v994 = vmax.f32 %v993, %v596
    %v995 = vrot.slane %v994, 4
    %v996 = vmax.f32 %v994, %v995
    %v997 = vrot.slane %v996, 2
    %v998 = vmax.f32 %v996, %v997
    %v999 = vrot.slane %v998, 1
    %v1000 = vmax.f32 %v998, %v999
    %v1001 = vmax.f32 %v437, %v469
    %v1002 = vmax.f32 %v1001, %v501
    %v1003 = vmax.f32 %v1002, %v533
    %v1004 = vmax.f32 %v1003, %v565
    %v1005 = vmax.f32 %v1004, %v597
    %v1006 = vrot.slane %v1005, 4
    %v1007 = vmax.f32 %v1005, %v1006
    %v1008 = vrot.slane %v1007, 2
    %v1009 = vmax.f32 %v1007, %v1008
    %v1010 = vrot.slane %v1009, 1
    %v1011 = vmax.f32 %v1009, %v1010
    %v1012 = vmax.f32 %v438, %v470
    %v1013 = vmax.f32 %v1012, %v502
    %v1014 = vmax.f32 %v1013, %v534
    %v1015 = vmax.f32 %v1014, %v566
    %v1016 = vmax.f32 %v1015, %v598
    %v1017 = vrot.slane %v1016, 4
    %v1018 = vmax.f32 %v1016, %v1017
    %v1019 = vrot.slane %v1018, 2
    %v1020 = vmax.f32 %v1018, %v1019
    %v1021 = vrot.slane %v1020, 1
    %v1022 = vmax.f32 %v1020, %v1021
    %v1023 = vmax.f32 %v439, %v471
    %v1024 = vmax.f32 %v1023, %v503
    %v1025 = vmax.f32 %v1024, %v535
    %v1026 = vmax.f32 %v1025, %v567
    %v1027 = vmax.f32 %v1026, %v599
    %v1028 = vrot.slane %v1027, 4
    %v1029 = vmax.f32 %v1027, %v1028
    %v1030 = vrot.slane %v1029, 2
    %v1031 = vmax.f32 %v1029, %v1030
    %v1032 = vrot.slane %v1031, 1
    %v1033 = vmax.f32 %v1031, %v1032
    %v1034 = vmax.f32 %v440, %v472
    %v1035 = vmax.f32 %v1034, %v504
    %v1036 = vmax.f32 %v1035, %v536
    %v1037 = vmax.f32 %v1036, %v568
    %v1038 = vmax.f32 %v1037, %v600
    %v1039 = vrot.slane %v1038, 4
    %v1040 = vmax.f32 %v1038, %v1039
    %v1041 = vrot.slane %v1040, 2
    %v1042 = vmax.f32 %v1040, %v1041
    %v1043 = vrot.slane %v1042, 1
    %v1044 = vmax.f32 %v1042, %v1043
    %v1045 = vmax.f32 %v441, %v473
    %v1046 = vmax.f32 %v1045, %v505
    %v1047 = vmax.f32 %v1046, %v537
    %v1048 = vmax.f32 %v1047, %v569
    %v1049 = vmax.f32 %v1048, %v601
    %v1050 = vrot.slane %v1049, 4
    %v1051 = vmax.f32 %v1049, %v1050
    %v1052 = vrot.slane %v1051, 2
    %v1053 = vmax.f32 %v1051, %v1052
    %v1054 = vrot.slane %v1053, 1
    %v1055 = vmax.f32 %v1053, %v1054
    %v1056 = vmax.f32 %v442, %v474
    %v1057 = vmax.f32 %v1056, %v506
    %v1058 = vmax.f32 %v1057, %v538
    %v1059 = vmax.f32 %v1058, %v570
    %v1060 = vmax.f32 %v1059, %v602
    %v1061 = vrot.slane %v1060, 4
    %v1062 = vmax.f32 %v1060, %v1061
    %v1063 = vrot.slane %v1062, 2
    %v1064 = vmax.f32 %v1062, %v1063
    %v1065 = vrot.slane %v1064, 1
    %v1066 = vmax.f32 %v1064, %v1065
    %v1067 = vmax.f32 %v443, %v475
    %v1068 = vmax.f32 %v1067, %v507
    %v1069 = vmax.f32 %v1068, %v539
    %v1070 = vmax.f32 %v1069, %v571
    %v1071 = vmax.f32 %v1070, %v603
    %v1072 = vrot.slane %v1071, 4
    %v1073 = vmax.f32 %v1071, %v1072
    %v1074 = vrot.slane %v1073, 2
    %v1075 = vmax.f32 %v1073, %v1074
    %v1076 = vrot.slane %v1075, 1
    %v1077 = vmax.f32 %v1075, %v1076
    %v1078 = vmax.f32 %v444, %v476
    %v1079 = vmax.f32 %v1078, %v508
    %v1080 = vmax.f32 %v1079, %v540
    %v1081 = vmax.f32 %v1080, %v572
    %v1082 = vmax.f32 %v1081, %v604
    %v1083 = vrot.slane %v1082, 4
    %v1084 = vmax.f32 %v1082, %v1083
    %v1085 = vrot.slane %v1084, 2
    %v1086 = vmax.f32 %v1084, %v1085
    %v1087 = vrot.slane %v1086, 1
    %v1088 = vmax.f32 %v1086, %v1087
    %v1089 = vmax.f32 %v445, %v477
    %v1090 = vmax.f32 %v1089, %v509
    %v1091 = vmax.f32 %v1090, %v541
    %v1092 = vmax.f32 %v1091, %v573
    %v1093 = vmax.f32 %v1092, %v605
    %v1094 = vrot.slane %v1093, 4
    %v1095 = vmax.f32 %v1093, %v1094
    %v1096 = vrot.slane %v1095, 2
    %v1097 = vmax.f32 %v1095, %v1096
    %v1098 = vrot.slane %v1097, 1
    %v1099 = vmax.f32 %v1097, %v1098
    %v1100 = vmax.f32 %v446, %v478
    %v1101 = vmax.f32 %v1100, %v510
    %v1102 = vmax.f32 %v1101, %v542
    %v1103 = vmax.f32 %v1102, %v574
    %v1104 = vmax.f32 %v1103, %v606
    %v1105 = vrot.slane %v1104, 4
    %v1106 = vmax.f32 %v1104, %v1105
    %v1107 = vrot.slane %v1106, 2
    %v1108 = vmax.f32 %v1106, %v1107
    %v1109 = vrot.slane %v1108, 1
    %v1110 = vmax.f32 %v1108, %v1109
    %v1111 = vmax.f32 %v447, %v479
    %v1112 = vmax.f32 %v1111, %v511
    %v1113 = vmax.f32 %v1112, %v543
    %v1114 = vmax.f32 %v1113, %v575
    %v1115 = vmax.f32 %v1114, %v607
    %v1116 = vrot.slane %v1115, 4
    %v1117 = vmax.f32 %v1115, %v1116
    %v1118 = vrot.slane %v1117, 2
    %v1119 = vmax.f32 %v1117, %v1118
    %v1120 = vrot.slane %v1119, 1
    %v1121 = vmax.f32 %v1119, %v1120
    %v1122 = vmax.f32 %v448, %v480
    %v1123 = vmax.f32 %v1122, %v512
    %v1124 = vmax.f32 %v1123, %v544
    %v1125 = vmax.f32 %v1124, %v576
    %v1126 = vmax.f32 %v1125, %v608
    %v1127 = vrot.slane %v1126, 4
    %v1128 = vmax.f32 %v1126, %v1127
    %v1129 = vrot.slane %v1128, 2
    %v1130 = vmax.f32 %v1128, %v1129
    %v1131 = vrot.slane %v1130, 1
    %v1132 = vmax.f32 %v1130, %v1131
    %v1133 = vmax.f32 %v449, %v481
    %v1134 = vmax.f32 %v1133, %v513
    %v1135 = vmax.f32 %v1134, %v545
    %v1136 = vmax.f32 %v1135, %v577
    %v1137 = vmax.f32 %v1136, %v609
    %v1138 = vrot.slane %v1137, 4
    %v1139 = vmax.f32 %v1137, %v1138
    %v1140 = vrot.slane %v1139, 2
    %v1141 = vmax.f32 %v1139, %v1140
    %v1142 = vrot.slane %v1141, 1
    %v1143 = vmax.f32 %v1141, %v1142
    %v1144 = vmax.f32 %v450, %v482
    %v1145 = vmax.f32 %v1144, %v514
    %v1146 = vmax.f32 %v1145, %v546
    %v1147 = vmax.f32 %v1146, %v578
    %v1148 = vmax.f32 %v1147, %v610
    %v1149 = vrot.slane %v1148, 4
    %v1150 = vmax.f32 %v1148, %v1149
    %v1151 = vrot.slane %v1150, 2
    %v1152 = vmax.f32 %v1150, %v1151
    %v1153 = vrot.slane %v1152, 1
    %v1154 = vmax.f32 %v1152, %v1153
    %v1155 = vmax.f32 %v451, %v483
    %v1156 = vmax.f32 %v1155, %v515
    %v1157 = vmax.f32 %v1156, %v547
    %v1158 = vmax.f32 %v1157, %v579
    %v1159 = vmax.f32 %v1158, %v611
    %v1160 = vrot.slane %v1159, 4
    %v1161 = vmax.f32 %v1159, %v1160
    %v1162 = vrot.slane %v1161, 2
    %v1163 = vmax.f32 %v1161, %v1162
    %v1164 = vrot.slane %v1163, 1
    %v1165 = vmax.f32 %v1163, %v1164
    %v1166 = vmax.f32 %v452, %v484
    %v1167 = vmax.f32 %v1166, %v516
    %v1168 = vmax.f32 %v1167, %v548
    %v1169 = vmax.f32 %v1168, %v580
    %v1170 = vmax.f32 %v1169, %v612
    %v1171 = vrot.slane %v1170, 4
    %v1172 = vmax.f32 %v1170, %v1171
    %v1173 = vrot.slane %v1172, 2
    %v1174 = vmax.f32 %v1172, %v1173
    %v1175 = vrot.slane %v1174, 1
    %v1176 = vmax.f32 %v1174, %v1175
    %v1177 = vmax.f32 %v453, %v485
    %v1178 = vmax.f32 %v1177, %v517
    %v1179 = vmax.f32 %v1178, %v549
    %v1180 = vmax.f32 %v1179, %v581
    %v1181 = vmax.f32 %v1180, %v613
    %v1182 = vrot.slane %v1181, 4
    %v1183 = vmax.f32 %v1181, %v1182
    %v1184 = vrot.slane %v1183, 2
    %v1185 = vmax.f32 %v1183, %v1184
    %v1186 = vrot.slane %v1185, 1
    %v1187 = vmax.f32 %v1185, %v1186
    %v1188 = vmax.f32 %v454, %v486
    %v1189 = vmax.f32 %v1188, %v518
    %v1190 = vmax.f32 %v1189, %v550
    %v1191 = vmax.f32 %v1190, %v582
    %v1192 = vmax.f32 %v1191, %v614
    %v1193 = vrot.slane %v1192, 4
    %v1194 = vmax.f32 %v1192, %v1193
    %v1195 = vrot.slane %v1194, 2
    %v1196 = vmax.f32 %v1194, %v1195
    %v1197 = vrot.slane %v1196, 1
    %v1198 = vmax.f32 %v1196, %v1197
    %v1199 = vmax.f32 %v455, %v487
    %v1200 = vmax.f32 %v1199, %v519
    %v1201 = vmax.f32 %v1200, %v551
    %v1202 = vmax.f32 %v1201, %v583
    %v1203 = vmax.f32 %v1202, %v615
    %v1204 = vrot.slane %v1203, 4
    %v1205 = vmax.f32 %v1203, %v1204
    %v1206 = vrot.slane %v1205, 2
    %v1207 = vmax.f32 %v1205, %v1206
    %v1208 = vrot.slane %v1207, 1
    %v1209 = vmax.f32 %v1207, %v1208
    %v1210 = vmax.f32 %v456, %v488
    %v1211 = vmax.f32 %v1210, %v520
    %v1212 = vmax.f32 %v1211, %v552
    %v1213 = vmax.f32 %v1212, %v584
    %v1214 = vmax.f32 %v1213, %v616
    %v1215 = vrot.slane %v1214, 4
    %v1216 = vmax.f32 %v1214, %v1215
    %v1217 = vrot.slane %v1216, 2
    %v1218 = vmax.f32 %v1216, %v1217
    %v1219 = vrot.slane %v1218, 1
    %v1220 = vmax.f32 %v1218, %v1219
    %v1221 = vmax.f32 %v457, %v489
    %v1222 = vmax.f32 %v1221, %v521
    %v1223 = vmax.f32 %v1222, %v553
    %v1224 = vmax.f32 %v1223, %v585
    %v1225 = vmax.f32 %v1224, %v617
    %v1226 = vrot.slane %v1225, 4
    %v1227 = vmax.f32 %v1225, %v1226
    %v1228 = vrot.slane %v1227, 2
    %v1229 = vmax.f32 %v1227, %v1228
    %v1230 = vrot.slane %v1229, 1
    %v1231 = vmax.f32 %v1229, %v1230
    %v1232 = vmax.f32 %v458, %v490
    %v1233 = vmax.f32 %v1232, %v522
    %v1234 = vmax.f32 %v1233, %v554
    %v1235 = vmax.f32 %v1234, %v586
    %v1236 = vmax.f32 %v1235, %v618
    %v1237 = vrot.slane %v1236, 4
    %v1238 = vmax.f32 %v1236, %v1237
    %v1239 = vrot.slane %v1238, 2
    %v1240 = vmax.f32 %v1238, %v1239
    %v1241 = vrot.slane %v1240, 1
    %v1242 = vmax.f32 %v1240, %v1241
    %v1243 = vmax.f32 %v459, %v491
    %v1244 = vmax.f32 %v1243, %v523
    %v1245 = vmax.f32 %v1244, %v555
    %v1246 = vmax.f32 %v1245, %v587
    %v1247 = vmax.f32 %v1246, %v619
    %v1248 = vrot.slane %v1247, 4
    %v1249 = vmax.f32 %v1247, %v1248
    %v1250 = vrot.slane %v1249, 2
    %v1251 = vmax.f32 %v1249, %v1250
    %v1252 = vrot.slane %v1251, 1
    %v1253 = vmax.f32 %v1251, %v1252
    %v1254 = vmax.f32 %v460, %v492
    %v1255 = vmax.f32 %v1254, %v524
    %v1256 = vmax.f32 %v1255, %v556
    %v1257 = vmax.f32 %v1256, %v588
    %v1258 = vmax.f32 %v1257, %v620
    %v1259 = vrot.slane %v1258, 4
    %v1260 = vmax.f32 %v1258, %v1259
    %v1261 = vrot.slane %v1260, 2
    %v1262 = vmax.f32 %v1260, %v1261
    %v1263 = vrot.slane %v1262, 1
    %v1264 = vmax.f32 %v1262, %v1263
    %v1265 = vmax.f32 %v461, %v493
    %v1266 = vmax.f32 %v1265, %v525
    %v1267 = vmax.f32 %v1266, %v557
    %v1268 = vmax.f32 %v1267, %v589
    %v1269 = vmax.f32 %v1268, %v621
    %v1270 = vrot.slane %v1269, 4
    %v1271 = vmax.f32 %v1269, %v1270
    %v1272 = vrot.slane %v1271, 2
    %v1273 = vmax.f32 %v1271, %v1272
    %v1274 = vrot.slane %v1273, 1
    %v1275 = vmax.f32 %v1273, %v1274
    %v1276 = vmax.f32 %v462, %v494
    %v1277 = vmax.f32 %v1276, %v526
    %v1278 = vmax.f32 %v1277, %v558
    %v1279 = vmax.f32 %v1278, %v590
    %v1280 = vmax.f32 %v1279, %v622
    %v1281 = vrot.slane %v1280, 4
    %v1282 = vmax.f32 %v1280, %v1281
    %v1283 = vrot.slane %v1282, 2
    %v1284 = vmax.f32 %v1282, %v1283
    %v1285 = vrot.slane %v1284, 1
    %v1286 = vmax.f32 %v1284, %v1285
    %v1287 = vmax.f32 %v463, %v495
    %v1288 = vmax.f32 %v1287, %v527
    %v1289 = vmax.f32 %v1288, %v559
    %v1290 = vmax.f32 %v1289, %v591
    %v1291 = vmax.f32 %v1290, %v623
    %v1292 = vrot.slane %v1291, 4
    %v1293 = vmax.f32 %v1291, %v1292
    %v1294 = vrot.slane %v1293, 2
    %v1295 = vmax.f32 %v1293, %v1294
    %v1296 = vrot.slane %v1295, 1
    %v1297 = vmax.f32 %v1295, %v1296
    %v1298 = vmax.f32 %v464, %v496
    %v1299 = vmax.f32 %v1298, %v528
    %v1300 = vmax.f32 %v1299, %v560
    %v1301 = vmax.f32 %v1300, %v592
    %v1302 = vmax.f32 %v1301, %v624
    %v1303 = vrot.slane %v1302, 4
    %v1304 = vmax.f32 %v1302, %v1303
    %v1305 = vrot.slane %v1304, 2
    %v1306 = vmax.f32 %v1304, %v1305
    %v1307 = vrot.slane %v1306, 1
    %v1308 = vmax.f32 %v1306, %v1307
    %v1309 = vmax.f32 %v465, %v497
    %v1310 = vmax.f32 %v1309, %v529
    %v1311 = vmax.f32 %v1310, %v561
    %v1312 = vmax.f32 %v1311, %v593
    %v1313 = vmax.f32 %v1312, %v625
    %v1314 = vrot.slane %v1313, 4
    %v1315 = vmax.f32 %v1313, %v1314
    %v1316 = vrot.slane %v1315, 2
    %v1317 = vmax.f32 %v1315, %v1316
    %v1318 = vrot.slane %v1317, 1
    %v1319 = vmax.f32 %v1317, %v1318
    %v1320 = vmax.f32 %v466, %v498
    %v1321 = vmax.f32 %v1320, %v530
    %v1322 = vmax.f32 %v1321, %v562
    %v1323 = vmax.f32 %v1322, %v594
    %v1324 = vmax.f32 %v1323, %v626
    %v1325 = vrot.slane %v1324, 4
    %v1326 = vmax.f32 %v1324, %v1325
    %v1327 = vrot.slane %v1326, 2
    %v1328 = vmax.f32 %v1326, %v1327
    %v1329 = vrot.slane %v1328, 1
    %v1330 = vmax.f32 %v1328, %v1329
    %v1331 = vpack.c.bf16 %v637, %v637
    %v1332 = vpack.c.bf16 %v648, %v648
    %v1333 = vpack.c.bf16 %v659, %v659
    %v1334 = vpack.c.bf16 %v670, %v670
    %v1335 = vpack.c.bf16 %v681, %v681
    %v1336 = vpack.c.bf16 %v692, %v692
    %v1337 = vpack.c.bf16 %v703, %v703
    %v1338 = vpack.c.bf16 %v714, %v714
    %v1339 = vpack.c.bf16 %v725, %v725
    %v1340 = vpack.c.bf16 %v736, %v736
    %v1341 = vpack.c.bf16 %v747, %v747
    %v1342 = vpack.c.bf16 %v758, %v758
    %v1343 = vpack.c.bf16 %v769, %v769
    %v1344 = vpack.c.bf16 %v780, %v780
    %v1345 = vpack.c.bf16 %v791, %v791
    %v1346 = vpack.c.bf16 %v802, %v802
    %v1347 = vpack.c.bf16 %v813, %v813
    %v1348 = vpack.c.bf16 %v824, %v824
    %v1349 = vpack.c.bf16 %v835, %v835
    %v1350 = vpack.c.bf16 %v846, %v846
    %v1351 = vpack.c.bf16 %v857, %v857
    %v1352 = vpack.c.bf16 %v868, %v868
    %v1353 = vpack.c.bf16 %v879, %v879
    %v1354 = vpack.c.bf16 %v890, %v890
    %v1355 = vpack.c.bf16 %v901, %v901
    %v1356 = vpack.c.bf16 %v912, %v912
    %v1357 = vpack.c.bf16 %v923, %v923
    %v1358 = vpack.c.bf16 %v934, %v934
    %v1359 = vpack.c.bf16 %v945, %v945
    %v1360 = vpack.c.bf16 %v956, %v956
    %v1361 = vpack.c.bf16 %v967, %v967
    %v1362 = vpack.c.bf16 %v978, %v978
    %v1363 = vpack.c.bf16 %v989, %v989
    %v1364 = vpack.c.bf16 %v1000, %v1000
    %v1365 = vpack.c.bf16 %v1011, %v1011
    %v1366 = vpack.c.bf16 %v1022, %v1022
    %v1367 = vpack.c.bf16 %v1033, %v1033
    %v1368 = vpack.c.bf16 %v1044, %v1044
    %v1369 = vpack.c.bf16 %v1055, %v1055
    %v1370 = vpack.c.bf16 %v1066, %v1066
    %v1371 = vpack.c.bf16 %v1077, %v1077
    %v1372 = vpack.c.bf16 %v1088, %v1088
    %v1373 = vpack.c.bf16 %v1099, %v1099
    %v1374 = vpack.c.bf16 %v1110, %v1110
    %v1375 = vpack.c.bf16 %v1121, %v1121
    %v1376 = vpack.c.bf16 %v1132, %v1132
    %v1377 = vpack.c.bf16 %v1143, %v1143
    %v1378 = vpack.c.bf16 %v1154, %v1154
    %v1379 = vpack.c.bf16 %v1165, %v1165
    %v1380 = vpack.c.bf16 %v1176, %v1176
    %v1381 = vpack.c.bf16 %v1187, %v1187
    %v1382 = vpack.c.bf16 %v1198, %v1198
    %v1383 = vpack.c.bf16 %v1209, %v1209
    %v1384 = vpack.c.bf16 %v1220, %v1220
    %v1385 = vpack.c.bf16 %v1231, %v1231
    %v1386 = vpack.c.bf16 %v1242, %v1242
    %v1387 = vpack.c.bf16 %v1253, %v1253
    %v1388 = vpack.c.bf16 %v1264, %v1264
    %v1389 = vpack.c.bf16 %v1275, %v1275
    %v1390 = vpack.c.bf16 %v1286, %v1286
    %v1391 = vpack.c.bf16 %v1297, %v1297
    %v1392 = vpack.c.bf16 %v1308, %v1308
    %v1393 = vpack.c.bf16 %v1319, %v1319
    %v1394 = vpack.c.bf16 %v1330, %v1330
    %v1395 = vld [vmem:[#allocation6] sm:$0xf]
    %v1396 = vld [vmem:[#allocation6 + $0x4] sm:$0xf]
    %v1397 = vld [vmem:[#allocation6 + $0x8] sm:$0xf]
    %v1398 = vld [vmem:[#allocation6 + $0xc] sm:$0xf]
    %v1399 = vld [vmem:[#allocation6 + $0x10] sm:$0xf]
    %v1400 = vld [vmem:[#allocation6 + $0x14] sm:$0xf]
    %v1401 = vld [vmem:[#allocation6 + $0x18] sm:$0xf]
    %v1402 = vld [vmem:[#allocation6 + $0x1c] sm:$0xf]
    %v1403 = vld [vmem:[#allocation6 + $0x20] sm:$0xf]
    %v1404 = vld [vmem:[#allocation6 + $0x24] sm:$0xf]
    %v1405 = vld [vmem:[#allocation6 + $0x28] sm:$0xf]
    %v1406 = vld [vmem:[#allocation6 + $0x2c] sm:$0xf]
    %v1407 = vld [vmem:[#allocation6 + $0x30] sm:$0xf]
    %v1408 = vld [vmem:[#allocation6 + $0x34] sm:$0xf]
    %v1409 = vld [vmem:[#allocation6 + $0x38] sm:$0xf]
    %v1410 = vld [vmem:[#allocation6 + $0x3c] sm:$0xf]
    %v1411 = vld [vmem:[#allocation6 + $0x40] sm:$0xf]
    %v1412 = vld [vmem:[#allocation6 + $0x44] sm:$0xf]
    %v1413 = vld [vmem:[#allocation6 + $0x48] sm:$0xf]
    %v1414 = vld [vmem:[#allocation6 + $0x4c] sm:$0xf]
    %v1415 = vld [vmem:[#allocation6 + $0x50] sm:$0xf]
    %v1416 = vld [vmem:[#allocation6 + $0x54] sm:$0xf]
    %v1417 = vld [vmem:[#allocation6 + $0x58] sm:$0xf]
    %v1418 = vld [vmem:[#allocation6 + $0x5c] sm:$0xf]
    %v1419 = vld [vmem:[#allocation6 + $0x60] sm:$0xf]
    %v1420 = vld [vmem:[#allocation6 + $0x64] sm:$0xf]
    %v1421 = vld [vmem:[#allocation6 + $0x68] sm:$0xf]
    %v1422 = vld [vmem:[#allocation6 + $0x6c] sm:$0xf]
    %v1423 = vld [vmem:[#allocation6 + $0x70] sm:$0xf]
    %v1424 = vld [vmem:[#allocation6 + $0x74] sm:$0xf]
    %v1425 = vld [vmem:[#allocation6 + $0x78] sm:$0xf]
    %v1426 = vld [vmem:[#allocation6 + $0x7c] sm:$0xf]
    %v1427 = vld [vmem:[#allocation6 + $0x80] sm:$0xf]
    %v1428 = vld [vmem:[#allocation6 + $0x84] sm:$0xf]
    %v1429 = vld [vmem:[#allocation6 + $0x88] sm:$0xf]
    %v1430 = vld [vmem:[#allocation6 + $0x8c] sm:$0xf]
    %v1431 = vld [vmem:[#allocation6 + $0x90] sm:$0xf]
    %v1432 = vld [vmem:[#allocation6 + $0x94] sm:$0xf]
    %v1433 = vld [vmem:[#allocation6 + $0x98] sm:$0xf]
    %v1434 = vld [vmem:[#allocation6 + $0x9c] sm:$0xf]
    %v1435 = vld [vmem:[#allocation6 + $0xa0] sm:$0xf]
    %v1436 = vld [vmem:[#allocation6 + $0xa4] sm:$0xf]
    %v1437 = vld [vmem:[#allocation6 + $0xa8] sm:$0xf]
    %v1438 = vld [vmem:[#allocation6 + $0xac] sm:$0xf]
    %v1439 = vld [vmem:[#allocation6 + $0xb0] sm:$0xf]
    %v1440 = vld [vmem:[#allocation6 + $0xb4] sm:$0xf]
    %v1441 = vld [vmem:[#allocation6 + $0xb8] sm:$0xf]
    %v1442 = vld [vmem:[#allocation6 + $0xbc] sm:$0xf]
    %v1443 = vld [vmem:[#allocation6 + $0xc0] sm:$0xf]
    %v1444 = vld [vmem:[#allocation6 + $0xc4] sm:$0xf]
    %v1445 = vld [vmem:[#allocation6 + $0xc8] sm:$0xf]
    %v1446 = vld [vmem:[#allocation6 + $0xcc] sm:$0xf]
    %v1447 = vld [vmem:[#allocation6 + $0xd0] sm:$0xf]
    %v1448 = vld [vmem:[#allocation6 + $0xd4] sm:$0xf]
    %v1449 = vld [vmem:[#allocation6 + $0xd8] sm:$0xf]
    %v1450 = vld [vmem:[#allocation6 + $0xdc] sm:$0xf]
    %v1451 = vld [vmem:[#allocation6 + $0xe0] sm:$0xf]
    %v1452 = vld [vmem:[#allocation6 + $0xe4] sm:$0xf]
    %v1453 = vld [vmem:[#allocation6 + $0xe8] sm:$0xf]
    %v1454 = vld [vmem:[#allocation6 + $0xec] sm:$0xf]
    %v1455 = vld [vmem:[#allocation6 + $0xf0] sm:$0xf]
    %v1456 = vld [vmem:[#allocation6 + $0xf4] sm:$0xf]
    %v1457 = vld [vmem:[#allocation6 + $0xf8] sm:$0xf]
    %v1458 = vld [vmem:[#allocation6 + $0xfc] sm:$0xf]
    %v1459 = vld [vmem:[#allocation6 + $0x100] sm:$0xf]
    %v1460 = vld [vmem:[#allocation6 + $0x104] sm:$0xf]
    %v1461 = vld [vmem:[#allocation6 + $0x108] sm:$0xf]
    %v1462 = vld [vmem:[#allocation6 + $0x10c] sm:$0xf]
    %v1463 = vld [vmem:[#allocation6 + $0x110] sm:$0xf]
    %v1464 = vld [vmem:[#allocation6 + $0x114] sm:$0xf]
    %v1465 = vld [vmem:[#allocation6 + $0x118] sm:$0xf]
    %v1466 = vld [vmem:[#allocation6 + $0x11c] sm:$0xf]
    %v1467 = vld [vmem:[#allocation6 + $0x120] sm:$0xf]
    %v1468 = vld [vmem:[#allocation6 + $0x124] sm:$0xf]
    %v1469 = vld [vmem:[#allocation6 + $0x128] sm:$0xf]
    %v1470 = vld [vmem:[#allocation6 + $0x12c] sm:$0xf]
    %v1471 = vld [vmem:[#allocation6 + $0x130] sm:$0xf]
    %v1472 = vld [vmem:[#allocation6 + $0x134] sm:$0xf]
    %v1473 = vld [vmem:[#allocation6 + $0x138] sm:$0xf]
    %v1474 = vld [vmem:[#allocation6 + $0x13c] sm:$0xf]
    %v1475 = vld [vmem:[#allocation6 + $0x140] sm:$0xf]
    %v1476 = vld [vmem:[#allocation6 + $0x144] sm:$0xf]
    %v1477 = vld [vmem:[#allocation6 + $0x148] sm:$0xf]
    %v1478 = vld [vmem:[#allocation6 + $0x14c] sm:$0xf]
    %v1479 = vld [vmem:[#allocation6 + $0x150] sm:$0xf]
    %v1480 = vld [vmem:[#allocation6 + $0x154] sm:$0xf]
    %v1481 = vld [vmem:[#allocation6 + $0x158] sm:$0xf]
    %v1482 = vld [vmem:[#allocation6 + $0x15c] sm:$0xf]
    %v1483 = vld [vmem:[#allocation6 + $0x160] sm:$0xf]
    %v1484 = vld [vmem:[#allocation6 + $0x164] sm:$0xf]
    %v1485 = vld [vmem:[#allocation6 + $0x168] sm:$0xf]
    %v1486 = vld [vmem:[#allocation6 + $0x16c] sm:$0xf]
    %v1487 = vld [vmem:[#allocation6 + $0x170] sm:$0xf]
    %v1488 = vld [vmem:[#allocation6 + $0x174] sm:$0xf]
    %v1489 = vld [vmem:[#allocation6 + $0x178] sm:$0xf]
    %v1490 = vld [vmem:[#allocation6 + $0x17c] sm:$0xf]
    %v1491 = vld [vmem:[#allocation6 + $0x180] sm:$0xf]
    %v1492 = vld [vmem:[#allocation6 + $0x184] sm:$0xf]
    %v1493 = vld [vmem:[#allocation6 + $0x188] sm:$0xf]
    %v1494 = vld [vmem:[#allocation6 + $0x18c] sm:$0xf]
    %v1495 = vld [vmem:[#allocation6 + $0x190] sm:$0xf]
    %v1496 = vld [vmem:[#allocation6 + $0x194] sm:$0xf]
    %v1497 = vld [vmem:[#allocation6 + $0x198] sm:$0xf]
    %v1498 = vld [vmem:[#allocation6 + $0x19c] sm:$0xf]
    %v1499 = vld [vmem:[#allocation6 + $0x1a0] sm:$0xf]
    %v1500 = vld [vmem:[#allocation6 + $0x1a4] sm:$0xf]
    %v1501 = vld [vmem:[#allocation6 + $0x1a8] sm:$0xf]
    %v1502 = vld [vmem:[#allocation6 + $0x1ac] sm:$0xf]
    %v1503 = vld [vmem:[#allocation6 + $0x1b0] sm:$0xf]
    %v1504 = vld [vmem:[#allocation6 + $0x1b4] sm:$0xf]
    %v1505 = vld [vmem:[#allocation6 + $0x1b8] sm:$0xf]
    %v1506 = vld [vmem:[#allocation6 + $0x1bc] sm:$0xf]
    %v1507 = vld [vmem:[#allocation6 + $0x1c0] sm:$0xf]
    %v1508 = vld [vmem:[#allocation6 + $0x1c4] sm:$0xf]
    %v1509 = vld [vmem:[#allocation6 + $0x1c8] sm:$0xf]
    %v1510 = vld [vmem:[#allocation6 + $0x1cc] sm:$0xf]
    %v1511 = vld [vmem:[#allocation6 + $0x1d0] sm:$0xf]
    %v1512 = vld [vmem:[#allocation6 + $0x1d4] sm:$0xf]
    %v1513 = vld [vmem:[#allocation6 + $0x1d8] sm:$0xf]
    %v1514 = vld [vmem:[#allocation6 + $0x1dc] sm:$0xf]
    %v1515 = vld [vmem:[#allocation6 + $0x1e0] sm:$0xf]
    %v1516 = vld [vmem:[#allocation6 + $0x1e4] sm:$0xf]
    %v1517 = vld [vmem:[#allocation6 + $0x1e8] sm:$0xf]
    %v1518 = vld [vmem:[#allocation6 + $0x1ec] sm:$0xf]
    %v1519 = vld [vmem:[#allocation6 + $0x1f0] sm:$0xf]
    %v1520 = vld [vmem:[#allocation6 + $0x1f4] sm:$0xf]
    %v1521 = vld [vmem:[#allocation6 + $0x1f8] sm:$0xf]
    %v1522 = vld [vmem:[#allocation6 + $0x1fc] sm:$0xf]
    %v1523 = vld [vmem:[#allocation6 + $0x200] sm:$0xf]
    %v1524 = vld [vmem:[#allocation6 + $0x204] sm:$0xf]
    %v1525 = vld [vmem:[#allocation6 + $0x208] sm:$0xf]
    %v1526 = vld [vmem:[#allocation6 + $0x20c] sm:$0xf]
    %v1527 = vld [vmem:[#allocation6 + $0x210] sm:$0xf]
    %v1528 = vld [vmem:[#allocation6 + $0x214] sm:$0xf]
    %v1529 = vld [vmem:[#allocation6 + $0x218] sm:$0xf]
    %v1530 = vld [vmem:[#allocation6 + $0x21c] sm:$0xf]
    %v1531 = vld [vmem:[#allocation6 + $0x220] sm:$0xf]
    %v1532 = vld [vmem:[#allocation6 + $0x224] sm:$0xf]
    %v1533 = vld [vmem:[#allocation6 + $0x228] sm:$0xf]
    %v1534 = vld [vmem:[#allocation6 + $0x22c] sm:$0xf]
    %v1535 = vld [vmem:[#allocation6 + $0x230] sm:$0xf]
    %v1536 = vld [vmem:[#allocation6 + $0x234] sm:$0xf]
    %v1537 = vld [vmem:[#allocation6 + $0x238] sm:$0xf]
    %v1538 = vld [vmem:[#allocation6 + $0x23c] sm:$0xf]
    %v1539 = vld [vmem:[#allocation6 + $0x240] sm:$0xf]
    %v1540 = vld [vmem:[#allocation6 + $0x244] sm:$0xf]
    %v1541 = vld [vmem:[#allocation6 + $0x248] sm:$0xf]
    %v1542 = vld [vmem:[#allocation6 + $0x24c] sm:$0xf]
    %v1543 = vld [vmem:[#allocation6 + $0x250] sm:$0xf]
    %v1544 = vld [vmem:[#allocation6 + $0x254] sm:$0xf]
    %v1545 = vld [vmem:[#allocation6 + $0x258] sm:$0xf]
    %v1546 = vld [vmem:[#allocation6 + $0x25c] sm:$0xf]
    %v1547 = vld [vmem:[#allocation6 + $0x260] sm:$0xf]
    %v1548 = vld [vmem:[#allocation6 + $0x264] sm:$0xf]
    %v1549 = vld [vmem:[#allocation6 + $0x268] sm:$0xf]
    %v1550 = vld [vmem:[#allocation6 + $0x26c] sm:$0xf]
    %v1551 = vld [vmem:[#allocation6 + $0x270] sm:$0xf]
    %v1552 = vld [vmem:[#allocation6 + $0x274] sm:$0xf]
    %v1553 = vld [vmem:[#allocation6 + $0x278] sm:$0xf]
    %v1554 = vld [vmem:[#allocation6 + $0x27c] sm:$0xf]
    %v1555 = vld [vmem:[#allocation6 + $0x280] sm:$0xf]
    %v1556 = vld [vmem:[#allocation6 + $0x284] sm:$0xf]
    %v1557 = vld [vmem:[#allocation6 + $0x288] sm:$0xf]
    %v1558 = vld [vmem:[#allocation6 + $0x28c] sm:$0xf]
    %v1559 = vld [vmem:[#allocation6 + $0x290] sm:$0xf]
    %v1560 = vld [vmem:[#allocation6 + $0x294] sm:$0xf]
    %v1561 = vld [vmem:[#allocation6 + $0x298] sm:$0xf]
    %v1562 = vld [vmem:[#allocation6 + $0x29c] sm:$0xf]
    %v1563 = vld [vmem:[#allocation6 + $0x2a0] sm:$0xf]
    %v1564 = vld [vmem:[#allocation6 + $0x2a4] sm:$0xf]
    %v1565 = vld [vmem:[#allocation6 + $0x2a8] sm:$0xf]
    %v1566 = vld [vmem:[#allocation6 + $0x2ac] sm:$0xf]
    %v1567 = vld [vmem:[#allocation6 + $0x2b0] sm:$0xf]
    %v1568 = vld [vmem:[#allocation6 + $0x2b4] sm:$0xf]
    %v1569 = vld [vmem:[#allocation6 + $0x2b8] sm:$0xf]
    %v1570 = vld [vmem:[#allocation6 + $0x2bc] sm:$0xf]
    %v1571 = vld [vmem:[#allocation6 + $0x2c0] sm:$0xf]
    %v1572 = vld [vmem:[#allocation6 + $0x2c4] sm:$0xf]
    %v1573 = vld [vmem:[#allocation6 + $0x2c8] sm:$0xf]
    %v1574 = vld [vmem:[#allocation6 + $0x2cc] sm:$0xf]
    %v1575 = vld [vmem:[#allocation6 + $0x2d0] sm:$0xf]
    %v1576 = vld [vmem:[#allocation6 + $0x2d4] sm:$0xf]
    %v1577 = vld [vmem:[#allocation6 + $0x2d8] sm:$0xf]
    %v1578 = vld [vmem:[#allocation6 + $0x2dc] sm:$0xf]
    %v1579 = vld [vmem:[#allocation6 + $0x2e0] sm:$0xf]
    %v1580 = vld [vmem:[#allocation6 + $0x2e4] sm:$0xf]
    %v1581 = vld [vmem:[#allocation6 + $0x2e8] sm:$0xf]
    %v1582 = vld [vmem:[#allocation6 + $0x2ec] sm:$0xf]
    %v1583 = vld [vmem:[#allocation6 + $0x2f0] sm:$0xf]
    %v1584 = vld [vmem:[#allocation6 + $0x2f4] sm:$0xf]
    %v1585 = vld [vmem:[#allocation6 + $0x2f8] sm:$0xf]
    %v1586 = vld [vmem:[#allocation6 + $0x2fc] sm:$0xf]
    %v1587 = vld [vmem:[#allocation6 + $0x300] sm:$0xf]
    %v1588 = vld [vmem:[#allocation6 + $0x304] sm:$0xf]
    %v1589 = vld [vmem:[#allocation6 + $0x308] sm:$0xf]
    %v1590 = vld [vmem:[#allocation6 + $0x30c] sm:$0xf]
    %v1591 = vld [vmem:[#allocation6 + $0x310] sm:$0xf]
    %v1592 = vld [vmem:[#allocation6 + $0x314] sm:$0xf]
    %v1593 = vld [vmem:[#allocation6 + $0x318] sm:$0xf]
    %v1594 = vld [vmem:[#allocation6 + $0x31c] sm:$0xf]
    %v1595 = vld [vmem:[#allocation6 + $0x320] sm:$0xf]
    %v1596 = vld [vmem:[#allocation6 + $0x324] sm:$0xf]
    %v1597 = vld [vmem:[#allocation6 + $0x328] sm:$0xf]
    %v1598 = vld [vmem:[#allocation6 + $0x32c] sm:$0xf]
    %v1599 = vld [vmem:[#allocation6 + $0x330] sm:$0xf]
    %v1600 = vld [vmem:[#allocation6 + $0x334] sm:$0xf]
    %v1601 = vld [vmem:[#allocation6 + $0x338] sm:$0xf]
    %v1602 = vld [vmem:[#allocation6 + $0x33c] sm:$0xf]
    %v1603 = vld [vmem:[#allocation6 + $0x340] sm:$0xf]
    %v1604 = vld [vmem:[#allocation6 + $0x344] sm:$0xf]
    %v1605 = vld [vmem:[#allocation6 + $0x348] sm:$0xf]
    %v1606 = vld [vmem:[#allocation6 + $0x34c] sm:$0xf]
    %v1607 = vld [vmem:[#allocation6 + $0x350] sm:$0xf]
    %v1608 = vld [vmem:[#allocation6 + $0x354] sm:$0xf]
    %v1609 = vld [vmem:[#allocation6 + $0x358] sm:$0xf]
    %v1610 = vld [vmem:[#allocation6 + $0x35c] sm:$0xf]
    %v1611 = vld [vmem:[#allocation6 + $0x360] sm:$0xf]
    %v1612 = vld [vmem:[#allocation6 + $0x364] sm:$0xf]
    %v1613 = vld [vmem:[#allocation6 + $0x368] sm:$0xf]
    %v1614 = vld [vmem:[#allocation6 + $0x36c] sm:$0xf]
    %v1615 = vld [vmem:[#allocation6 + $0x370] sm:$0xf]
    %v1616 = vld [vmem:[#allocation6 + $0x374] sm:$0xf]
    %v1617 = vld [vmem:[#allocation6 + $0x378] sm:$0xf]
    %v1618 = vld [vmem:[#allocation6 + $0x37c] sm:$0xf]
    %v1619 = vld [vmem:[#allocation6 + $0x380] sm:$0xf]
    %v1620 = vld [vmem:[#allocation6 + $0x384] sm:$0xf]
    %v1621 = vld [vmem:[#allocation6 + $0x388] sm:$0xf]
    %v1622 = vld [vmem:[#allocation6 + $0x38c] sm:$0xf]
    %v1623 = vld [vmem:[#allocation6 + $0x390] sm:$0xf]
    %v1624 = vld [vmem:[#allocation6 + $0x394] sm:$0xf]
    %v1625 = vld [vmem:[#allocation6 + $0x398] sm:$0xf]
    %v1626 = vld [vmem:[#allocation6 + $0x39c] sm:$0xf]
    %v1627 = vld [vmem:[#allocation6 + $0x3a0] sm:$0xf]
    %v1628 = vld [vmem:[#allocation6 + $0x3a4] sm:$0xf]
    %v1629 = vld [vmem:[#allocation6 + $0x3a8] sm:$0xf]
    %v1630 = vld [vmem:[#allocation6 + $0x3ac] sm:$0xf]
    %v1631 = vld [vmem:[#allocation6 + $0x3b0] sm:$0xf]
    %v1632 = vld [vmem:[#allocation6 + $0x3b4] sm:$0xf]
    %v1633 = vld [vmem:[#allocation6 + $0x3b8] sm:$0xf]
    %v1634 = vld [vmem:[#allocation6 + $0x3bc] sm:$0xf]
    %v1635 = vld [vmem:[#allocation6 + $0x3c0] sm:$0xf]
    %v1636 = vld [vmem:[#allocation6 + $0x3c4] sm:$0xf]
    %v1637 = vld [vmem:[#allocation6 + $0x3c8] sm:$0xf]
    %v1638 = vld [vmem:[#allocation6 + $0x3cc] sm:$0xf]
    %v1639 = vld [vmem:[#allocation6 + $0x3d0] sm:$0xf]
    %v1640 = vld [vmem:[#allocation6 + $0x3d4] sm:$0xf]
    %v1641 = vld [vmem:[#allocation6 + $0x3d8] sm:$0xf]
    %v1642 = vld [vmem:[#allocation6 + $0x3dc] sm:$0xf]
    %v1643 = vld [vmem:[#allocation6 + $0x3e0] sm:$0xf]
    %v1644 = vld [vmem:[#allocation6 + $0x3e4] sm:$0xf]
    %v1645 = vld [vmem:[#allocation6 + $0x3e8] sm:$0xf]
    %v1646 = vld [vmem:[#allocation6 + $0x3ec] sm:$0xf]
    %v1647 = vld [vmem:[#allocation6 + $0x3f0] sm:$0xf]
    %v1648 = vld [vmem:[#allocation6 + $0x3f4] sm:$0xf]
    %v1649 = vld [vmem:[#allocation6 + $0x3f8] sm:$0xf]
    %v1650 = vld [vmem:[#allocation6 + $0x3fc] sm:$0xf]
    %v1651 = vld [vmem:[#allocation6 + $0x400] sm:$0xf]
    %v1652 = vld [vmem:[#allocation6 + $0x404] sm:$0xf]
    %v1653 = vld [vmem:[#allocation6 + $0x408] sm:$0xf]
    %v1654 = vld [vmem:[#allocation6 + $0x40c] sm:$0xf]
    %v1655 = vld [vmem:[#allocation6 + $0x410] sm:$0xf]
    %v1656 = vld [vmem:[#allocation6 + $0x414] sm:$0xf]
    %v1657 = vld [vmem:[#allocation6 + $0x418] sm:$0xf]
    %v1658 = vld [vmem:[#allocation6 + $0x41c] sm:$0xf]
    %v1659 = vld [vmem:[#allocation6 + $0x420] sm:$0xf]
    %v1660 = vld [vmem:[#allocation6 + $0x424] sm:$0xf]
    %v1661 = vld [vmem:[#allocation6 + $0x428] sm:$0xf]
    %v1662 = vld [vmem:[#allocation6 + $0x42c] sm:$0xf]
    %v1663 = vld [vmem:[#allocation6 + $0x430] sm:$0xf]
    %v1664 = vld [vmem:[#allocation6 + $0x434] sm:$0xf]
    %v1665 = vld [vmem:[#allocation6 + $0x438] sm:$0xf]
    %v1666 = vld [vmem:[#allocation6 + $0x43c] sm:$0xf]
    %v1667 = vld [vmem:[#allocation6 + $0x440] sm:$0xf]
    %v1668 = vld [vmem:[#allocation6 + $0x444] sm:$0xf]
    %v1669 = vld [vmem:[#allocation6 + $0x448] sm:$0xf]
    %v1670 = vld [vmem:[#allocation6 + $0x44c] sm:$0xf]
    %v1671 = vld [vmem:[#allocation6 + $0x450] sm:$0xf]
    %v1672 = vld [vmem:[#allocation6 + $0x454] sm:$0xf]
    %v1673 = vld [vmem:[#allocation6 + $0x458] sm:$0xf]
    %v1674 = vld [vmem:[#allocation6 + $0x45c] sm:$0xf]
    %v1675 = vld [vmem:[#allocation6 + $0x460] sm:$0xf]
    %v1676 = vld [vmem:[#allocation6 + $0x464] sm:$0xf]
    %v1677 = vld [vmem:[#allocation6 + $0x468] sm:$0xf]
    %v1678 = vld [vmem:[#allocation6 + $0x46c] sm:$0xf]
    %v1679 = vld [vmem:[#allocation6 + $0x470] sm:$0xf]
    %v1680 = vld [vmem:[#allocation6 + $0x474] sm:$0xf]
    %v1681 = vld [vmem:[#allocation6 + $0x478] sm:$0xf]
    %v1682 = vld [vmem:[#allocation6 + $0x47c] sm:$0xf]
    %v1683 = vld [vmem:[#allocation6 + $0x480] sm:$0xf]
    %v1684 = vld [vmem:[#allocation6 + $0x484] sm:$0xf]
    %v1685 = vld [vmem:[#allocation6 + $0x488] sm:$0xf]
    %v1686 = vld [vmem:[#allocation6 + $0x48c] sm:$0xf]
    %v1687 = vld [vmem:[#allocation6 + $0x490] sm:$0xf]
    %v1688 = vld [vmem:[#allocation6 + $0x494] sm:$0xf]
    %v1689 = vld [vmem:[#allocation6 + $0x498] sm:$0xf]
    %v1690 = vld [vmem:[#allocation6 + $0x49c] sm:$0xf]
    %v1691 = vld [vmem:[#allocation6 + $0x4a0] sm:$0xf]
    %v1692 = vld [vmem:[#allocation6 + $0x4a4] sm:$0xf]
    %v1693 = vld [vmem:[#allocation6 + $0x4a8] sm:$0xf]
    %v1694 = vld [vmem:[#allocation6 + $0x4ac] sm:$0xf]
    %v1695 = vld [vmem:[#allocation6 + $0x4b0] sm:$0xf]
    %v1696 = vld [vmem:[#allocation6 + $0x4b4] sm:$0xf]
    %v1697 = vld [vmem:[#allocation6 + $0x4b8] sm:$0xf]
    %v1698 = vld [vmem:[#allocation6 + $0x4bc] sm:$0xf]
    %v1699 = vld [vmem:[#allocation6 + $0x4c0] sm:$0xf]
    %v1700 = vld [vmem:[#allocation6 + $0x4c4] sm:$0xf]
    %v1701 = vld [vmem:[#allocation6 + $0x4c8] sm:$0xf]
    %v1702 = vld [vmem:[#allocation6 + $0x4cc] sm:$0xf]
    %v1703 = vld [vmem:[#allocation6 + $0x4d0] sm:$0xf]
    %v1704 = vld [vmem:[#allocation6 + $0x4d4] sm:$0xf]
    %v1705 = vld [vmem:[#allocation6 + $0x4d8] sm:$0xf]
    %v1706 = vld [vmem:[#allocation6 + $0x4dc] sm:$0xf]
    %v1707 = vld [vmem:[#allocation6 + $0x4e0] sm:$0xf]
    %v1708 = vld [vmem:[#allocation6 + $0x4e4] sm:$0xf]
    %v1709 = vld [vmem:[#allocation6 + $0x4e8] sm:$0xf]
    %v1710 = vld [vmem:[#allocation6 + $0x4ec] sm:$0xf]
    %v1711 = vld [vmem:[#allocation6 + $0x4f0] sm:$0xf]
    %v1712 = vld [vmem:[#allocation6 + $0x4f4] sm:$0xf]
    %v1713 = vld [vmem:[#allocation6 + $0x4f8] sm:$0xf]
    %v1714 = vld [vmem:[#allocation6 + $0x4fc] sm:$0xf]
    %v1715 = vld [vmem:[#allocation6 + $0x500] sm:$0xf]
    %v1716 = vld [vmem:[#allocation6 + $0x504] sm:$0xf]
    %v1717 = vld [vmem:[#allocation6 + $0x508] sm:$0xf]
    %v1718 = vld [vmem:[#allocation6 + $0x50c] sm:$0xf]
    %v1719 = vld [vmem:[#allocation6 + $0x510] sm:$0xf]
    %v1720 = vld [vmem:[#allocation6 + $0x514] sm:$0xf]
    %v1721 = vld [vmem:[#allocation6 + $0x518] sm:$0xf]
    %v1722 = vld [vmem:[#allocation6 + $0x51c] sm:$0xf]
    %v1723 = vld [vmem:[#allocation6 + $0x520] sm:$0xf]
    %v1724 = vld [vmem:[#allocation6 + $0x524] sm:$0xf]
    %v1725 = vld [vmem:[#allocation6 + $0x528] sm:$0xf]
    %v1726 = vld [vmem:[#allocation6 + $0x52c] sm:$0xf]
    %v1727 = vld [vmem:[#allocation6 + $0x530] sm:$0xf]
    %v1728 = vld [vmem:[#allocation6 + $0x534] sm:$0xf]
    %v1729 = vld [vmem:[#allocation6 + $0x538] sm:$0xf]
    %v1730 = vld [vmem:[#allocation6 + $0x53c] sm:$0xf]
    %v1731 = vld [vmem:[#allocation6 + $0x540] sm:$0xf]
    %v1732 = vld [vmem:[#allocation6 + $0x544] sm:$0xf]
    %v1733 = vld [vmem:[#allocation6 + $0x548] sm:$0xf]
    %v1734 = vld [vmem:[#allocation6 + $0x54c] sm:$0xf]
    %v1735 = vld [vmem:[#allocation6 + $0x550] sm:$0xf]
    %v1736 = vld [vmem:[#allocation6 + $0x554] sm:$0xf]
    %v1737 = vld [vmem:[#allocation6 + $0x558] sm:$0xf]
    %v1738 = vld [vmem:[#allocation6 + $0x55c] sm:$0xf]
    %v1739 = vld [vmem:[#allocation6 + $0x560] sm:$0xf]
    %v1740 = vld [vmem:[#allocation6 + $0x564] sm:$0xf]
    %v1741 = vld [vmem:[#allocation6 + $0x568] sm:$0xf]
    %v1742 = vld [vmem:[#allocation6 + $0x56c] sm:$0xf]
    %v1743 = vld [vmem:[#allocation6 + $0x570] sm:$0xf]
    %v1744 = vld [vmem:[#allocation6 + $0x574] sm:$0xf]
    %v1745 = vld [vmem:[#allocation6 + $0x578] sm:$0xf]
    %v1746 = vld [vmem:[#allocation6 + $0x57c] sm:$0xf]
    %v1747 = vld [vmem:[#allocation6 + $0x580] sm:$0xf]
    %v1748 = vld [vmem:[#allocation6 + $0x584] sm:$0xf]
    %v1749 = vld [vmem:[#allocation6 + $0x588] sm:$0xf]
    %v1750 = vld [vmem:[#allocation6 + $0x58c] sm:$0xf]
    %v1751 = vld [vmem:[#allocation6 + $0x590] sm:$0xf]
    %v1752 = vld [vmem:[#allocation6 + $0x594] sm:$0xf]
    %v1753 = vld [vmem:[#allocation6 + $0x598] sm:$0xf]
    %v1754 = vld [vmem:[#allocation6 + $0x59c] sm:$0xf]
    %v1755 = vld [vmem:[#allocation6 + $0x5a0] sm:$0xf]
    %v1756 = vld [vmem:[#allocation6 + $0x5a4] sm:$0xf]
    %v1757 = vld [vmem:[#allocation6 + $0x5a8] sm:$0xf]
    %v1758 = vld [vmem:[#allocation6 + $0x5ac] sm:$0xf]
    %v1759 = vld [vmem:[#allocation6 + $0x5b0] sm:$0xf]
    %v1760 = vld [vmem:[#allocation6 + $0x5b4] sm:$0xf]
    %v1761 = vld [vmem:[#allocation6 + $0x5b8] sm:$0xf]
    %v1762 = vld [vmem:[#allocation6 + $0x5bc] sm:$0xf]
    %v1763 = vld [vmem:[#allocation6 + $0x5c0] sm:$0xf]
    %v1764 = vld [vmem:[#allocation6 + $0x5c4] sm:$0xf]
    %v1765 = vld [vmem:[#allocation6 + $0x5c8] sm:$0xf]
    %v1766 = vld [vmem:[#allocation6 + $0x5cc] sm:$0xf]
    %v1767 = vld [vmem:[#allocation6 + $0x5d0] sm:$0xf]
    %v1768 = vld [vmem:[#allocation6 + $0x5d4] sm:$0xf]
    %v1769 = vld [vmem:[#allocation6 + $0x5d8] sm:$0xf]
    %v1770 = vld [vmem:[#allocation6 + $0x5dc] sm:$0xf]
    %v1771 = vld [vmem:[#allocation6 + $0x5e0] sm:$0xf]
    %v1772 = vld [vmem:[#allocation6 + $0x5e4] sm:$0xf]
    %v1773 = vld [vmem:[#allocation6 + $0x5e8] sm:$0xf]
    %v1774 = vld [vmem:[#allocation6 + $0x5ec] sm:$0xf]
    %v1775 = vld [vmem:[#allocation6 + $0x5f0] sm:$0xf]
    %v1776 = vld [vmem:[#allocation6 + $0x5f4] sm:$0xf]
    %v1777 = vld [vmem:[#allocation6 + $0x5f8] sm:$0xf]
    %v1778 = vld [vmem:[#allocation6 + $0x5fc] sm:$0xf]
    %v1779 = vld [vmem:[#allocation6 + $0x600] sm:$0xf]
    %v1780 = vld [vmem:[#allocation6 + $0x604] sm:$0xf]
    %v1781 = vld [vmem:[#allocation6 + $0x608] sm:$0xf]
    %v1782 = vld [vmem:[#allocation6 + $0x60c] sm:$0xf]
    %v1783 = vld [vmem:[#allocation6 + $0x610] sm:$0xf]
    %v1784 = vld [vmem:[#allocation6 + $0x614] sm:$0xf]
    %v1785 = vld [vmem:[#allocation6 + $0x618] sm:$0xf]
    %v1786 = vld [vmem:[#allocation6 + $0x61c] sm:$0xf]
    %v1787 = vld [vmem:[#allocation6 + $0x620] sm:$0xf]
    %v1788 = vld [vmem:[#allocation6 + $0x624] sm:$0xf]
    %v1789 = vld [vmem:[#allocation6 + $0x628] sm:$0xf]
    %v1790 = vld [vmem:[#allocation6 + $0x62c] sm:$0xf]
    %v1791 = vld [vmem:[#allocation6 + $0x630] sm:$0xf]
    %v1792 = vld [vmem:[#allocation6 + $0x634] sm:$0xf]
    %v1793 = vld [vmem:[#allocation6 + $0x638] sm:$0xf]
    %v1794 = vld [vmem:[#allocation6 + $0x63c] sm:$0xf]
    %v1795 = vld [vmem:[#allocation6 + $0x640] sm:$0xf]
    %v1796 = vld [vmem:[#allocation6 + $0x644] sm:$0xf]
    %v1797 = vld [vmem:[#allocation6 + $0x648] sm:$0xf]
    %v1798 = vld [vmem:[#allocation6 + $0x64c] sm:$0xf]
    %v1799 = vld [vmem:[#allocation6 + $0x650] sm:$0xf]
    %v1800 = vld [vmem:[#allocation6 + $0x654] sm:$0xf]
    %v1801 = vld [vmem:[#allocation6 + $0x658] sm:$0xf]
    %v1802 = vld [vmem:[#allocation6 + $0x65c] sm:$0xf]
    %v1803 = vld [vmem:[#allocation6 + $0x660] sm:$0xf]
    %v1804 = vld [vmem:[#allocation6 + $0x664] sm:$0xf]
    %v1805 = vld [vmem:[#allocation6 + $0x668] sm:$0xf]
    %v1806 = vld [vmem:[#allocation6 + $0x66c] sm:$0xf]
    %v1807 = vld [vmem:[#allocation6 + $0x670] sm:$0xf]
    %v1808 = vld [vmem:[#allocation6 + $0x674] sm:$0xf]
    %v1809 = vld [vmem:[#allocation6 + $0x678] sm:$0xf]
    %v1810 = vld [vmem:[#allocation6 + $0x67c] sm:$0xf]
    %v1811 = vld [vmem:[#allocation6 + $0x680] sm:$0xf]
    %v1812 = vld [vmem:[#allocation6 + $0x684] sm:$0xf]
    %v1813 = vld [vmem:[#allocation6 + $0x688] sm:$0xf]
    %v1814 = vld [vmem:[#allocation6 + $0x68c] sm:$0xf]
    %v1815 = vld [vmem:[#allocation6 + $0x690] sm:$0xf]
    %v1816 = vld [vmem:[#allocation6 + $0x694] sm:$0xf]
    %v1817 = vld [vmem:[#allocation6 + $0x698] sm:$0xf]
    %v1818 = vld [vmem:[#allocation6 + $0x69c] sm:$0xf]
    %v1819 = vld [vmem:[#allocation6 + $0x6a0] sm:$0xf]
    %v1820 = vld [vmem:[#allocation6 + $0x6a4] sm:$0xf]
    %v1821 = vld [vmem:[#allocation6 + $0x6a8] sm:$0xf]
    %v1822 = vld [vmem:[#allocation6 + $0x6ac] sm:$0xf]
    %v1823 = vld [vmem:[#allocation6 + $0x6b0] sm:$0xf]
    %v1824 = vld [vmem:[#allocation6 + $0x6b4] sm:$0xf]
    %v1825 = vld [vmem:[#allocation6 + $0x6b8] sm:$0xf]
    %v1826 = vld [vmem:[#allocation6 + $0x6bc] sm:$0xf]
    %v1827 = vld [vmem:[#allocation6 + $0x6c0] sm:$0xf]
    %v1828 = vld [vmem:[#allocation6 + $0x6c4] sm:$0xf]
    %v1829 = vld [vmem:[#allocation6 + $0x6c8] sm:$0xf]
    %v1830 = vld [vmem:[#allocation6 + $0x6cc] sm:$0xf]
    %v1831 = vld [vmem:[#allocation6 + $0x6d0] sm:$0xf]
    %v1832 = vld [vmem:[#allocation6 + $0x6d4] sm:$0xf]
    %v1833 = vld [vmem:[#allocation6 + $0x6d8] sm:$0xf]
    %v1834 = vld [vmem:[#allocation6 + $0x6dc] sm:$0xf]
    %v1835 = vld [vmem:[#allocation6 + $0x6e0] sm:$0xf]
    %v1836 = vld [vmem:[#allocation6 + $0x6e4] sm:$0xf]
    %v1837 = vld [vmem:[#allocation6 + $0x6e8] sm:$0xf]
    %v1838 = vld [vmem:[#allocation6 + $0x6ec] sm:$0xf]
    %v1839 = vld [vmem:[#allocation6 + $0x6f0] sm:$0xf]
    %v1840 = vld [vmem:[#allocation6 + $0x6f4] sm:$0xf]
    %v1841 = vld [vmem:[#allocation6 + $0x6f8] sm:$0xf]
    %v1842 = vld [vmem:[#allocation6 + $0x6fc] sm:$0xf]
    %v1843 = vld [vmem:[#allocation6 + $0x700] sm:$0xf]
    %v1844 = vld [vmem:[#allocation6 + $0x704] sm:$0xf]
    %v1845 = vld [vmem:[#allocation6 + $0x708] sm:$0xf]
    %v1846 = vld [vmem:[#allocation6 + $0x70c] sm:$0xf]
    %v1847 = vld [vmem:[#allocation6 + $0x710] sm:$0xf]
    %v1848 = vld [vmem:[#allocation6 + $0x714] sm:$0xf]
    %v1849 = vld [vmem:[#allocation6 + $0x718] sm:$0xf]
    %v1850 = vld [vmem:[#allocation6 + $0x71c] sm:$0xf]
    %v1851 = vld [vmem:[#allocation6 + $0x720] sm:$0xf]
    %v1852 = vld [vmem:[#allocation6 + $0x724] sm:$0xf]
    %v1853 = vld [vmem:[#allocation6 + $0x728] sm:$0xf]
    %v1854 = vld [vmem:[#allocation6 + $0x72c] sm:$0xf]
    %v1855 = vld [vmem:[#allocation6 + $0x730] sm:$0xf]
    %v1856 = vld [vmem:[#allocation6 + $0x734] sm:$0xf]
    %v1857 = vld [vmem:[#allocation6 + $0x738] sm:$0xf]
    %v1858 = vld [vmem:[#allocation6 + $0x73c] sm:$0xf]
    %v1859 = vld [vmem:[#allocation6 + $0x740] sm:$0xf]
    %v1860 = vld [vmem:[#allocation6 + $0x744] sm:$0xf]
    %v1861 = vld [vmem:[#allocation6 + $0x748] sm:$0xf]
    %v1862 = vld [vmem:[#allocation6 + $0x74c] sm:$0xf]
    %v1863 = vld [vmem:[#allocation6 + $0x750] sm:$0xf]
    %v1864 = vld [vmem:[#allocation6 + $0x754] sm:$0xf]
    %v1865 = vld [vmem:[#allocation6 + $0x758] sm:$0xf]
    %v1866 = vld [vmem:[#allocation6 + $0x75c] sm:$0xf]
    %v1867 = vld [vmem:[#allocation6 + $0x760] sm:$0xf]
    %v1868 = vld [vmem:[#allocation6 + $0x764] sm:$0xf]
    %v1869 = vld [vmem:[#allocation6 + $0x768] sm:$0xf]
    %v1870 = vld [vmem:[#allocation6 + $0x76c] sm:$0xf]
    %v1871 = vld [vmem:[#allocation6 + $0x770] sm:$0xf]
    %v1872 = vld [vmem:[#allocation6 + $0x774] sm:$0xf]
    %v1873 = vld [vmem:[#allocation6 + $0x778] sm:$0xf]
    %v1874 = vld [vmem:[#allocation6 + $0x77c] sm:$0xf]
    %v1875 = vld [vmem:[#allocation6 + $0x780] sm:$0xf]
    %v1876 = vld [vmem:[#allocation6 + $0x784] sm:$0xf]
    %v1877 = vld [vmem:[#allocation6 + $0x788] sm:$0xf]
    %v1878 = vld [vmem:[#allocation6 + $0x78c] sm:$0xf]
    %v1879 = vld [vmem:[#allocation6 + $0x790] sm:$0xf]
    %v1880 = vld [vmem:[#allocation6 + $0x794] sm:$0xf]
    %v1881 = vld [vmem:[#allocation6 + $0x798] sm:$0xf]
    %v1882 = vld [vmem:[#allocation6 + $0x79c] sm:$0xf]
    %v1883 = vld [vmem:[#allocation6 + $0x7a0] sm:$0xf]
    %v1884 = vld [vmem:[#allocation6 + $0x7a4] sm:$0xf]
    %v1885 = vld [vmem:[#allocation6 + $0x7a8] sm:$0xf]
    %v1886 = vld [vmem:[#allocation6 + $0x7ac] sm:$0xf]
    %v1887 = vld [vmem:[#allocation6 + $0x7b0] sm:$0xf]
    %v1888 = vld [vmem:[#allocation6 + $0x7b4] sm:$0xf]
    %v1889 = vld [vmem:[#allocation6 + $0x7b8] sm:$0xf]
    %v1890 = vld [vmem:[#allocation6 + $0x7bc] sm:$0xf]
    %v1891 = vld [vmem:[#allocation6 + $0x7c0] sm:$0xf]
    %v1892 = vld [vmem:[#allocation6 + $0x7c4] sm:$0xf]
    %v1893 = vld [vmem:[#allocation6 + $0x7c8] sm:$0xf]
    %v1894 = vld [vmem:[#allocation6 + $0x7cc] sm:$0xf]
    %v1895 = vld [vmem:[#allocation6 + $0x7d0] sm:$0xf]
    %v1896 = vld [vmem:[#allocation6 + $0x7d4] sm:$0xf]
    %v1897 = vld [vmem:[#allocation6 + $0x7d8] sm:$0xf]
    %v1898 = vld [vmem:[#allocation6 + $0x7dc] sm:$0xf]
    %v1899 = vld [vmem:[#allocation6 + $0x7e0] sm:$0xf]
    %v1900 = vld [vmem:[#allocation6 + $0x7e4] sm:$0xf]
    %v1901 = vld [vmem:[#allocation6 + $0x7e8] sm:$0xf]
    %v1902 = vld [vmem:[#allocation6 + $0x7ec] sm:$0xf]
    %v1903 = vld [vmem:[#allocation6 + $0x7f0] sm:$0xf]
    %v1904 = vld [vmem:[#allocation6 + $0x7f4] sm:$0xf]
    %v1905 = vld [vmem:[#allocation6 + $0x7f8] sm:$0xf]
    %v1906 = vld [vmem:[#allocation6 + $0x7fc] sm:$0xf]
    %v1971 = vunpack.c.l.b16 %v1331
    %v1972 = vunpack.c.l.b16 %v1332
    %v1973 = vunpack.c.l.b16 %v1333
    %v1974 = vunpack.c.l.b16 %v1334
    %v1975 = vunpack.c.l.b16 %v1335
    %v1976 = vunpack.c.l.b16 %v1336
    %v1977 = vunpack.c.l.b16 %v1337
    %v1978 = vunpack.c.l.b16 %v1338
    %v1979 = vunpack.c.l.b16 %v1339
    %v1980 = vunpack.c.l.b16 %v1340
    %v1981 = vunpack.c.l.b16 %v1341
    %v1982 = vunpack.c.l.b16 %v1342
    %v1983 = vunpack.c.l.b16 %v1343
    %v1984 = vunpack.c.l.b16 %v1344
    %v1985 = vunpack.c.l.b16 %v1345
    %v1986 = vunpack.c.l.b16 %v1346
    %v1987 = vunpack.c.l.b16 %v1347
    %v1988 = vunpack.c.l.b16 %v1348
    %v1989 = vunpack.c.l.b16 %v1349
    %v1990 = vunpack.c.l.b16 %v1350
    %v1991 = vunpack.c.l.b16 %v1351
    %v1992 = vunpack.c.l.b16 %v1352
    %v1993 = vunpack.c.l.b16 %v1353
    %v1994 = vunpack.c.l.b16 %v1354
    %v1995 = vunpack.c.l.b16 %v1355
    %v1996 = vunpack.c.l.b16 %v1356
    %v1997 = vunpack.c.l.b16 %v1357
    %v1998 = vunpack.c.l.b16 %v1358
    %v1999 = vunpack.c.l.b16 %v1359
    %v2000 = vunpack.c.l.b16 %v1360
    %v2001 = vunpack.c.l.b16 %v1361
    %v2002 = vunpack.c.l.b16 %v1362
    %v2003 = vunpack.c.l.b16 %v1363
    %v2004 = vunpack.c.l.b16 %v1364
    %v2005 = vunpack.c.l.b16 %v1365
    %v2006 = vunpack.c.l.b16 %v1366
    %v2007 = vunpack.c.l.b16 %v1367
    %v2008 = vunpack.c.l.b16 %v1368
    %v2009 = vunpack.c.l.b16 %v1369
    %v2010 = vunpack.c.l.b16 %v1370
    %v2011 = vunpack.c.l.b16 %v1371
    %v2012 = vunpack.c.l.b16 %v1372
    %v2013 = vunpack.c.l.b16 %v1373
    %v2014 = vunpack.c.l.b16 %v1374
    %v2015 = vunpack.c.l.b16 %v1375
    %v2016 = vunpack.c.l.b16 %v1376
    %v2017 = vunpack.c.l.b16 %v1377
    %v2018 = vunpack.c.l.b16 %v1378
    %v2019 = vunpack.c.l.b16 %v1379
    %v2020 = vunpack.c.l.b16 %v1380
    %v2021 = vunpack.c.l.b16 %v1381
    %v2022 = vunpack.c.l.b16 %v1382
    %v2023 = vunpack.c.l.b16 %v1383
    %v2024 = vunpack.c.l.b16 %v1384
    %v2025 = vunpack.c.l.b16 %v1385
    %v2026 = vunpack.c.l.b16 %v1386
    %v2027 = vunpack.c.l.b16 %v1387
    %v2028 = vunpack.c.l.b16 %v1388
    %v2029 = vunpack.c.l.b16 %v1389
    %v2030 = vunpack.c.l.b16 %v1390
    %v2031 = vunpack.c.l.b16 %v1391
    %v2032 = vunpack.c.l.b16 %v1392
    %v2033 = vunpack.c.l.b16 %v1393
    %v2034 = vunpack.c.l.b16 %v1394
    %vm2035 = vcmask 1041409
    %v2036 = vsel %vm2035, %v2003, %v1971
    %v2037 = vsel %vm2035, %v2004, %v1972
    %v2038 = vsel %vm2035, %v2005, %v1973
    %v2039 = vsel %vm2035, %v2006, %v1974
    %v2040 = vsel %vm2035, %v2007, %v1975
    %v2041 = vsel %vm2035, %v2008, %v1976
    %v2042 = vsel %vm2035, %v2009, %v1977
    %v2043 = vsel %vm2035, %v2010, %v1978
    %v2044 = vsel %vm2035, %v2011, %v1979
    %v2045 = vsel %vm2035, %v2012, %v1980
    %v2046 = vsel %vm2035, %v2013, %v1981
    %v2047 = vsel %vm2035, %v2014, %v1982
    %v2048 = vsel %vm2035, %v2015, %v1983
    %v2049 = vsel %vm2035, %v2016, %v1984
    %v2050 = vsel %vm2035, %v2017, %v1985
    %v2051 = vsel %vm2035, %v2018, %v1986
    %v2052 = vsel %vm2035, %v2019, %v1987
    %v2053 = vsel %vm2035, %v2020, %v1988
    %v2054 = vsel %vm2035, %v2021, %v1989
    %v2055 = vsel %vm2035, %v2022, %v1990
    %v2056 = vsel %vm2035, %v2023, %v1991
    %v2057 = vsel %vm2035, %v2024, %v1992
    %v2058 = vsel %vm2035, %v2025, %v1993
    %v2059 = vsel %vm2035, %v2026, %v1994
    %v2060 = vsel %vm2035, %v2027, %v1995
    %v2061 = vsel %vm2035, %v2028, %v1996
    %v2062 = vsel %vm2035, %v2029, %v1997
    %v2063 = vsel %vm2035, %v2030, %v1998
    %v2064 = vsel %vm2035, %v2031, %v1999
    %v2065 = vsel %vm2035, %v2032, %v2000
    %v2066 = vsel %vm2035, %v2033, %v2001
    %v2067 = vsel %vm2035, %v2034, %v2002
    %v2068 = vpack.c.b16 %v2036, %v2036
    %v2069 = vpack.c.b16 %v2037, %v2037
    %v2070 = vpack.c.b16 %v2038, %v2038
    %v2071 = vpack.c.b16 %v2039, %v2039
    %v2072 = vpack.c.b16 %v2040, %v2040
    %v2073 = vpack.c.b16 %v2041, %v2041
    %v2074 = vpack.c.b16 %v2042, %v2042
    %v2075 = vpack.c.b16 %v2043, %v2043
    %v2076 = vpack.c.b16 %v2044, %v2044
    %v2077 = vpack.c.b16 %v2045, %v2045
    %v2078 = vpack.c.b16 %v2046, %v2046
    %v2079 = vpack.c.b16 %v2047, %v2047
    %v2080 = vpack.c.b16 %v2048, %v2048
    %v2081 = vpack.c.b16 %v2049, %v2049
    %v2082 = vpack.c.b16 %v2050, %v2050
    %v2083 = vpack.c.b16 %v2051, %v2051
    %v2084 = vpack.c.b16 %v2052, %v2052
    %v2085 = vpack.c.b16 %v2053, %v2053
    %v2086 = vpack.c.b16 %v2054, %v2054
    %v2087 = vpack.c.b16 %v2055, %v2055
    %v2088 = vpack.c.b16 %v2056, %v2056
    %v2089 = vpack.c.b16 %v2057, %v2057
    %v2090 = vpack.c.b16 %v2058, %v2058
    %v2091 = vpack.c.b16 %v2059, %v2059
    %v2092 = vpack.c.b16 %v2060, %v2060
    %v2093 = vpack.c.b16 %v2061, %v2061
    %v2094 = vpack.c.b16 %v2062, %v2062
    %v2095 = vpack.c.b16 %v2063, %v2063
    %v2096 = vpack.c.b16 %v2064, %v2064
    %v2097 = vpack.c.b16 %v2065, %v2065
    %v2098 = vpack.c.b16 %v2066, %v2066
    %v2099 = vpack.c.b16 %v2067, %v2067
    %v2644 = vunpack.c.l.b16 %v1395
    %v2645 = vunpack.c.l.b16 %v1396
    %v2646 = vunpack.c.l.b16 %v1397
    %v2647 = vunpack.c.l.b16 %v1398
    %v2648 = vunpack.c.l.b16 %v1399
    %v2649 = vunpack.c.l.b16 %v1400
    %v2650 = vunpack.c.l.b16 %v1401
    %v2651 = vunpack.c.l.b16 %v1402
    %v2652 = vunpack.c.l.b16 %v1403
    %v2653 = vunpack.c.l.b16 %v1404
    %v2654 = vunpack.c.l.b16 %v1405
    %v2655 = vunpack.c.l.b16 %v1406
    %v2656 = vunpack.c.l.b16 %v1407
    %v2657 = vunpack.c.l.b16 %v1408
    %v2658 = vunpack.c.l.b16 %v1409
    %v2659 = vunpack.c.l.b16 %v1410
    %v2660 = vunpack.c.l.b16 %v1411
    %v2661 = vunpack.c.l.b16 %v1412
    %v2662 = vunpack.c.l.b16 %v1413
    %v2663 = vunpack.c.l.b16 %v1414
    %v2664 = vunpack.c.l.b16 %v1415
    %v2665 = vunpack.c.l.b16 %v1416
    %v2666 = vunpack.c.l.b16 %v1417
    %v2667 = vunpack.c.l.b16 %v1418
    %v2668 = vunpack.c.l.b16 %v1419
    %v2669 = vunpack.c.l.b16 %v1420
    %v2670 = vunpack.c.l.b16 %v1421
    %v2671 = vunpack.c.l.b16 %v1422
    %v2672 = vunpack.c.l.b16 %v1423
    %v2673 = vunpack.c.l.b16 %v1424
    %v2674 = vunpack.c.l.b16 %v1425
    %v2675 = vunpack.c.l.b16 %v1426
    %v2676 = vunpack.c.l.b16 %v1427
    %v2677 = vunpack.c.l.b16 %v1428
    %v2678 = vunpack.c.l.b16 %v1429
    %v2679 = vunpack.c.l.b16 %v1430
    %v2680 = vunpack.c.l.b16 %v1431
    %v2681 = vunpack.c.l.b16 %v1432
    %v2682 = vunpack.c.l.b16 %v1433
    %v2683 = vunpack.c.l.b16 %v1434
    %v2684 = vunpack.c.l.b16 %v1435
    %v2685 = vunpack.c.l.b16 %v1436
    %v2686 = vunpack.c.l.b16 %v1437
    %v2687 = vunpack.c.l.b16 %v1438
    %v2688 = vunpack.c.l.b16 %v1439
    %v2689 = vunpack.c.l.b16 %v1440
    %v2690 = vunpack.c.l.b16 %v1441
    %v2691 = vunpack.c.l.b16 %v1442
    %v2692 = vunpack.c.l.b16 %v1443
    %v2693 = vunpack.c.l.b16 %v1444
    %v2694 = vunpack.c.l.b16 %v1445
    %v2695 = vunpack.c.l.b16 %v1446
    %v2696 = vunpack.c.l.b16 %v1447
    %v2697 = vunpack.c.l.b16 %v1448
    %v2698 = vunpack.c.l.b16 %v1449
    %v2699 = vunpack.c.l.b16 %v1450
    %v2700 = vunpack.c.l.b16 %v1451
    %v2701 = vunpack.c.l.b16 %v1452
    %v2702 = vunpack.c.l.b16 %v1453
    %v2703 = vunpack.c.l.b16 %v1454
    %v2704 = vunpack.c.l.b16 %v1455
    %v2705 = vunpack.c.l.b16 %v1456
    %v2706 = vunpack.c.l.b16 %v1457
    %v2707 = vunpack.c.l.b16 %v1458
    %v2708 = vunpack.c.l.b16 %v1459
    %v2709 = vunpack.c.l.b16 %v1460
    %v2710 = vunpack.c.l.b16 %v1461
    %v2711 = vunpack.c.l.b16 %v1462
    %v2712 = vunpack.c.l.b16 %v1463
    %v2713 = vunpack.c.l.b16 %v1464
    %v2714 = vunpack.c.l.b16 %v1465
    %v2715 = vunpack.c.l.b16 %v1466
    %v2716 = vunpack.c.l.b16 %v1467
    %v2717 = vunpack.c.l.b16 %v1468
    %v2718 = vunpack.c.l.b16 %v1469
    %v2719 = vunpack.c.l.b16 %v1470
    %v2720 = vunpack.c.l.b16 %v1471
    %v2721 = vunpack.c.l.b16 %v1472
    %v2722 = vunpack.c.l.b16 %v1473
    %v2723 = vunpack.c.l.b16 %v1474
    %v2724 = vunpack.c.l.b16 %v1475
    %v2725 = vunpack.c.l.b16 %v1476
    %v2726 = vunpack.c.l.b16 %v1477
    %v2727 = vunpack.c.l.b16 %v1478
    %v2728 = vunpack.c.l.b16 %v1479
    %v2729 = vunpack.c.l.b16 %v1480
    %v2730 = vunpack.c.l.b16 %v1481
    %v2731 = vunpack.c.l.b16 %v1482
    %v2732 = vunpack.c.l.b16 %v1483
    %v2733 = vunpack.c.l.b16 %v1484
    %v2734 = vunpack.c.l.b16 %v1485
    %v2735 = vunpack.c.l.b16 %v1486
    %v2736 = vunpack.c.l.b16 %v1487
    %v2737 = vunpack.c.l.b16 %v1488
    %v2738 = vunpack.c.l.b16 %v1489
    %v2739 = vunpack.c.l.b16 %v1490
    %v2740 = vunpack.c.l.b16 %v1491
    %v2741 = vunpack.c.l.b16 %v1492
    %v2742 = vunpack.c.l.b16 %v1493
    %v2743 = vunpack.c.l.b16 %v1494
    %v2744 = vunpack.c.l.b16 %v1495
    %v2745 = vunpack.c.l.b16 %v1496
    %v2746 = vunpack.c.l.b16 %v1497
    %v2747 = vunpack.c.l.b16 %v1498
    %v2748 = vunpack.c.l.b16 %v1499
    %v2749 = vunpack.c.l.b16 %v1500
    %v2750 = vunpack.c.l.b16 %v1501
    %v2751 = vunpack.c.l.b16 %v1502
    %v2752 = vunpack.c.l.b16 %v1503
    %v2753 = vunpack.c.l.b16 %v1504
    %v2754 = vunpack.c.l.b16 %v1505
    %v2755 = vunpack.c.l.b16 %v1506
    %v2756 = vunpack.c.l.b16 %v1507
    %v2757 = vunpack.c.l.b16 %v1508
    %v2758 = vunpack.c.l.b16 %v1509
    %v2759 = vunpack.c.l.b16 %v1510
    %v2760 = vunpack.c.l.b16 %v1511
    %v2761 = vunpack.c.l.b16 %v1512
    %v2762 = vunpack.c.l.b16 %v1513
    %v2763 = vunpack.c.l.b16 %v1514
    %v2764 = vunpack.c.l.b16 %v1515
    %v2765 = vunpack.c.l.b16 %v1516
    %v2766 = vunpack.c.l.b16 %v1517
    %v2767 = vunpack.c.l.b16 %v1518
    %v2768 = vunpack.c.l.b16 %v1519
    %v2769 = vunpack.c.l.b16 %v1520
    %v2770 = vunpack.c.l.b16 %v1521
    %v2771 = vunpack.c.l.b16 %v1522
    %v2772 = vunpack.c.l.b16 %v1523
    %v2773 = vunpack.c.l.b16 %v1524
    %v2774 = vunpack.c.l.b16 %v1525
    %v2775 = vunpack.c.l.b16 %v1526
    %v2776 = vunpack.c.l.b16 %v1527
    %v2777 = vunpack.c.l.b16 %v1528
    %v2778 = vunpack.c.l.b16 %v1529
    %v2779 = vunpack.c.l.b16 %v1530
    %v2780 = vunpack.c.l.b16 %v1531
    %v2781 = vunpack.c.l.b16 %v1532
    %v2782 = vunpack.c.l.b16 %v1533
    %v2783 = vunpack.c.l.b16 %v1534
    %v2784 = vunpack.c.l.b16 %v1535
    %v2785 = vunpack.c.l.b16 %v1536
    %v2786 = vunpack.c.l.b16 %v1537
    %v2787 = vunpack.c.l.b16 %v1538
    %v2788 = vunpack.c.l.b16 %v1539
    %v2789 = vunpack.c.l.b16 %v1540
    %v2790 = vunpack.c.l.b16 %v1541
    %v2791 = vunpack.c.l.b16 %v1542
    %v2792 = vunpack.c.l.b16 %v1543
    %v2793 = vunpack.c.l.b16 %v1544
    %v2794 = vunpack.c.l.b16 %v1545
    %v2795 = vunpack.c.l.b16 %v1546
    %v2796 = vunpack.c.l.b16 %v1547
    %v2797 = vunpack.c.l.b16 %v1548
    %v2798 = vunpack.c.l.b16 %v1549
    %v2799 = vunpack.c.l.b16 %v1550
    %v2800 = vunpack.c.l.b16 %v1551
    %v2801 = vunpack.c.l.b16 %v1552
    %v2802 = vunpack.c.l.b16 %v1553
    %v2803 = vunpack.c.l.b16 %v1554
    %v2804 = vunpack.c.l.b16 %v1555
    %v2805 = vunpack.c.l.b16 %v1556
    %v2806 = vunpack.c.l.b16 %v1557
    %v2807 = vunpack.c.l.b16 %v1558
    %v2808 = vunpack.c.l.b16 %v1559
    %v2809 = vunpack.c.l.b16 %v1560
    %v2810 = vunpack.c.l.b16 %v1561
    %v2811 = vunpack.c.l.b16 %v1562
    %v2812 = vunpack.c.l.b16 %v1563
    %v2813 = vunpack.c.l.b16 %v1564
    %v2814 = vunpack.c.l.b16 %v1565
    %v2815 = vunpack.c.l.b16 %v1566
    %v2816 = vunpack.c.l.b16 %v1567
    %v2817 = vunpack.c.l.b16 %v1568
    %v2818 = vunpack.c.l.b16 %v1569
    %v2819 = vunpack.c.l.b16 %v1570
    %v2820 = vunpack.c.l.b16 %v1571
    %v2821 = vunpack.c.l.b16 %v1572
    %v2822 = vunpack.c.l.b16 %v1573
    %v2823 = vunpack.c.l.b16 %v1574
    %v2824 = vunpack.c.l.b16 %v1575
    %v2825 = vunpack.c.l.b16 %v1576
    %v2826 = vunpack.c.l.b16 %v1577
    %v2827 = vunpack.c.l.b16 %v1578
    %v2828 = vunpack.c.l.b16 %v1579
    %v2829 = vunpack.c.l.b16 %v1580
    %v2830 = vunpack.c.l.b16 %v1581
    %v2831 = vunpack.c.l.b16 %v1582
    %v2832 = vunpack.c.l.b16 %v1583
    %v2833 = vunpack.c.l.b16 %v1584
    %v2834 = vunpack.c.l.b16 %v1585
    %v2835 = vunpack.c.l.b16 %v1586
    %v2836 = vunpack.c.l.b16 %v1587
    %v2837 = vunpack.c.l.b16 %v1588
    %v2838 = vunpack.c.l.b16 %v1589
    %v2839 = vunpack.c.l.b16 %v1590
    %v2840 = vunpack.c.l.b16 %v1591
    %v2841 = vunpack.c.l.b16 %v1592
    %v2842 = vunpack.c.l.b16 %v1593
    %v2843 = vunpack.c.l.b16 %v1594
    %v2844 = vunpack.c.l.b16 %v1595
    %v2845 = vunpack.c.l.b16 %v1596
    %v2846 = vunpack.c.l.b16 %v1597
    %v2847 = vunpack.c.l.b16 %v1598
    %v2848 = vunpack.c.l.b16 %v1599
    %v2849 = vunpack.c.l.b16 %v1600
    %v2850 = vunpack.c.l.b16 %v1601
    %v2851 = vunpack.c.l.b16 %v1602
    %v2852 = vunpack.c.l.b16 %v1603
    %v2853 = vunpack.c.l.b16 %v1604
    %v2854 = vunpack.c.l.b16 %v1605
    %v2855 = vunpack.c.l.b16 %v1606
    %v2856 = vunpack.c.l.b16 %v1607
    %v2857 = vunpack.c.l.b16 %v1608
    %v2858 = vunpack.c.l.b16 %v1609
    %v2859 = vunpack.c.l.b16 %v1610
    %v2860 = vunpack.c.l.b16 %v1611
    %v2861 = vunpack.c.l.b16 %v1612
    %v2862 = vunpack.c.l.b16 %v1613
    %v2863 = vunpack.c.l.b16 %v1614
    %v2864 = vunpack.c.l.b16 %v1615
    %v2865 = vunpack.c.l.b16 %v1616
    %v2866 = vunpack.c.l.b16 %v1617
    %v2867 = vunpack.c.l.b16 %v1618
    %v2868 = vunpack.c.l.b16 %v1619
    %v2869 = vunpack.c.l.b16 %v1620
    %v2870 = vunpack.c.l.b16 %v1621
    %v2871 = vunpack.c.l.b16 %v1622
    %v2872 = vunpack.c.l.b16 %v1623
    %v2873 = vunpack.c.l.b16 %v1624
    %v2874 = vunpack.c.l.b16 %v1625
    %v2875 = vunpack.c.l.b16 %v1626
    %v2876 = vunpack.c.l.b16 %v1627
    %v2877 = vunpack.c.l.b16 %v1628
    %v2878 = vunpack.c.l.b16 %v1629
    %v2879 = vunpack.c.l.b16 %v1630
    %v2880 = vunpack.c.l.b16 %v1631
    %v2881 = vunpack.c.l.b16 %v1632
    %v2882 = vunpack.c.l.b16 %v1633
    %v2883 = vunpack.c.l.b16 %v1634
    %v2884 = vunpack.c.l.b16 %v1635
    %v2885 = vunpack.c.l.b16 %v1636
    %v2886 = vunpack.c.l.b16 %v1637
    %v2887 = vunpack.c.l.b16 %v1638
    %v2888 = vunpack.c.l.b16 %v1639
    %v2889 = vunpack.c.l.b16 %v1640
    %v2890 = vunpack.c.l.b16 %v1641
    %v2891 = vunpack.c.l.b16 %v1642
    %v2892 = vunpack.c.l.b16 %v1643
    %v2893 = vunpack.c.l.b16 %v1644
    %v2894 = vunpack.c.l.b16 %v1645
    %v2895 = vunpack.c.l.b16 %v1646
    %v2896 = vunpack.c.l.b16 %v1647
    %v2897 = vunpack.c.l.b16 %v1648
    %v2898 = vunpack.c.l.b16 %v1649
    %v2899 = vunpack.c.l.b16 %v1650
    %v2900 = vunpack.c.l.b16 %v1651
    %v2901 = vunpack.c.l.b16 %v1652
    %v2902 = vunpack.c.l.b16 %v1653
    %v2903 = vunpack.c.l.b16 %v1654
    %v2904 = vunpack.c.l.b16 %v1655
    %v2905 = vunpack.c.l.b16 %v1656
    %v2906 = vunpack.c.l.b16 %v1657
    %v2907 = vunpack.c.l.b16 %v1658
    %v2908 = vunpack.c.l.b16 %v1659
    %v2909 = vunpack.c.l.b16 %v1660
    %v2910 = vunpack.c.l.b16 %v1661
    %v2911 = vunpack.c.l.b16 %v1662
    %v2912 = vunpack.c.l.b16 %v1663
    %v2913 = vunpack.c.l.b16 %v1664
    %v2914 = vunpack.c.l.b16 %v1665
    %v2915 = vunpack.c.l.b16 %v1666
    %v2916 = vunpack.c.l.b16 %v1667
    %v2917 = vunpack.c.l.b16 %v1668
    %v2918 = vunpack.c.l.b16 %v1669
    %v2919 = vunpack.c.l.b16 %v1670
    %v2920 = vunpack.c.l.b16 %v1671
    %v2921 = vunpack.c.l.b16 %v1672
    %v2922 = vunpack.c.l.b16 %v1673
    %v2923 = vunpack.c.l.b16 %v1674
    %v2924 = vunpack.c.l.b16 %v1675
    %v2925 = vunpack.c.l.b16 %v1676
    %v2926 = vunpack.c.l.b16 %v1677
    %v2927 = vunpack.c.l.b16 %v1678
    %v2928 = vunpack.c.l.b16 %v1679
    %v2929 = vunpack.c.l.b16 %v1680
    %v2930 = vunpack.c.l.b16 %v1681
    %v2931 = vunpack.c.l.b16 %v1682
    %v2932 = vunpack.c.l.b16 %v1683
    %v2933 = vunpack.c.l.b16 %v1684
    %v2934 = vunpack.c.l.b16 %v1685
    %v2935 = vunpack.c.l.b16 %v1686
    %v2936 = vunpack.c.l.b16 %v1687
    %v2937 = vunpack.c.l.b16 %v1688
    %v2938 = vunpack.c.l.b16 %v1689
    %v2939 = vunpack.c.l.b16 %v1690
    %v2940 = vunpack.c.l.b16 %v1691
    %v2941 = vunpack.c.l.b16 %v1692
    %v2942 = vunpack.c.l.b16 %v1693
    %v2943 = vunpack.c.l.b16 %v1694
    %v2944 = vunpack.c.l.b16 %v1695
    %v2945 = vunpack.c.l.b16 %v1696
    %v2946 = vunpack.c.l.b16 %v1697
    %v2947 = vunpack.c.l.b16 %v1698
    %v2948 = vunpack.c.l.b16 %v1699
    %v2949 = vunpack.c.l.b16 %v1700
    %v2950 = vunpack.c.l.b16 %v1701
    %v2951 = vunpack.c.l.b16 %v1702
    %v2952 = vunpack.c.l.b16 %v1703
    %v2953 = vunpack.c.l.b16 %v1704
    %v2954 = vunpack.c.l.b16 %v1705
    %v2955 = vunpack.c.l.b16 %v1706
    %v2956 = vunpack.c.l.b16 %v1707
    %v2957 = vunpack.c.l.b16 %v1708
    %v2958 = vunpack.c.l.b16 %v1709
    %v2959 = vunpack.c.l.b16 %v1710
    %v2960 = vunpack.c.l.b16 %v1711
    %v2961 = vunpack.c.l.b16 %v1712
    %v2962 = vunpack.c.l.b16 %v1713
    %v2963 = vunpack.c.l.b16 %v1714
    %v2964 = vunpack.c.l.b16 %v1715
    %v2965 = vunpack.c.l.b16 %v1716
    %v2966 = vunpack.c.l.b16 %v1717
    %v2967 = vunpack.c.l.b16 %v1718
    %v2968 = vunpack.c.l.b16 %v1719
    %v2969 = vunpack.c.l.b16 %v1720
    %v2970 = vunpack.c.l.b16 %v1721
    %v2971 = vunpack.c.l.b16 %v1722
    %v2972 = vunpack.c.l.b16 %v1723
    %v2973 = vunpack.c.l.b16 %v1724
    %v2974 = vunpack.c.l.b16 %v1725
    %v2975 = vunpack.c.l.b16 %v1726
    %v2976 = vunpack.c.l.b16 %v1727
    %v2977 = vunpack.c.l.b16 %v1728
    %v2978 = vunpack.c.l.b16 %v1729
    %v2979 = vunpack.c.l.b16 %v1730
    %v2980 = vunpack.c.l.b16 %v1731
    %v2981 = vunpack.c.l.b16 %v1732
    %v2982 = vunpack.c.l.b16 %v1733
    %v2983 = vunpack.c.l.b16 %v1734
    %v2984 = vunpack.c.l.b16 %v1735
    %v2985 = vunpack.c.l.b16 %v1736
    %v2986 = vunpack.c.l.b16 %v1737
    %v2987 = vunpack.c.l.b16 %v1738
    %v2988 = vunpack.c.l.b16 %v1739
    %v2989 = vunpack.c.l.b16 %v1740
    %v2990 = vunpack.c.l.b16 %v1741
    %v2991 = vunpack.c.l.b16 %v1742
    %v2992 = vunpack.c.l.b16 %v1743
    %v2993 = vunpack.c.l.b16 %v1744
    %v2994 = vunpack.c.l.b16 %v1745
    %v2995 = vunpack.c.l.b16 %v1746
    %v2996 = vunpack.c.l.b16 %v1747
    %v2997 = vunpack.c.l.b16 %v1748
    %v2998 = vunpack.c.l.b16 %v1749
    %v2999 = vunpack.c.l.b16 %v1750
    %v3000 = vunpack.c.l.b16 %v1751
    %v3001 = vunpack.c.l.b16 %v1752
    %v3002 = vunpack.c.l.b16 %v1753
    %v3003 = vunpack.c.l.b16 %v1754
    %v3004 = vunpack.c.l.b16 %v1755
    %v3005 = vunpack.c.l.b16 %v1756
    %v3006 = vunpack.c.l.b16 %v1757
    %v3007 = vunpack.c.l.b16 %v1758
    %v3008 = vunpack.c.l.b16 %v1759
    %v3009 = vunpack.c.l.b16 %v1760
    %v3010 = vunpack.c.l.b16 %v1761
    %v3011 = vunpack.c.l.b16 %v1762
    %v3012 = vunpack.c.l.b16 %v1763
    %v3013 = vunpack.c.l.b16 %v1764
    %v3014 = vunpack.c.l.b16 %v1765
    %v3015 = vunpack.c.l.b16 %v1766
    %v3016 = vunpack.c.l.b16 %v1767
    %v3017 = vunpack.c.l.b16 %v1768
    %v3018 = vunpack.c.l.b16 %v1769
    %v3019 = vunpack.c.l.b16 %v1770
    %v3020 = vunpack.c.l.b16 %v1771
    %v3021 = vunpack.c.l.b16 %v1772
    %v3022 = vunpack.c.l.b16 %v1773
    %v3023 = vunpack.c.l.b16 %v1774
    %v3024 = vunpack.c.l.b16 %v1775
    %v3025 = vunpack.c.l.b16 %v1776
    %v3026 = vunpack.c.l.b16 %v1777
    %v3027 = vunpack.c.l.b16 %v1778
    %v3028 = vunpack.c.l.b16 %v1779
    %v3029 = vunpack.c.l.b16 %v1780
    %v3030 = vunpack.c.l.b16 %v1781
    %v3031 = vunpack.c.l.b16 %v1782
    %v3032 = vunpack.c.l.b16 %v1783
    %v3033 = vunpack.c.l.b16 %v1784
    %v3034 = vunpack.c.l.b16 %v1785
    %v3035 = vunpack.c.l.b16 %v1786
    %v3036 = vunpack.c.l.b16 %v1787
    %v3037 = vunpack.c.l.b16 %v1788
    %v3038 = vunpack.c.l.b16 %v1789
    %v3039 = vunpack.c.l.b16 %v1790
    %v3040 = vunpack.c.l.b16 %v1791
    %v3041 = vunpack.c.l.b16 %v1792
    %v3042 = vunpack.c.l.b16 %v1793
    %v3043 = vunpack.c.l.b16 %v1794
    %v3044 = vunpack.c.l.b16 %v1795
    %v3045 = vunpack.c.l.b16 %v1796
    %v3046 = vunpack.c.l.b16 %v1797
    %v3047 = vunpack.c.l.b16 %v1798
    %v3048 = vunpack.c.l.b16 %v1799
    %v3049 = vunpack.c.l.b16 %v1800
    %v3050 = vunpack.c.l.b16 %v1801
    %v3051 = vunpack.c.l.b16 %v1802
    %v3052 = vunpack.c.l.b16 %v1803
    %v3053 = vunpack.c.l.b16 %v1804
    %v3054 = vunpack.c.l.b16 %v1805
    %v3055 = vunpack.c.l.b16 %v1806
    %v3056 = vunpack.c.l.b16 %v1807
    %v3057 = vunpack.c.l.b16 %v1808
    %v3058 = vunpack.c.l.b16 %v1809
    %v3059 = vunpack.c.l.b16 %v1810
    %v3060 = vunpack.c.l.b16 %v1811
    %v3061 = vunpack.c.l.b16 %v1812
    %v3062 = vunpack.c.l.b16 %v1813
    %v3063 = vunpack.c.l.b16 %v1814
    %v3064 = vunpack.c.l.b16 %v1815
    %v3065 = vunpack.c.l.b16 %v1816
    %v3066 = vunpack.c.l.b16 %v1817
    %v3067 = vunpack.c.l.b16 %v1818
    %v3068 = vunpack.c.l.b16 %v1819
    %v3069 = vunpack.c.l.b16 %v1820
    %v3070 = vunpack.c.l.b16 %v1821
    %v3071 = vunpack.c.l.b16 %v1822
    %v3072 = vunpack.c.l.b16 %v1823
    %v3073 = vunpack.c.l.b16 %v1824
    %v3074 = vunpack.c.l.b16 %v1825
    %v3075 = vunpack.c.l.b16 %v1826
    %v3076 = vunpack.c.l.b16 %v1827
    %v3077 = vunpack.c.l.b16 %v1828
    %v3078 = vunpack.c.l.b16 %v1829
    %v3079 = vunpack.c.l.b16 %v1830
    %v3080 = vunpack.c.l.b16 %v1831
    %v3081 = vunpack.c.l.b16 %v1832
    %v3082 = vunpack.c.l.b16 %v1833
    %v3083 = vunpack.c.l.b16 %v1834
    %v3084 = vunpack.c.l.b16 %v1835
    %v3085 = vunpack.c.l.b16 %v1836
    %v3086 = vunpack.c.l.b16 %v1837
    %v3087 = vunpack.c.l.b16 %v1838
    %v3088 = vunpack.c.l.b16 %v1839
    %v3089 = vunpack.c.l.b16 %v1840
    %v3090 = vunpack.c.l.b16 %v1841
    %v3091 = vunpack.c.l.b16 %v1842
    %v3092 = vunpack.c.l.b16 %v1843
    %v3093 = vunpack.c.l.b16 %v1844
    %v3094 = vunpack.c.l.b16 %v1845
    %v3095 = vunpack.c.l.b16 %v1846
    %v3096 = vunpack.c.l.b16 %v1847
    %v3097 = vunpack.c.l.b16 %v1848
    %v3098 = vunpack.c.l.b16 %v1849
    %v3099 = vunpack.c.l.b16 %v1850
    %v3100 = vunpack.c.l.b16 %v1851
    %v3101 = vunpack.c.l.b16 %v1852
    %v3102 = vunpack.c.l.b16 %v1853
    %v3103 = vunpack.c.l.b16 %v1854
    %v3104 = vunpack.c.l.b16 %v1855
    %v3105 = vunpack.c.l.b16 %v1856
    %v3106 = vunpack.c.l.b16 %v1857
    %v3107 = vunpack.c.l.b16 %v1858
    %v3108 = vunpack.c.l.b16 %v1859
    %v3109 = vunpack.c.l.b16 %v1860
    %v3110 = vunpack.c.l.b16 %v1861
    %v3111 = vunpack.c.l.b16 %v1862
    %v3112 = vunpack.c.l.b16 %v1863
    %v3113 = vunpack.c.l.b16 %v1864
    %v3114 = vunpack.c.l.b16 %v1865
    %v3115 = vunpack.c.l.b16 %v1866
    %v3116 = vunpack.c.l.b16 %v1867
    %v3117 = vunpack.c.l.b16 %v1868
    %v3118 = vunpack.c.l.b16 %v1869
    %v3119 = vunpack.c.l.b16 %v1870
    %v3120 = vunpack.c.l.b16 %v1871
    %v3121 = vunpack.c.l.b16 %v1872
    %v3122 = vunpack.c.l.b16 %v1873
    %v3123 = vunpack.c.l.b16 %v1874
    %v3124 = vunpack.c.l.b16 %v1875
    %v3125 = vunpack.c.l.b16 %v1876
    %v3126 = vunpack.c.l.b16 %v1877
    %v3127 = vunpack.c.l.b16 %v1878
    %v3128 = vunpack.c.l.b16 %v1879
    %v3129 = vunpack.c.l.b16 %v1880
    %v3130 = vunpack.c.l.b16 %v1881
    %v3131 = vunpack.c.l.b16 %v1882
    %v3132 = vunpack.c.l.b16 %v1883
    %v3133 = vunpack.c.l.b16 %v1884
    %v3134 = vunpack.c.l.b16 %v1885
    %v3135 = vunpack.c.l.b16 %v1886
    %v3136 = vunpack.c.l.b16 %v1887
    %v3137 = vunpack.c.l.b16 %v1888
    %v3138 = vunpack.c.l.b16 %v1889
    %v3139 = vunpack.c.l.b16 %v1890
    %v3140 = vunpack.c.l.b16 %v1891
    %v3141 = vunpack.c.l.b16 %v1892
    %v3142 = vunpack.c.l.b16 %v1893
    %v3143 = vunpack.c.l.b16 %v1894
    %v3144 = vunpack.c.l.b16 %v1895
    %v3145 = vunpack.c.l.b16 %v1896
    %v3146 = vunpack.c.l.b16 %v1897
    %v3147 = vunpack.c.l.b16 %v1898
    %v3148 = vunpack.c.l.b16 %v1899
    %v3149 = vunpack.c.l.b16 %v1900
    %v3150 = vunpack.c.l.b16 %v1901
    %v3151 = vunpack.c.l.b16 %v1902
    %v3152 = vunpack.c.l.b16 %v1903
    %v3153 = vunpack.c.l.b16 %v1904
    %v3154 = vunpack.c.l.b16 %v1905
    %v3155 = vunpack.c.l.b16 %v1906
    %v3156 = vpack.c.b16 %v2645, %v2644
    %v3157 = vpack.c.b16 %v2647, %v2646
    %v3158 = vpack.c.b16 %v2649, %v2648
    %v3159 = vpack.c.b16 %v2651, %v2650
    %v3160 = vpack.c.b16 %v2653, %v2652
    %v3161 = vpack.c.b16 %v2655, %v2654
    %v3162 = vpack.c.b16 %v2657, %v2656
    %v3163 = vpack.c.b16 %v2659, %v2658
    %v3164 = vpack.c.b16 %v2661, %v2660
    %v3165 = vpack.c.b16 %v2663, %v2662
    %v3166 = vpack.c.b16 %v2665, %v2664
    %v3167 = vpack.c.b16 %v2667, %v2666
    %v3168 = vpack.c.b16 %v2669, %v2668
    %v3169 = vpack.c.b16 %v2671, %v2670
    %v3170 = vpack.c.b16 %v2673, %v2672
    %v3171 = vpack.c.b16 %v2675, %v2674
    %v3172 = vpack.c.b16 %v2677, %v2676
    %v3173 = vpack.c.b16 %v2679, %v2678
    %v3174 = vpack.c.b16 %v2681, %v2680
    %v3175 = vpack.c.b16 %v2683, %v2682
    %v3176 = vpack.c.b16 %v2685, %v2684
    %v3177 = vpack.c.b16 %v2687, %v2686
    %v3178 = vpack.c.b16 %v2689, %v2688
    %v3179 = vpack.c.b16 %v2691, %v2690
    %v3180 = vpack.c.b16 %v2693, %v2692
    %v3181 = vpack.c.b16 %v2695, %v2694
    %v3182 = vpack.c.b16 %v2697, %v2696
    %v3183 = vpack.c.b16 %v2699, %v2698
    %v3184 = vpack.c.b16 %v2701, %v2700
    %v3185 = vpack.c.b16 %v2703, %v2702
    %v3186 = vpack.c.b16 %v2705, %v2704
    %v3187 = vpack.c.b16 %v2707, %v2706
    %v3188 = vpack.c.b16 %v2709, %v2708
    %v3189 = vpack.c.b16 %v2711, %v2710
    %v3190 = vpack.c.b16 %v2713, %v2712
    %v3191 = vpack.c.b16 %v2715, %v2714
    %v3192 = vpack.c.b16 %v2717, %v2716
    %v3193 = vpack.c.b16 %v2719, %v2718
    %v3194 = vpack.c.b16 %v2721, %v2720
    %v3195 = vpack.c.b16 %v2723, %v2722
    %v3196 = vpack.c.b16 %v2725, %v2724
    %v3197 = vpack.c.b16 %v2727, %v2726
    %v3198 = vpack.c.b16 %v2729, %v2728
    %v3199 = vpack.c.b16 %v2731, %v2730
    %v3200 = vpack.c.b16 %v2733, %v2732
    %v3201 = vpack.c.b16 %v2735, %v2734
    %v3202 = vpack.c.b16 %v2737, %v2736
    %v3203 = vpack.c.b16 %v2739, %v2738
    %v3204 = vpack.c.b16 %v2741, %v2740
    %v3205 = vpack.c.b16 %v2743, %v2742
    %v3206 = vpack.c.b16 %v2745, %v2744
    %v3207 = vpack.c.b16 %v2747, %v2746
    %v3208 = vpack.c.b16 %v2749, %v2748
    %v3209 = vpack.c.b16 %v2751, %v2750
    %v3210 = vpack.c.b16 %v2753, %v2752
    %v3211 = vpack.c.b16 %v2755, %v2754
    %v3212 = vpack.c.b16 %v2757, %v2756
    %v3213 = vpack.c.b16 %v2759, %v2758
    %v3214 = vpack.c.b16 %v2761, %v2760
    %v3215 = vpack.c.b16 %v2763, %v2762
    %v3216 = vpack.c.b16 %v2765, %v2764
    %v3217 = vpack.c.b16 %v2767, %v2766
    %v3218 = vpack.c.b16 %v2769, %v2768
    %v3219 = vpack.c.b16 %v2771, %v2770
    %v3220 = vpack.c.b16 %v2773, %v2772
    %v3221 = vpack.c.b16 %v2775, %v2774
    %v3222 = vpack.c.b16 %v2777, %v2776
    %v3223 = vpack.c.b16 %v2779, %v2778
    %v3224 = vpack.c.b16 %v2781, %v2780
    %v3225 = vpack.c.b16 %v2783, %v2782
    %v3226 = vpack.c.b16 %v2785, %v2784
    %v3227 = vpack.c.b16 %v2787, %v2786
    %v3228 = vpack.c.b16 %v2789, %v2788
    %v3229 = vpack.c.b16 %v2791, %v2790
    %v3230 = vpack.c.b16 %v2793, %v2792
    %v3231 = vpack.c.b16 %v2795, %v2794
    %v3232 = vpack.c.b16 %v2797, %v2796
    %v3233 = vpack.c.b16 %v2799, %v2798
    %v3234 = vpack.c.b16 %v2801, %v2800
    %v3235 = vpack.c.b16 %v2803, %v2802
    %v3236 = vpack.c.b16 %v2805, %v2804
    %v3237 = vpack.c.b16 %v2807, %v2806
    %v3238 = vpack.c.b16 %v2809, %v2808
    %v3239 = vpack.c.b16 %v2811, %v2810
    %v3240 = vpack.c.b16 %v2813, %v2812
    %v3241 = vpack.c.b16 %v2815, %v2814
    %v3242 = vpack.c.b16 %v2817, %v2816
    %v3243 = vpack.c.b16 %v2819, %v2818
    %v3244 = vpack.c.b16 %v2821, %v2820
    %v3245 = vpack.c.b16 %v2823, %v2822
    %v3246 = vpack.c.b16 %v2825, %v2824
    %v3247 = vpack.c.b16 %v2827, %v2826
    %v3248 = vpack.c.b16 %v2829, %v2828
    %v3249 = vpack.c.b16 %v2831, %v2830
    %v3250 = vpack.c.b16 %v2833, %v2832
    %v3251 = vpack.c.b16 %v2835, %v2834
    %v3252 = vpack.c.b16 %v2837, %v2836
    %v3253 = vpack.c.b16 %v2839, %v2838
    %v3254 = vpack.c.b16 %v2841, %v2840
    %v3255 = vpack.c.b16 %v2843, %v2842
    %v3256 = vpack.c.b16 %v2845, %v2844
    %v3257 = vpack.c.b16 %v2847, %v2846
    %v3258 = vpack.c.b16 %v2849, %v2848
    %v3259 = vpack.c.b16 %v2851, %v2850
    %v3260 = vpack.c.b16 %v2853, %v2852
    %v3261 = vpack.c.b16 %v2855, %v2854
    %v3262 = vpack.c.b16 %v2857, %v2856
    %v3263 = vpack.c.b16 %v2859, %v2858
    %v3264 = vpack.c.b16 %v2861, %v2860
    %v3265 = vpack.c.b16 %v2863, %v2862
    %v3266 = vpack.c.b16 %v2865, %v2864
    %v3267 = vpack.c.b16 %v2867, %v2866
    %v3268 = vpack.c.b16 %v2869, %v2868
    %v3269 = vpack.c.b16 %v2871, %v2870
    %v3270 = vpack.c.b16 %v2873, %v2872
    %v3271 = vpack.c.b16 %v2875, %v2874
    %v3272 = vpack.c.b16 %v2877, %v2876
    %v3273 = vpack.c.b16 %v2879, %v2878
    %v3274 = vpack.c.b16 %v2881, %v2880
    %v3275 = vpack.c.b16 %v2883, %v2882
    %v3276 = vpack.c.b16 %v2885, %v2884
    %v3277 = vpack.c.b16 %v2887, %v2886
    %v3278 = vpack.c.b16 %v2889, %v2888
    %v3279 = vpack.c.b16 %v2891, %v2890
    %v3280 = vpack.c.b16 %v2893, %v2892
    %v3281 = vpack.c.b16 %v2895, %v2894
    %v3282 = vpack.c.b16 %v2897, %v2896
    %v3283 = vpack.c.b16 %v2899, %v2898
    %v3284 = vpack.c.b16 %v2901, %v2900
    %v3285 = vpack.c.b16 %v2903, %v2902
    %v3286 = vpack.c.b16 %v2905, %v2904
    %v3287 = vpack.c.b16 %v2907, %v2906
    %v3288 = vpack.c.b16 %v2909, %v2908
    %v3289 = vpack.c.b16 %v2911, %v2910
    %v3290 = vpack.c.b16 %v2913, %v2912
    %v3291 = vpack.c.b16 %v2915, %v2914
    %v3292 = vpack.c.b16 %v2917, %v2916
    %v3293 = vpack.c.b16 %v2919, %v2918
    %v3294 = vpack.c.b16 %v2921, %v2920
    %v3295 = vpack.c.b16 %v2923, %v2922
    %v3296 = vpack.c.b16 %v2925, %v2924
    %v3297 = vpack.c.b16 %v2927, %v2926
    %v3298 = vpack.c.b16 %v2929, %v2928
    %v3299 = vpack.c.b16 %v2931, %v2930
    %v3300 = vpack.c.b16 %v2933, %v2932
    %v3301 = vpack.c.b16 %v2935, %v2934
    %v3302 = vpack.c.b16 %v2937, %v2936
    %v3303 = vpack.c.b16 %v2939, %v2938
    %v3304 = vpack.c.b16 %v2941, %v2940
    %v3305 = vpack.c.b16 %v2943, %v2942
    %v3306 = vpack.c.b16 %v2945, %v2944
    %v3307 = vpack.c.b16 %v2947, %v2946
    %v3308 = vpack.c.b16 %v2949, %v2948
    %v3309 = vpack.c.b16 %v2951, %v2950
    %v3310 = vpack.c.b16 %v2953, %v2952
    %v3311 = vpack.c.b16 %v2955, %v2954
    %v3312 = vpack.c.b16 %v2957, %v2956
    %v3313 = vpack.c.b16 %v2959, %v2958
    %v3314 = vpack.c.b16 %v2961, %v2960
    %v3315 = vpack.c.b16 %v2963, %v2962
    %v3316 = vpack.c.b16 %v2965, %v2964
    %v3317 = vpack.c.b16 %v2967, %v2966
    %v3318 = vpack.c.b16 %v2969, %v2968
    %v3319 = vpack.c.b16 %v2971, %v2970
    %v3320 = vpack.c.b16 %v2973, %v2972
    %v3321 = vpack.c.b16 %v2975, %v2974
    %v3322 = vpack.c.b16 %v2977, %v2976
    %v3323 = vpack.c.b16 %v2979, %v2978
    %v3324 = vpack.c.b16 %v2981, %v2980
    %v3325 = vpack.c.b16 %v2983, %v2982
    %v3326 = vpack.c.b16 %v2985, %v2984
    %v3327 = vpack.c.b16 %v2987, %v2986
    %v3328 = vpack.c.b16 %v2989, %v2988
    %v3329 = vpack.c.b16 %v2991, %v2990
    %v3330 = vpack.c.b16 %v2993, %v2992
    %v3331 = vpack.c.b16 %v2995, %v2994
    %v3332 = vpack.c.b16 %v2997, %v2996
    %v3333 = vpack.c.b16 %v2999, %v2998
    %v3334 = vpack.c.b16 %v3001, %v3000
    %v3335 = vpack.c.b16 %v3003, %v3002
    %v3336 = vpack.c.b16 %v3005, %v3004
    %v3337 = vpack.c.b16 %v3007, %v3006
    %v3338 = vpack.c.b16 %v3009, %v3008
    %v3339 = vpack.c.b16 %v3011, %v3010
    %v3340 = vpack.c.b16 %v3013, %v3012
    %v3341 = vpack.c.b16 %v3015, %v3014
    %v3342 = vpack.c.b16 %v3017, %v3016
    %v3343 = vpack.c.b16 %v3019, %v3018
    %v3344 = vpack.c.b16 %v3021, %v3020
    %v3345 = vpack.c.b16 %v3023, %v3022
    %v3346 = vpack.c.b16 %v3025, %v3024
    %v3347 = vpack.c.b16 %v3027, %v3026
    %v3348 = vpack.c.b16 %v3029, %v3028
    %v3349 = vpack.c.b16 %v3031, %v3030
    %v3350 = vpack.c.b16 %v3033, %v3032
    %v3351 = vpack.c.b16 %v3035, %v3034
    %v3352 = vpack.c.b16 %v3037, %v3036
    %v3353 = vpack.c.b16 %v3039, %v3038
    %v3354 = vpack.c.b16 %v3041, %v3040
    %v3355 = vpack.c.b16 %v3043, %v3042
    %v3356 = vpack.c.b16 %v3045, %v3044
    %v3357 = vpack.c.b16 %v3047, %v3046
    %v3358 = vpack.c.b16 %v3049, %v3048
    %v3359 = vpack.c.b16 %v3051, %v3050
    %v3360 = vpack.c.b16 %v3053, %v3052
    %v3361 = vpack.c.b16 %v3055, %v3054
    %v3362 = vpack.c.b16 %v3057, %v3056
    %v3363 = vpack.c.b16 %v3059, %v3058
    %v3364 = vpack.c.b16 %v3061, %v3060
    %v3365 = vpack.c.b16 %v3063, %v3062
    %v3366 = vpack.c.b16 %v3065, %v3064
    %v3367 = vpack.c.b16 %v3067, %v3066
    %v3368 = vpack.c.b16 %v3069, %v3068
    %v3369 = vpack.c.b16 %v3071, %v3070
    %v3370 = vpack.c.b16 %v3073, %v3072
    %v3371 = vpack.c.b16 %v3075, %v3074
    %v3372 = vpack.c.b16 %v3077, %v3076
    %v3373 = vpack.c.b16 %v3079, %v3078
    %v3374 = vpack.c.b16 %v3081, %v3080
    %v3375 = vpack.c.b16 %v3083, %v3082
    %v3376 = vpack.c.b16 %v3085, %v3084
    %v3377 = vpack.c.b16 %v3087, %v3086
    %v3378 = vpack.c.b16 %v3089, %v3088
    %v3379 = vpack.c.b16 %v3091, %v3090
    %v3380 = vpack.c.b16 %v3093, %v3092
    %v3381 = vpack.c.b16 %v3095, %v3094
    %v3382 = vpack.c.b16 %v3097, %v3096
    %v3383 = vpack.c.b16 %v3099, %v3098
    %v3384 = vpack.c.b16 %v3101, %v3100
    %v3385 = vpack.c.b16 %v3103, %v3102
    %v3386 = vpack.c.b16 %v3105, %v3104
    %v3387 = vpack.c.b16 %v3107, %v3106
    %v3388 = vpack.c.b16 %v3109, %v3108
    %v3389 = vpack.c.b16 %v3111, %v3110
    %v3390 = vpack.c.b16 %v3113, %v3112
    %v3391 = vpack.c.b16 %v3115, %v3114
    %v3392 = vpack.c.b16 %v3117, %v3116
    %v3393 = vpack.c.b16 %v3119, %v3118
    %v3394 = vpack.c.b16 %v3121, %v3120
    %v3395 = vpack.c.b16 %v3123, %v3122
    %v3396 = vpack.c.b16 %v3125, %v3124
    %v3397 = vpack.c.b16 %v3127, %v3126
    %v3398 = vpack.c.b16 %v3129, %v3128
    %v3399 = vpack.c.b16 %v3131, %v3130
    %v3400 = vpack.c.b16 %v3133, %v3132
    %v3401 = vpack.c.b16 %v3135, %v3134
    %v3402 = vpack.c.b16 %v3137, %v3136
    %v3403 = vpack.c.b16 %v3139, %v3138
    %v3404 = vpack.c.b16 %v3141, %v3140
    %v3405 = vpack.c.b16 %v3143, %v3142
    %v3406 = vpack.c.b16 %v3145, %v3144
    %v3407 = vpack.c.b16 %v3147, %v3146
    %v3408 = vpack.c.b16 %v3149, %v3148
    %v3409 = vpack.c.b16 %v3151, %v3150
    %v3410 = vpack.c.b16 %v3153, %v3152
    %v3411 = vpack.c.b16 %v3155, %v3154
    %3668 = vmatpush.bf16.msra.mxu0 %v3163
    %3669 = vmatpush.bf16.msra.mxu0 %v3162
    %3670 = vmatpush.bf16.msra.mxu0 %v3161
    %3671 = vmatpush.bf16.msra.mxu0 %v3160
    %3672 = vmatpush.bf16.msra.mxu0 %v3159
    %3673 = vmatpush.bf16.msra.mxu0 %v3158
    %3674 = vmatpush.bf16.msra.mxu0 %v3157
    %3675 = vmatpush.bf16.msra.mxu0 %v3156
    %3676 = vmatmul.bf16.gmra.mxu0 %v2068
    %v3677 = vpop.f32.mrf.mxu0
    %v3678 = vadd.f32 0.0, %v3677
    %v3679 = vpop.f32.mrf.mxu0
    %3680 = vdwg.mxu0
    %3681 = vmatpush.bf16.msra.mxu0 %v3171
    %3682 = vmatpush.bf16.msra.mxu0 %v3170
    %3683 = vmatpush.bf16.msra.mxu0 %v3169
    %3684 = vmatpush.bf16.msra.mxu0 %v3168
    %3685 = vmatpush.bf16.msra.mxu0 %v3167
    %3686 = vmatpush.bf16.msra.mxu0 %v3166
    %3687 = vmatpush.bf16.msra.mxu0 %v3165
    %3688 = vmatpush.bf16.msra.mxu0 %v3164
    %3689 = vmatmul.bf16.gmra.mxu0 %v2069
    %v3690 = vpop.f32.mrf.mxu0
    %v3691 = vadd.f32 %v3678, %v3690
    %v3692 = vpop.f32.mrf.mxu0
    %3693 = vdwg.mxu0
    %3694 = vmatpush.bf16.msra.mxu0 %v3179
    %3695 = vmatpush.bf16.msra.mxu0 %v3178
    %3696 = vmatpush.bf16.msra.mxu0 %v3177
    %3697 = vmatpush.bf16.msra.mxu0 %v3176
    %3698 = vmatpush.bf16.msra.mxu0 %v3175
    %3699 = vmatpush.bf16.msra.mxu0 %v3174
    %3700 = vmatpush.bf16.msra.mxu0 %v3173
    %3701 = vmatpush.bf16.msra.mxu0 %v3172
    %3702 = vmatmul.bf16.gmra.mxu0 %v2070
    %v3703 = vpop.f32.mrf.mxu0
    %v3704 = vadd.f32 %v3691, %v3703
    %v3705 = vpop.f32.mrf.mxu0
    %3706 = vdwg.mxu0
    %3707 = vmatpush.bf16.msra.mxu0 %v3187
    %3708 = vmatpush.bf16.msra.mxu0 %v3186
    %3709 = vmatpush.bf16.msra.mxu0 %v3185
    %3710 = vmatpush.bf16.msra.mxu0 %v3184
    %3711 = vmatpush.bf16.msra.mxu0 %v3183
    %3712 = vmatpush.bf16.msra.mxu0 %v3182
    %3713 = vmatpush.bf16.msra.mxu0 %v3181
    %3714 = vmatpush.bf16.msra.mxu0 %v3180
    %3715 = vmatmul.bf16.gmra.mxu0 %v2071
    %v3716 = vpop.f32.mrf.mxu0
    %v3717 = vadd.f32 %v3704, %v3716
    %v3718 = vpop.f32.mrf.mxu0
    %3719 = vdwg.mxu0
    %3720 = vmatpush.bf16.msra.mxu0 %v3195
    %3721 = vmatpush.bf16.msra.mxu0 %v3194
    %3722 = vmatpush.bf16.msra.mxu0 %v3193
    %3723 = vmatpush.bf16.msra.mxu0 %v3192
    %3724 = vmatpush.bf16.msra.mxu0 %v3191
    %3725 = vmatpush.bf16.msra.mxu0 %v3190
    %3726 = vmatpush.bf16.msra.mxu0 %v3189
    %3727 = vmatpush.bf16.msra.mxu0 %v3188
    %3728 = vmatmul.bf16.gmra.mxu0 %v2072
    %v3729 = vpop.f32.mrf.mxu0
    %v3730 = vadd.f32 %v3717, %v3729
    %v3731 = vpop.f32.mrf.mxu0
    %3732 = vdwg.mxu0
    %3733 = vmatpush.bf16.msra.mxu0 %v3203
    %3734 = vmatpush.bf16.msra.mxu0 %v3202
    %3735 = vmatpush.bf16.msra.mxu0 %v3201
    %3736 = vmatpush.bf16.msra.mxu0 %v3200
    %3737 = vmatpush.bf16.msra.mxu0 %v3199
    %3738 = vmatpush.bf16.msra.mxu0 %v3198
    %3739 = vmatpush.bf16.msra.mxu0 %v3197
    %3740 = vmatpush.bf16.msra.mxu0 %v3196
    %3741 = vmatmul.bf16.gmra.mxu0 %v2073
    %v3742 = vpop.f32.mrf.mxu0
    %v3743 = vadd.f32 %v3730, %v3742
    %v3744 = vpop.f32.mrf.mxu0
    %3745 = vdwg.mxu0
    %3746 = vmatpush.bf16.msra.mxu0 %v3211
    %3747 = vmatpush.bf16.msra.mxu0 %v3210
    %3748 = vmatpush.bf16.msra.mxu0 %v3209
    %3749 = vmatpush.bf16.msra.mxu0 %v3208
    %3750 = vmatpush.bf16.msra.mxu0 %v3207
    %3751 = vmatpush.bf16.msra.mxu0 %v3206
    %3752 = vmatpush.bf16.msra.mxu0 %v3205
    %3753 = vmatpush.bf16.msra.mxu0 %v3204
    %3754 = vmatmul.bf16.gmra.mxu0 %v2074
    %v3755 = vpop.f32.mrf.mxu0
    %v3756 = vadd.f32 %v3743, %v3755
    %v3757 = vpop.f32.mrf.mxu0
    %3758 = vdwg.mxu0
    %3759 = vmatpush.bf16.msra.mxu0 %v3219
    %3760 = vmatpush.bf16.msra.mxu0 %v3218
    %3761 = vmatpush.bf16.msra.mxu0 %v3217
    %3762 = vmatpush.bf16.msra.mxu0 %v3216
    %3763 = vmatpush.bf16.msra.mxu0 %v3215
    %3764 = vmatpush.bf16.msra.mxu0 %v3214
    %3765 = vmatpush.bf16.msra.mxu0 %v3213
    %3766 = vmatpush.bf16.msra.mxu0 %v3212
    %3767 = vmatmul.bf16.gmra.mxu0 %v2075
    %v3768 = vpop.f32.mrf.mxu0
    %v3769 = vadd.f32 %v3756, %v3768
    %v3770 = vpop.f32.mrf.mxu0
    %3771 = vdwg.mxu0
    %3772 = vmatpush.bf16.msra.mxu0 %v3227
    %3773 = vmatpush.bf16.msra.mxu0 %v3226
    %3774 = vmatpush.bf16.msra.mxu0 %v3225
    %3775 = vmatpush.bf16.msra.mxu0 %v3224
    %3776 = vmatpush.bf16.msra.mxu0 %v3223
    %3777 = vmatpush.bf16.msra.mxu0 %v3222
    %3778 = vmatpush.bf16.msra.mxu0 %v3221
    %3779 = vmatpush.bf16.msra.mxu0 %v3220
    %3780 = vmatmul.bf16.gmra.mxu0 %v2076
    %v3781 = vpop.f32.mrf.mxu0
    %v3782 = vadd.f32 %v3769, %v3781
    %v3783 = vpop.f32.mrf.mxu0
    %3784 = vdwg.mxu0
    %3785 = vmatpush.bf16.msra.mxu0 %v3235
    %3786 = vmatpush.bf16.msra.mxu0 %v3234
    %3787 = vmatpush.bf16.msra.mxu0 %v3233
    %3788 = vmatpush.bf16.msra.mxu0 %v3232
    %3789 = vmatpush.bf16.msra.mxu0 %v3231
    %3790 = vmatpush.bf16.msra.mxu0 %v3230
    %3791 = vmatpush.bf16.msra.mxu0 %v3229
    %3792 = vmatpush.bf16.msra.mxu0 %v3228
    %3793 = vmatmul.bf16.gmra.mxu0 %v2077
    %v3794 = vpop.f32.mrf.mxu0
    %v3795 = vadd.f32 %v3782, %v3794
    %v3796 = vpop.f32.mrf.mxu0
    %3797 = vdwg.mxu0
    %3798 = vmatpush.bf16.msra.mxu0 %v3243
    %3799 = vmatpush.bf16.msra.mxu0 %v3242
    %3800 = vmatpush.bf16.msra.mxu0 %v3241
    %3801 = vmatpush.bf16.msra.mxu0 %v3240
    %3802 = vmatpush.bf16.msra.mxu0 %v3239
    %3803 = vmatpush.bf16.msra.mxu0 %v3238
    %3804 = vmatpush.bf16.msra.mxu0 %v3237
    %3805 = vmatpush.bf16.msra.mxu0 %v3236
    %3806 = vmatmul.bf16.gmra.mxu0 %v2078
    %v3807 = vpop.f32.mrf.mxu0
    %v3808 = vadd.f32 %v3795, %v3807
    %v3809 = vpop.f32.mrf.mxu0
    %3810 = vdwg.mxu0
    %3811 = vmatpush.bf16.msra.mxu0 %v3251
    %3812 = vmatpush.bf16.msra.mxu0 %v3250
    %3813 = vmatpush.bf16.msra.mxu0 %v3249
    %3814 = vmatpush.bf16.msra.mxu0 %v3248
    %3815 = vmatpush.bf16.msra.mxu0 %v3247
    %3816 = vmatpush.bf16.msra.mxu0 %v3246
    %3817 = vmatpush.bf16.msra.mxu0 %v3245
    %3818 = vmatpush.bf16.msra.mxu0 %v3244
    %3819 = vmatmul.bf16.gmra.mxu0 %v2079
    %v3820 = vpop.f32.mrf.mxu0
    %v3821 = vadd.f32 %v3808, %v3820
    %v3822 = vpop.f32.mrf.mxu0
    %3823 = vdwg.mxu0
    %3824 = vmatpush.bf16.msra.mxu0 %v3259
    %3825 = vmatpush.bf16.msra.mxu0 %v3258
    %3826 = vmatpush.bf16.msra.mxu0 %v3257
    %3827 = vmatpush.bf16.msra.mxu0 %v3256
    %3828 = vmatpush.bf16.msra.mxu0 %v3255
    %3829 = vmatpush.bf16.msra.mxu0 %v3254
    %3830 = vmatpush.bf16.msra.mxu0 %v3253
    %3831 = vmatpush.bf16.msra.mxu0 %v3252
    %3832 = vmatmul.bf16.gmra.mxu0 %v2080
    %v3833 = vpop.f32.mrf.mxu0
    %v3834 = vadd.f32 %v3821, %v3833
    %v3835 = vpop.f32.mrf.mxu0
    %3836 = vdwg.mxu0
    %3837 = vmatpush.bf16.msra.mxu0 %v3267
    %3838 = vmatpush.bf16.msra.mxu0 %v3266
    %3839 = vmatpush.bf16.msra.mxu0 %v3265
    %3840 = vmatpush.bf16.msra.mxu0 %v3264
    %3841 = vmatpush.bf16.msra.mxu0 %v3263
    %3842 = vmatpush.bf16.msra.mxu0 %v3262
    %3843 = vmatpush.bf16.msra.mxu0 %v3261
    %3844 = vmatpush.bf16.msra.mxu0 %v3260
    %3845 = vmatmul.bf16.gmra.mxu0 %v2081
    %v3846 = vpop.f32.mrf.mxu0
    %v3847 = vadd.f32 %v3834, %v3846
    %v3848 = vpop.f32.mrf.mxu0
    %3849 = vdwg.mxu0
    %3850 = vmatpush.bf16.msra.mxu0 %v3275
    %3851 = vmatpush.bf16.msra.mxu0 %v3274
    %3852 = vmatpush.bf16.msra.mxu0 %v3273
    %3853 = vmatpush.bf16.msra.mxu0 %v3272
    %3854 = vmatpush.bf16.msra.mxu0 %v3271
    %3855 = vmatpush.bf16.msra.mxu0 %v3270
    %3856 = vmatpush.bf16.msra.mxu0 %v3269
    %3857 = vmatpush.bf16.msra.mxu0 %v3268
    %3858 = vmatmul.bf16.gmra.mxu0 %v2082
    %v3859 = vpop.f32.mrf.mxu0
    %v3860 = vadd.f32 %v3847, %v3859
    %v3861 = vpop.f32.mrf.mxu0
    %3862 = vdwg.mxu0
    %3863 = vmatpush.bf16.msra.mxu0 %v3283
    %3864 = vmatpush.bf16.msra.mxu0 %v3282
    %3865 = vmatpush.bf16.msra.mxu0 %v3281
    %3866 = vmatpush.bf16.msra.mxu0 %v3280
    %3867 = vmatpush.bf16.msra.mxu0 %v3279
    %3868 = vmatpush.bf16.msra.mxu0 %v3278
    %3869 = vmatpush.bf16.msra.mxu0 %v3277
    %3870 = vmatpush.bf16.msra.mxu0 %v3276
    %3871 = vmatmul.bf16.gmra.mxu0 %v2083
    %v3872 = vpop.f32.mrf.mxu0
    %v3873 = vadd.f32 %v3860, %v3872
    %v3874 = vpop.f32.mrf.mxu0
    %3875 = vdwg.mxu0
    %3876 = vmatpush.bf16.msra.mxu0 %v3291
    %3877 = vmatpush.bf16.msra.mxu0 %v3290
    %3878 = vmatpush.bf16.msra.mxu0 %v3289
    %3879 = vmatpush.bf16.msra.mxu0 %v3288
    %3880 = vmatpush.bf16.msra.mxu0 %v3287
    %3881 = vmatpush.bf16.msra.mxu0 %v3286
    %3882 = vmatpush.bf16.msra.mxu0 %v3285
    %3883 = vmatpush.bf16.msra.mxu0 %v3284
    %3884 = vmatmul.bf16.gmra.mxu0 %v2084
    %v3885 = vpop.f32.mrf.mxu0
    %v3886 = vadd.f32 %v3873, %v3885
    %v3887 = vpop.f32.mrf.mxu0
    %3888 = vdwg.mxu0
    %3889 = vmatpush.bf16.msra.mxu0 %v3299
    %3890 = vmatpush.bf16.msra.mxu0 %v3298
    %3891 = vmatpush.bf16.msra.mxu0 %v3297
    %3892 = vmatpush.bf16.msra.mxu0 %v3296
    %3893 = vmatpush.bf16.msra.mxu0 %v3295
    %3894 = vmatpush.bf16.msra.mxu0 %v3294
    %3895 = vmatpush.bf16.msra.mxu0 %v3293
    %3896 = vmatpush.bf16.msra.mxu0 %v3292
    %3897 = vmatmul.bf16.gmra.mxu0 %v2085
    %v3898 = vpop.f32.mrf.mxu0
    %v3899 = vadd.f32 %v3886, %v3898
    %v3900 = vpop.f32.mrf.mxu0
    %3901 = vdwg.mxu0
    %3902 = vmatpush.bf16.msra.mxu0 %v3307
    %3903 = vmatpush.bf16.msra.mxu0 %v3306
    %3904 = vmatpush.bf16.msra.mxu0 %v3305
    %3905 = vmatpush.bf16.msra.mxu0 %v3304
    %3906 = vmatpush.bf16.msra.mxu0 %v3303
    %3907 = vmatpush.bf16.msra.mxu0 %v3302
    %3908 = vmatpush.bf16.msra.mxu0 %v3301
    %3909 = vmatpush.bf16.msra.mxu0 %v3300
    %3910 = vmatmul.bf16.gmra.mxu0 %v2086
    %v3911 = vpop.f32.mrf.mxu0
    %v3912 = vadd.f32 %v3899, %v3911
    %v3913 = vpop.f32.mrf.mxu0
    %3914 = vdwg.mxu0
    %3915 = vmatpush.bf16.msra.mxu0 %v3315
    %3916 = vmatpush.bf16.msra.mxu0 %v3314
    %3917 = vmatpush.bf16.msra.mxu0 %v3313
    %3918 = vmatpush.bf16.msra.mxu0 %v3312
    %3919 = vmatpush.bf16.msra.mxu0 %v3311
    %3920 = vmatpush.bf16.msra.mxu0 %v3310
    %3921 = vmatpush.bf16.msra.mxu0 %v3309
    %3922 = vmatpush.bf16.msra.mxu0 %v3308
    %3923 = vmatmul.bf16.gmra.mxu0 %v2087
    %v3924 = vpop.f32.mrf.mxu0
    %v3925 = vadd.f32 %v3912, %v3924
    %v3926 = vpop.f32.mrf.mxu0
    %3927 = vdwg.mxu0
    %3928 = vmatpush.bf16.msra.mxu0 %v3323
    %3929 = vmatpush.bf16.msra.mxu0 %v3322
    %3930 = vmatpush.bf16.msra.mxu0 %v3321
    %3931 = vmatpush.bf16.msra.mxu0 %v3320
    %3932 = vmatpush.bf16.msra.mxu0 %v3319
    %3933 = vmatpush.bf16.msra.mxu0 %v3318
    %3934 = vmatpush.bf16.msra.mxu0 %v3317
    %3935 = vmatpush.bf16.msra.mxu0 %v3316
    %3936 = vmatmul.bf16.gmra.mxu0 %v2088
    %v3937 = vpop.f32.mrf.mxu0
    %v3938 = vadd.f32 %v3925, %v3937
    %v3939 = vpop.f32.mrf.mxu0
    %3940 = vdwg.mxu0
    %3941 = vmatpush.bf16.msra.mxu0 %v3331
    %3942 = vmatpush.bf16.msra.mxu0 %v3330
    %3943 = vmatpush.bf16.msra.mxu0 %v3329
    %3944 = vmatpush.bf16.msra.mxu0 %v3328
    %3945 = vmatpush.bf16.msra.mxu0 %v3327
    %3946 = vmatpush.bf16.msra.mxu0 %v3326
    %3947 = vmatpush.bf16.msra.mxu0 %v3325
    %3948 = vmatpush.bf16.msra.mxu0 %v3324
    %3949 = vmatmul.bf16.gmra.mxu0 %v2089
    %v3950 = vpop.f32.mrf.mxu0
    %v3951 = vadd.f32 %v3938, %v3950
    %v3952 = vpop.f32.mrf.mxu0
    %3953 = vdwg.mxu0
    %3954 = vmatpush.bf16.msra.mxu0 %v3339
    %3955 = vmatpush.bf16.msra.mxu0 %v3338
    %3956 = vmatpush.bf16.msra.mxu0 %v3337
    %3957 = vmatpush.bf16.msra.mxu0 %v3336
    %3958 = vmatpush.bf16.msra.mxu0 %v3335
    %3959 = vmatpush.bf16.msra.mxu0 %v3334
    %3960 = vmatpush.bf16.msra.mxu0 %v3333
    %3961 = vmatpush.bf16.msra.mxu0 %v3332
    %3962 = vmatmul.bf16.gmra.mxu0 %v2090
    %v3963 = vpop.f32.mrf.mxu0
    %v3964 = vadd.f32 %v3951, %v3963
    %v3965 = vpop.f32.mrf.mxu0
    %3966 = vdwg.mxu0
    %3967 = vmatpush.bf16.msra.mxu0 %v3347
    %3968 = vmatpush.bf16.msra.mxu0 %v3346
    %3969 = vmatpush.bf16.msra.mxu0 %v3345
    %3970 = vmatpush.bf16.msra.mxu0 %v3344
    %3971 = vmatpush.bf16.msra.mxu0 %v3343
    %3972 = vmatpush.bf16.msra.mxu0 %v3342
    %3973 = vmatpush.bf16.msra.mxu0 %v3341
    %3974 = vmatpush.bf16.msra.mxu0 %v3340
    %3975 = vmatmul.bf16.gmra.mxu0 %v2091
    %v3976 = vpop.f32.mrf.mxu0
    %v3977 = vadd.f32 %v3964, %v3976
    %v3978 = vpop.f32.mrf.mxu0
    %3979 = vdwg.mxu0
    %3980 = vmatpush.bf16.msra.mxu0 %v3355
    %3981 = vmatpush.bf16.msra.mxu0 %v3354
    %3982 = vmatpush.bf16.msra.mxu0 %v3353
    %3983 = vmatpush.bf16.msra.mxu0 %v3352
    %3984 = vmatpush.bf16.msra.mxu0 %v3351
    %3985 = vmatpush.bf16.msra.mxu0 %v3350
    %3986 = vmatpush.bf16.msra.mxu0 %v3349
    %3987 = vmatpush.bf16.msra.mxu0 %v3348
    %3988 = vmatmul.bf16.gmra.mxu0 %v2092
    %v3989 = vpop.f32.mrf.mxu0
    %v3990 = vadd.f32 %v3977, %v3989
    %v3991 = vpop.f32.mrf.mxu0
    %3992 = vdwg.mxu0
    %3993 = vmatpush.bf16.msra.mxu0 %v3363
    %3994 = vmatpush.bf16.msra.mxu0 %v3362
    %3995 = vmatpush.bf16.msra.mxu0 %v3361
    %3996 = vmatpush.bf16.msra.mxu0 %v3360
    %3997 = vmatpush.bf16.msra.mxu0 %v3359
    %3998 = vmatpush.bf16.msra.mxu0 %v3358
    %3999 = vmatpush.bf16.msra.mxu0 %v3357
    %4000 = vmatpush.bf16.msra.mxu0 %v3356
    %4001 = vmatmul.bf16.gmra.mxu0 %v2093
    %v4002 = vpop.f32.mrf.mxu0
    %v4003 = vadd.f32 %v3990, %v4002
    %v4004 = vpop.f32.mrf.mxu0
    %4005 = vdwg.mxu0
    %4006 = vmatpush.bf16.msra.mxu0 %v3371
    %4007 = vmatpush.bf16.msra.mxu0 %v3370
    %4008 = vmatpush.bf16.msra.mxu0 %v3369
    %4009 = vmatpush.bf16.msra.mxu0 %v3368
    %4010 = vmatpush.bf16.msra.mxu0 %v3367
    %4011 = vmatpush.bf16.msra.mxu0 %v3366
    %4012 = vmatpush.bf16.msra.mxu0 %v3365
    %4013 = vmatpush.bf16.msra.mxu0 %v3364
    %4014 = vmatmul.bf16.gmra.mxu0 %v2094
    %v4015 = vpop.f32.mrf.mxu0
    %v4016 = vadd.f32 %v4003, %v4015
    %v4017 = vpop.f32.mrf.mxu0
    %4018 = vdwg.mxu0
    %4019 = vmatpush.bf16.msra.mxu0 %v3379
    %4020 = vmatpush.bf16.msra.mxu0 %v3378
    %4021 = vmatpush.bf16.msra.mxu0 %v3377
    %4022 = vmatpush.bf16.msra.mxu0 %v3376
    %4023 = vmatpush.bf16.msra.mxu0 %v3375
    %4024 = vmatpush.bf16.msra.mxu0 %v3374
    %4025 = vmatpush.bf16.msra.mxu0 %v3373
    %4026 = vmatpush.bf16.msra.mxu0 %v3372
    %4027 = vmatmul.bf16.gmra.mxu0 %v2095
    %v4028 = vpop.f32.mrf.mxu0
    %v4029 = vadd.f32 %v4016, %v4028
    %v4030 = vpop.f32.mrf.mxu0
    %4031 = vdwg.mxu0
    %4032 = vmatpush.bf16.msra.mxu0 %v3387
    %4033 = vmatpush.bf16.msra.mxu0 %v3386
    %4034 = vmatpush.bf16.msra.mxu0 %v3385
    %4035 = vmatpush.bf16.msra.mxu0 %v3384
    %4036 = vmatpush.bf16.msra.mxu0 %v3383
    %4037 = vmatpush.bf16.msra.mxu0 %v3382
    %4038 = vmatpush.bf16.msra.mxu0 %v3381
    %4039 = vmatpush.bf16.msra.mxu0 %v3380
    %4040 = vmatmul.bf16.gmra.mxu0 %v2096
    %v4041 = vpop.f32.mrf.mxu0
    %v4042 = vadd.f32 %v4029, %v4041
    %v4043 = vpop.f32.mrf.mxu0
    %4044 = vdwg.mxu0
    %4045 = vmatpush.bf16.msra.mxu0 %v3395
    %4046 = vmatpush.bf16.msra.mxu0 %v3394
    %4047 = vmatpush.bf16.msra.mxu0 %v3393
    %4048 = vmatpush.bf16.msra.mxu0 %v3392
    %4049 = vmatpush.bf16.msra.mxu0 %v3391
    %4050 = vmatpush.bf16.msra.mxu0 %v3390
    %4051 = vmatpush.bf16.msra.mxu0 %v3389
    %4052 = vmatpush.bf16.msra.mxu0 %v3388
    %4053 = vmatmul.bf16.gmra.mxu0 %v2097
    %v4054 = vpop.f32.mrf.mxu0
    %v4055 = vadd.f32 %v4042, %v4054
    %v4056 = vpop.f32.mrf.mxu0
    %4057 = vdwg.mxu0
    %4058 = vmatpush.bf16.msra.mxu0 %v3403
    %4059 = vmatpush.bf16.msra.mxu0 %v3402
    %4060 = vmatpush.bf16.msra.mxu0 %v3401
    %4061 = vmatpush.bf16.msra.mxu0 %v3400
    %4062 = vmatpush.bf16.msra.mxu0 %v3399
    %4063 = vmatpush.bf16.msra.mxu0 %v3398
    %4064 = vmatpush.bf16.msra.mxu0 %v3397
    %4065 = vmatpush.bf16.msra.mxu0 %v3396
    %4066 = vmatmul.bf16.gmra.mxu0 %v2098
    %v4067 = vpop.f32.mrf.mxu0
    %v4068 = vadd.f32 %v4055, %v4067
    %v4069 = vpop.f32.mrf.mxu0
    %4070 = vdwg.mxu0
    %4071 = vmatpush.bf16.msra.mxu0 %v3411
    %4072 = vmatpush.bf16.msra.mxu0 %v3410
    %4073 = vmatpush.bf16.msra.mxu0 %v3409
    %4074 = vmatpush.bf16.msra.mxu0 %v3408
    %4075 = vmatpush.bf16.msra.mxu0 %v3407
    %4076 = vmatpush.bf16.msra.mxu0 %v3406
    %4077 = vmatpush.bf16.msra.mxu0 %v3405
    %4078 = vmatpush.bf16.msra.mxu0 %v3404
    %4079 = vmatmul.bf16.gmra.mxu0 %v2099
    %v4080 = vpop.f32.mrf.mxu0
    %v4081 = vadd.f32 %v4068, %v4080
    %v4082 = vpop.f32.mrf.mxu0
    %4083 = vdwg.mxu0
    %s4084 = sld [smem:[#allocation2]]
    %v4085 = vstv %s4084
    %v4086 = vmul.f32 %v4081, %v4085
    %v4087 = vld [vmem:[%s3] sm:$0x1]
    %v4089 = vperm.slane %v4087, 0
    %v4091 = vadd.f32 %v4086, %v4089
    %4092 = vst [vmem:[#allocation8] sm:$0x3] %v4091
    // Predicated region
    $region26: #{tpu_custom_call.1} parent=1 // pred_check
      _
    $region27: #{tpu_custom_call.1} parent=1 // pred_check_branch
      %4094 = sbr.rel (0) target = $region29
    $region28: #{tpu_custom_call.1} parent=1 // pred_region
      %4096 = vsyncadd [#allocation5], 0
      %s4098 = sshll.u32 [#allocation8], 4
      %s4099 = int_to_ptr.vmem [resolvable:$true] %s4098
      %s4100 = sshll.u32 %s4, 4
      %s4101 = int_to_ptr.hbm [resolvable:$true] %s4100
      %4103 = dma.vmem_to_hbm [thread:$0]  %s4099, 32, %s4101, [#allocation5]
    $region29: #{tpu_custom_call.1} parent=1 // pred_fallthru
      _
    // Predicated region
    $region30: #{tpu_custom_call.1} parent=1 // pred_check
      _
    $region31: #{tpu_custom_call.1} parent=1 // pred_check_branch
      %4105 = sbr.rel (0) target = $region33
    $region32: #{tpu_custom_call.1} parent=1 // pred_region
      %4107 = dma.done [#allocation5], 32
    $region33: #{tpu_custom_call.1} parent=1 // pred_fallthru
      _
    %4108 = vsyncpa [#allocation4], 1
    %4109 = vsyncpa [#allocation7], 1
    %4110 = vsyncpa [#allocation5], 1

</llo_original>
